<compile_context>
chip_gen: v7x
topology: tpu7x:2x2x1
jax: 0.10.0
libtpu: 0.0.40
codegen_flags: <defaults>
</compile_context>

<pallas_src>
import jax
import jax.numpy as jnp
from jax import lax
from jax.experimental import pallas as pl
from jax.experimental.pallas import tpu as pltpu

_SQRT1_2 = 0.7071067811865476


def _round_up(x, m):
    return (x + m - 1) // m * m


def _gelu_exact(v):
    # torch.nn.GELU() default = exact erf-based GELU
    return 0.5 * v * (1.0 + lax.erf(v * _SQRT1_2))


def _sigmoid(v):
    # 0.5*(tanh(v/2)+1): numerically stable, transcendental routes to the EUP.
    return 0.5 * (jnp.tanh(0.5 * v) + 1.0)


def policy_disc_kernel(x_ref,
                       w1_ref, b1_ref,
                       w2_ref, b2_ref,
                       w3_ref, b3_ref,
                       wh_ref, bh_ref,
                       out_ref):
    # Trunk: Linear(latent,1024)+GELU, Linear(1024,1024)+GELU, Linear(1024,512)+GELU
    # bf16 MXU operands, f32 accumulation.
    h = _gelu_exact(jnp.dot(x_ref[...], w1_ref[...],
                            preferred_element_type=jnp.float32) + b1_ref[...])
    h = _gelu_exact(jnp.dot(h.astype(jnp.bfloat16), w2_ref[...],
                            preferred_element_type=jnp.float32) + b2_ref[...])
    h = _gelu_exact(jnp.dot(h.astype(jnp.bfloat16), w3_ref[...],
                            preferred_element_type=jnp.float32) + b3_ref[...])

    # Fused heads: columns = [disc(1) | traj | task | zero pad]  (lane-dense slab)
    y = jnp.dot(h.astype(jnp.bfloat16), wh_ref[...],
                preferred_element_type=jnp.float32) + bh_ref[...]
    col = lax.broadcasted_iota(jnp.int32, y.shape, 1)
    out_ref[...] = jnp.where(col == 0, _sigmoid(y), y)


def pack_params(params):
    """One-time layout prep: pad/cast weights into MXU-friendly bf16 slabs."""
    latent = params["w1"].shape[0]
    traj_dim = params["wtr"].shape[1]
    task_dim = params["wta"].shape[1]
    head_dim = 1 + traj_dim + task_dim

    Kp = _round_up(max(latent, 128), 128)     # pad latent (K of first matmul)
    HPAD = _round_up(head_dim, 128)           # lane-dense fused head width

    w1 = jnp.zeros((Kp, 1024), jnp.bfloat16).at[:latent, :].set(
        params["w1"].astype(jnp.bfloat16))
    w2 = params["w2"].astype(jnp.bfloat16)
    w3 = params["w3"].astype(jnp.bfloat16)

    wh = jnp.zeros((512, HPAD), jnp.bfloat16)
    wh = wh.at[:, 0:1].set(params["wd"].astype(jnp.bfloat16))
    wh = wh.at[:, 1:1 + traj_dim].set(params["wtr"].astype(jnp.bfloat16))
    wh = wh.at[:, 1 + traj_dim:head_dim].set(params["wta"].astype(jnp.bfloat16))

    bh = jnp.zeros((1, HPAD), jnp.float32)
    bh = bh.at[:, 0:1].set(params["bd"].astype(jnp.float32))
    bh = bh.at[:, 1:1 + traj_dim].set(params["btr"].astype(jnp.float32))
    bh = bh.at[:, 1 + traj_dim:head_dim].set(params["bta"].astype(jnp.float32))

    packed = dict(
        w1=w1, b1=params["b1"].astype(jnp.float32),
        w2=w2, b2=params["b2"].astype(jnp.float32),
        w3=w3, b3=params["b3"].astype(jnp.float32),
        wh=wh, bh=bh,
    )
    meta = dict(latent=latent, traj_dim=traj_dim, task_dim=task_dim,
                head_dim=head_dim, Kp=Kp, HPAD=HPAD)
    return packed, meta


def policy_discriminator_forward(x, packed, meta):
    """x: [B, latent_size] float32.  packed/meta: from pack_params."""
    B, latent = x.shape
    assert latent == meta["latent"]
    Kp, HPAD = meta["Kp"], meta["HPAD"]
    traj_dim, task_dim, head_dim = meta["traj_dim"], meta["task_dim"], meta["head_dim"]

    TM = 256 if B >= 256 else _round_up(B, 8)     # batch tile
    Bp = _round_up(B, TM)
    grid = (Bp // TM,)

    # zero-pad batch / latent (pure layout plumbing; padded rows are discarded)
    xp = jnp.zeros((Bp, Kp), jnp.bfloat16).at[:B, :latent].set(
        x.astype(jnp.bfloat16))

    def resident(shape):
        # weights/biases: same block every grid step -> DMA'd once, VMEM-resident
        return pl.BlockSpec(shape, lambda i: (0, 0))

    in_specs = [
        pl.BlockSpec((TM, Kp), lambda i: (i, 0)),      # x tile (double-buffered)
        resident((Kp, 1024)), resident((1, 1024)),
        resident((1024, 1024)), resident((1, 1024)),
        resident((1024, 512)), resident((1, 512)),
        resident((512, HPAD)), resident((1, HPAD)),
    ]
    out_spec = pl.BlockSpec((TM, HPAD), lambda i: (i, 0))

    # --- VMEM budget (leave headroom; never request all of v7x's 64 MiB) -----
    weight_bytes = 2 * (packed["w1"].size + packed["w2"].size
                        + packed["w3"].size + packed["wh"].size)       # bf16
    bias_bytes = 4 * (1024 + 1024 + 512 + HPAD)
    tile_bytes = 2 * (TM * Kp * 2 + TM * HPAD * 4)                     # dbl-buffered
    act_bytes = 2 * TM * 1024 * 4                                      # trunk acts
    vmem_limit = int(min(48 * 1024 * 1024,
                         max(24 * 1024 * 1024,
                             2 * (weight_bytes + bias_bytes)
                             + tile_bytes + act_bytes + 4 * 1024 * 1024)))

    out = pl.pallas_call(
        policy_disc_kernel,
        out_shape=jax.ShapeDtypeStruct((Bp, HPAD), jnp.float32),
        grid=grid,
        in_specs=in_specs,
        out_specs=out_spec,
        compiler_params=pltpu.CompilerParams(
            dimension_semantics=("parallel",),
            vmem_limit_bytes=vmem_limit),
    )(xp, packed["w1"], packed["b1"], packed["w2"], packed["b2"],
      packed["w3"], packed["b3"], packed["wh"], packed["bh"])

    disc = out[:B, 0:1]
    traj = out[:B, 1:1 + traj_dim]
    task = out[:B, 1 + traj_dim:head_dim]
    return disc, traj, task


def init_params(key, latent_size, traj_dim, task_dim):
    ks = jax.random.split(key, 6)
    scale = 0.02

    def lin(k, fan_in, fan_out):
        w = scale * jax.random.normal(k, (fan_in, fan_out), jnp.float32)
        b = scale * jax.random.normal(jax.random.fold_in(k, 1), (1, fan_out),
                                      jnp.float32)
        return w, b

    w1, b1 = lin(ks[0], latent_size, 1024)
    w2, b2 = lin(ks[1], 1024, 1024)
    w3, b3 = lin(ks[2], 1024, 512)
    wd, bd = lin(ks[3], 512, 1)
    wtr, btr = lin(ks[4], 512, traj_dim)
    wta, bta = lin(ks[5], 512, task_dim)
    return dict(w1=w1, b1=b1, w2=w2, b2=b2, w3=w3, b3=b3,
                wd=wd, bd=bd, wtr=wtr, btr=btr, wta=wta, bta=bta)


def reference_forward(x, p):
    def gelu(v):
        return 0.5 * v * (1.0 + lax.erf(v * _SQRT1_2))
    h = gelu(x @ p["w1"] + p["b1"])
    h = gelu(h @ p["w2"] + p["b2"])
    h = gelu(h @ p["w3"] + p["b3"])
    disc = jax.nn.sigmoid(h @ p["wd"] + p["bd"])
    traj = h @ p["wtr"] + p["btr"]
    task = h @ p["wta"] + p["bta"]
    return disc, traj, task


if __name__ == "__main__":
    latent_size, traj_dim, task_dim, batch = 32, 8, 8, 4

    key = jax.random.PRNGKey(0)
    kx, kp = jax.random.split(key)
    x = jax.random.normal(kx, (batch, latent_size), jnp.float32)
    params = init_params(kp, latent_size, traj_dim, task_dim)

    packed, meta = pack_params(params)
    disc, traj, task = jax.block_until_ready(
        policy_discriminator_forward(x, packed, meta))

    ref_disc, ref_traj, ref_task = reference_forward(x, params)
    assert disc.shape == (batch, 1)
    assert traj.shape == (batch, traj_dim)
    assert task.shape == (batch, task_dim)
    # bf16 MXU operands with f32 accumulation: tolerance covers bf16 rounding.
    assert jnp.allclose(disc, ref_disc, rtol=1e-2, atol=2e-3)
    assert jnp.allclose(traj, ref_traj, rtol=1e-2, atol=2e-3)
    assert jnp.allclose(task, ref_task, rtol=1e-2, atol=2e-3)

    print("KERNEL_OK")
</pallas_src>

<mosaic_0001>
module attributes {stable_mosaic.version = 11 : i64} {
  func.func @policy_disc_kernel(%arg0: i32, %arg1: memref<8x128xbf16, #tpu.memory_space<vmem>>, %arg2: memref<128x1024xbf16, #tpu.memory_space<vmem>>, %arg3: memref<1x1024xf32, #tpu.memory_space<vmem>>, %arg4: memref<1024x1024xbf16, #tpu.memory_space<vmem>>, %arg5: memref<1x1024xf32, #tpu.memory_space<vmem>>, %arg6: memref<1024x512xbf16, #tpu.memory_space<vmem>>, %arg7: memref<1x512xf32, #tpu.memory_space<vmem>>, %arg8: memref<512x128xbf16, #tpu.memory_space<vmem>>, %arg9: memref<1x128xf32, #tpu.memory_space<vmem>>, %arg10: memref<8x128xf32, #tpu.memory_space<vmem>>) attributes {dimension_semantics = [#tpu.dimension_semantics<parallel>], iteration_bounds = array<i64: 1>, scalar_prefetch = 0 : i64, scratch_operands = 0 : i64, tpu.core_type = #tpu.core_type<tc>, window_params = [{transform_indices = @transform_0, window_bounds = array<i64: 8, 128>}, {pipeline_mode = #tpu.pipeline_mode<synchronous>, transform_indices = @transform_1, window_bounds = array<i64: 128, 1024>}, {pipeline_mode = #tpu.pipeline_mode<synchronous>, transform_indices = @transform_2, window_bounds = array<i64: 1, 1024>}, {pipeline_mode = #tpu.pipeline_mode<synchronous>, transform_indices = @transform_3, window_bounds = array<i64: 1024, 1024>}, {pipeline_mode = #tpu.pipeline_mode<synchronous>, transform_indices = @transform_4, window_bounds = array<i64: 1, 1024>}, {pipeline_mode = #tpu.pipeline_mode<synchronous>, transform_indices = @transform_5, window_bounds = array<i64: 1024, 512>}, {pipeline_mode = #tpu.pipeline_mode<synchronous>, transform_indices = @transform_6, window_bounds = array<i64: 1, 512>}, {pipeline_mode = #tpu.pipeline_mode<synchronous>, transform_indices = @transform_7, window_bounds = array<i64: 512, 128>}, {pipeline_mode = #tpu.pipeline_mode<synchronous>, transform_indices = @transform_8, window_bounds = array<i64: 1, 128>}, {transform_indices = @transform_9, window_bounds = array<i64: 8, 128>}]} {
    %c0 = arith.constant 0 : index
    %c0_0 = arith.constant 0 : index
    %0 = vector.load %arg1[%c0, %c0_0] : memref<8x128xbf16, #tpu.memory_space<vmem>>, vector<8x128xbf16>
    %c0_1 = arith.constant 0 : index
    %c0_2 = arith.constant 0 : index
    %1 = vector.load %arg2[%c0_1, %c0_2] : memref<128x1024xbf16, #tpu.memory_space<vmem>>, vector<128x1024xbf16>
    %cst = arith.constant dense<0.000000e+00> : vector<8x1024xf32>
    %2 = tpu.matmul %0, %1, %cst {dimension_numbers = #tpu.dot_dimension_numbers<[1], [0], [0], [1], [0, 0, 1, 1], [], []>} : vector<8x128xbf16>, vector<128x1024xbf16>, vector<8x1024xf32> -> vector<8x1024xf32>
    %c0_3 = arith.constant 0 : index
    %c0_4 = arith.constant 0 : index
    %3 = vector.load %arg3[%c0_3, %c0_4] : memref<1x1024xf32, #tpu.memory_space<vmem>>, vector<1x1024xf32>
    %4 = vector.broadcast %3 : vector<1x1024xf32> to vector<8x1024xf32>
    %5 = arith.addf %2, %4 : vector<8x1024xf32>
    %cst_5 = arith.constant 5.000000e-01 : f32
    %6 = vector.broadcast %cst_5 : f32 to vector<8x1024xf32>
    %7 = arith.mulf %6, %5 : vector<8x1024xf32>
    %cst_6 = arith.constant 0.707106769 : f32
    %8 = vector.broadcast %cst_6 : f32 to vector<8x1024xf32>
    %9 = arith.mulf %5, %8 : vector<8x1024xf32>
    %10 = math.erf %9 : vector<8x1024xf32>
    %cst_7 = arith.constant 1.000000e+00 : f32
    %11 = vector.broadcast %cst_7 : f32 to vector<8x1024xf32>
    %12 = arith.addf %11, %10 : vector<8x1024xf32>
    %13 = arith.mulf %7, %12 : vector<8x1024xf32>
    %14 = arith.truncf %13 : vector<8x1024xf32> to vector<8x1024xbf16>
    %c0_8 = arith.constant 0 : index
    %c0_9 = arith.constant 0 : index
    %15 = vector.load %arg4[%c0_8, %c0_9] : memref<1024x1024xbf16, #tpu.memory_space<vmem>>, vector<1024x1024xbf16>
    %cst_10 = arith.constant dense<0.000000e+00> : vector<8x1024xf32>
    %16 = tpu.matmul %14, %15, %cst_10 {dimension_numbers = #tpu.dot_dimension_numbers<[1], [0], [0], [1], [0, 0, 1, 1], [], []>} : vector<8x1024xbf16>, vector<1024x1024xbf16>, vector<8x1024xf32> -> vector<8x1024xf32>
    %c0_11 = arith.constant 0 : index
    %c0_12 = arith.constant 0 : index
    %17 = vector.load %arg5[%c0_11, %c0_12] : memref<1x1024xf32, #tpu.memory_space<vmem>>, vector<1x1024xf32>
    %18 = vector.broadcast %17 : vector<1x1024xf32> to vector<8x1024xf32>
    %19 = arith.addf %16, %18 : vector<8x1024xf32>
    %cst_13 = arith.constant 5.000000e-01 : f32
    %20 = vector.broadcast %cst_13 : f32 to vector<8x1024xf32>
    %21 = arith.mulf %20, %19 : vector<8x1024xf32>
    %cst_14 = arith.constant 0.707106769 : f32
    %22 = vector.broadcast %cst_14 : f32 to vector<8x1024xf32>
    %23 = arith.mulf %19, %22 : vector<8x1024xf32>
    %24 = math.erf %23 : vector<8x1024xf32>
    %cst_15 = arith.constant 1.000000e+00 : f32
    %25 = vector.broadcast %cst_15 : f32 to vector<8x1024xf32>
    %26 = arith.addf %25, %24 : vector<8x1024xf32>
    %27 = arith.mulf %21, %26 : vector<8x1024xf32>
    %28 = arith.truncf %27 : vector<8x1024xf32> to vector<8x1024xbf16>
    %c0_16 = arith.constant 0 : index
    %c0_17 = arith.constant 0 : index
    %29 = vector.load %arg6[%c0_16, %c0_17] : memref<1024x512xbf16, #tpu.memory_space<vmem>>, vector<1024x512xbf16>
    %cst_18 = arith.constant dense<0.000000e+00> : vector<8x512xf32>
    %30 = tpu.matmul %28, %29, %cst_18 {dimension_numbers = #tpu.dot_dimension_numbers<[1], [0], [0], [1], [0, 0, 1, 1], [], []>} : vector<8x1024xbf16>, vector<1024x512xbf16>, vector<8x512xf32> -> vector<8x512xf32>
    %c0_19 = arith.constant 0 : index
    %c0_20 = arith.constant 0 : index
    %31 = vector.load %arg7[%c0_19, %c0_20] : memref<1x512xf32, #tpu.memory_space<vmem>>, vector<1x512xf32>
    %32 = vector.broadcast %31 : vector<1x512xf32> to vector<8x512xf32>
    %33 = arith.addf %30, %32 : vector<8x512xf32>
    %cst_21 = arith.constant 5.000000e-01 : f32
    %34 = vector.broadcast %cst_21 : f32 to vector<8x512xf32>
    %35 = arith.mulf %34, %33 : vector<8x512xf32>
    %cst_22 = arith.constant 0.707106769 : f32
    %36 = vector.broadcast %cst_22 : f32 to vector<8x512xf32>
    %37 = arith.mulf %33, %36 : vector<8x512xf32>
    %38 = math.erf %37 : vector<8x512xf32>
    %cst_23 = arith.constant 1.000000e+00 : f32
    %39 = vector.broadcast %cst_23 : f32 to vector<8x512xf32>
    %40 = arith.addf %39, %38 : vector<8x512xf32>
    %41 = arith.mulf %35, %40 : vector<8x512xf32>
    %42 = arith.truncf %41 : vector<8x512xf32> to vector<8x512xbf16>
    %c0_24 = arith.constant 0 : index
    %c0_25 = arith.constant 0 : index
    %43 = vector.load %arg8[%c0_24, %c0_25] : memref<512x128xbf16, #tpu.memory_space<vmem>>, vector<512x128xbf16>
    %cst_26 = arith.constant dense<0.000000e+00> : vector<8x128xf32>
    %44 = tpu.matmul %42, %43, %cst_26 {dimension_numbers = #tpu.dot_dimension_numbers<[1], [0], [0], [1], [0, 0, 1, 1], [], []>} : vector<8x512xbf16>, vector<512x128xbf16>, vector<8x128xf32> -> vector<8x128xf32>
    %c0_27 = arith.constant 0 : index
    %c0_28 = arith.constant 0 : index
    %45 = vector.load %arg9[%c0_27, %c0_28] : memref<1x128xf32, #tpu.memory_space<vmem>>, vector<1x128xf32>
    %46 = vector.broadcast %45 : vector<1x128xf32> to vector<8x128xf32>
    %47 = arith.addf %44, %46 : vector<8x128xf32>
    %48 = tpu.iota {dimensions = array<i32: 1>} : vector<8x128xi32>
    %c0_i32 = arith.constant 0 : i32
    %49 = vector.broadcast %c0_i32 : i32 to vector<8x128xi32>
    %50 = arith.cmpi eq, %48, %49 : vector<8x128xi32>
    %cst_29 = arith.constant 5.000000e-01 : f32
    %51 = vector.broadcast %cst_29 : f32 to vector<8x128xf32>
    %52 = arith.mulf %51, %47 : vector<8x128xf32>
    %53 = math.tanh %52 : vector<8x128xf32>
    %cst_30 = arith.constant 1.000000e+00 : f32
    %54 = vector.broadcast %cst_30 : f32 to vector<8x128xf32>
    %55 = arith.addf %53, %54 : vector<8x128xf32>
    %cst_31 = arith.constant 5.000000e-01 : f32
    %56 = vector.broadcast %cst_31 : f32 to vector<8x128xf32>
    %57 = arith.mulf %56, %55 : vector<8x128xf32>
    %58 = arith.select %50, %57, %47 : vector<8x128xi1>, vector<8x128xf32>
    %c0_32 = arith.constant 0 : index
    %c0_33 = arith.constant 0 : index
    %59 = vector.load %arg10[%c0_32, %c0_33] : memref<8x128xf32, #tpu.memory_space<vmem>>, vector<8x128xf32>
    tpu.vector_store %arg10[%c0_32, %c0_33], %58 {strides = array<i32>} : memref<8x128xf32, #tpu.memory_space<vmem>>, vector<8x128xf32>,
    return
  }
  func.func @transform_0(%arg0: i32) -> (i32, i32) {
    %c0_i32 = arith.constant 0 : i32
    %c0_i32_0 = arith.constant 0 : i32
    return %arg0, %c0_i32 : i32, i32
  }
  func.func @transform_1(%arg0: i32) -> (i32, i32) {
    %c0_i32 = arith.constant 0 : i32
    %c0_i32_0 = arith.constant 0 : i32
    %c0_i32_1 = arith.constant 0 : i32
    return %c0_i32, %c0_i32_0 : i32, i32
  }
  func.func @transform_2(%arg0: i32) -> (i32, i32) {
    %c0_i32 = arith.constant 0 : i32
    %c0_i32_0 = arith.constant 0 : i32
    %c0_i32_1 = arith.constant 0 : i32
    return %c0_i32, %c0_i32_0 : i32, i32
  }
  func.func @transform_3(%arg0: i32) -> (i32, i32) {
    %c0_i32 = arith.constant 0 : i32
    %c0_i32_0 = arith.constant 0 : i32
    %c0_i32_1 = arith.constant 0 : i32
    return %c0_i32, %c0_i32_0 : i32, i32
  }
  func.func @transform_4(%arg0: i32) -> (i32, i32) {
    %c0_i32 = arith.constant 0 : i32
    %c0_i32_0 = arith.constant 0 : i32
    %c0_i32_1 = arith.constant 0 : i32
    return %c0_i32, %c0_i32_0 : i32, i32
  }
  func.func @transform_5(%arg0: i32) -> (i32, i32) {
    %c0_i32 = arith.constant 0 : i32
    %c0_i32_0 = arith.constant 0 : i32
    %c0_i32_1 = arith.constant 0 : i32
    return %c0_i32, %c0_i32_0 : i32, i32
  }
  func.func @transform_6(%arg0: i32) -> (i32, i32) {
    %c0_i32 = arith.constant 0 : i32
    %c0_i32_0 = arith.constant 0 : i32
    %c0_i32_1 = arith.constant 0 : i32
    return %c0_i32, %c0_i32_0 : i32, i32
  }
  func.func @transform_7(%arg0: i32) -> (i32, i32) {
    %c0_i32 = arith.constant 0 : i32
    %c0_i32_0 = arith.constant 0 : i32
    %c0_i32_1 = arith.constant 0 : i32
    return %c0_i32, %c0_i32_0 : i32, i32
  }
  func.func @transform_8(%arg0: i32) -> (i32, i32) {
    %c0_i32 = arith.constant 0 : i32
    %c0_i32_0 = arith.constant 0 : i32
    %c0_i32_1 = arith.constant 0 : i32
    return %c0_i32, %c0_i32_0 : i32, i32
  }
  func.func @transform_9(%arg0: i32) -> (i32, i32) {
    %c0_i32 = arith.constant 0 : i32
    %c0_i32_0 = arith.constant 0 : i32
    return %arg0, %c0_i32 : i32, i32
  }
}

</mosaic_0001>

<llo_original>
// kernel: tpu_custom_call.1
$region0: #{tpu_custom_call.1}
  #allocation0 [shape = 'u32[]', space=smem, size = 0x4, offset = 0x4, fixed_abs, tag = 'smem constant byte address 0x4 - core index']
  #allocation1 [shape = 'u32[144,128]{1,0:T(1,128)}', space=vmem, size = 0x12000, scoped, tag = 'internal scratch']
  %s0 = inlined_call_operand.hbm [shape: bf16[8,128], index: 0, kind: input, shape index: {}]
  %s1 = inlined_call_operand.hbm [shape: bf16[128,1024], index: 1, kind: input, shape index: {}]
  %s2 = inlined_call_operand.hbm [shape: f32[1,1024], index: 2, kind: input, shape index: {}]
  %s3 = inlined_call_operand.hbm [shape: bf16[1024,1024], index: 3, kind: input, shape index: {}]
  %s4 = inlined_call_operand.hbm [shape: f32[1,1024], index: 4, kind: input, shape index: {}]
  %s5 = inlined_call_operand.hbm [shape: bf16[1024,512], index: 5, kind: input, shape index: {}]
  %s6 = inlined_call_operand.hbm [shape: f32[1,512], index: 6, kind: input, shape index: {}]
  %s7 = inlined_call_operand.hbm [shape: bf16[512,128], index: 7, kind: input, shape index: {}]
  %s8 = inlined_call_operand.hbm [shape: f32[1,128], index: 8, kind: input, shape index: {}]
  %s9 = inlined_call_operand.hbm [shape: f32[8,128], index: 9, kind: output, shape index: {}]
  %s10 = sld [smem:[#allocation0]]
  $region82: #{tpu_custom_call.1} parent=0
    _
  %s12 = ssub.s32 1, %s10
  %s13 = scalar_select 0, %s12, %s10
  $region1: #{tpu_custom_call.1} parent=0
    #allocation2 [shape = 'u8[2048]{0}', space=vmem, size = 0x800, scoped, tag = 'input window, operand 0, single buffered']
    #allocation3 [shape = 's32[1]{0}', space=sflag, size = 0x4, scoped, tag = 'scoped memory for tpu_custom_call.1']
    #allocation4 [shape = 's32[1]{0}', space=sflag, size = 0x4, scoped, tag = 'scoped memory for tpu_custom_call.1']
    #allocation5 [shape = 'u8[262144]{0}', space=vmem, size = 0x40000, scoped, tag = 'input window, operand 1, single buffered']
    #allocation6 [shape = 's32[1]{0}', space=sflag, size = 0x4, scoped, tag = 'scoped memory for tpu_custom_call.1']
    #allocation7 [shape = 'u8[4096]{0}', space=vmem, size = 0x1000, scoped, tag = 'input window, operand 2, single buffered']
    #allocation8 [shape = 'u8[2097152]{0}', space=vmem, size = 0x200000, scoped, tag = 'input window, operand 3, single buffered']
    #allocation9 [shape = 's32[1]{0}', space=sflag, size = 0x4, scoped, tag = 'scoped memory for tpu_custom_call.1']
    #allocation10 [shape = 'u8[4096]{0}', space=vmem, size = 0x1000, scoped, tag = 'input window, operand 4, single buffered']
    #allocation11 [shape = 'u8[1048576]{0}', space=vmem, size = 0x100000, scoped, tag = 'input window, operand 5, single buffered']
    #allocation12 [shape = 's32[1]{0}', space=sflag, size = 0x4, scoped, tag = 'scoped memory for tpu_custom_call.1']
    #allocation13 [shape = 'u8[2048]{0}', space=vmem, size = 0x800, scoped, tag = 'input window, operand 6, single buffered']
    #allocation14 [shape = 'u8[131072]{0}', space=vmem, size = 0x20000, scoped, tag = 'input window, operand 7, single buffered']
    #allocation15 [shape = 's32[1]{0}', space=sflag, size = 0x4, scoped, tag = 'scoped memory for tpu_custom_call.1']
    #allocation16 [shape = 'u8[512]{0}', space=vmem, size = 0x400, scoped, tag = 'input window, operand 8, single buffered']
    #allocation17 [shape = 'u8[4096]{0}', space=vmem, size = 0x1000, scoped, tag = 'output window, operand 0, single buffered']
    %14 = vsyncpa [#allocation3], 0
    %15 = vsyncpa [#allocation6], 0
    %16 = vsyncpa [#allocation9], 0
    %17 = vsyncpa [#allocation12], 0
    %18 = vsyncpa [#allocation15], 0
    %19 = vsyncpa [#allocation4], 0
    // Predicated region
    $region2: #{tpu_custom_call.1} parent=1 // pred_check
      _
    $region3: #{tpu_custom_call.1} parent=1 // pred_check_branch
      %21 = sbr.rel (0) target = $region5
    $region4: #{tpu_custom_call.1} parent=1 // pred_region
      %s23 = ssub.s32 64, 64
      %24 = vsyncadd [#allocation3], %s23
      %s26 = sshll.u32 [#allocation2], 4
      %s27 = int_to_ptr.vmem [resolvable:$true] %s26
      %29 = dma.hbm_to_vmem [thread:$0]  %s0, 64, %s27, [#allocation3]
    $region5: #{tpu_custom_call.1} parent=1 // pred_fallthru
      _
    // Predicated region
    $region6: #{tpu_custom_call.1} parent=1 // pred_check
      _
    $region7: #{tpu_custom_call.1} parent=1 // pred_check_branch
      %31 = sbr.rel (0) target = $region9
    $region8: #{tpu_custom_call.1} parent=1 // pred_region
      %s33 = ssub.s32 8192, 8192
      %34 = vsyncadd [#allocation6], %s33
      %s35 = sshll.u32 [#allocation5], 4
      %s36 = int_to_ptr.vmem [resolvable:$true] %s35
      %41 = dma.hbm_to_vmem [thread:$0]  %s1, 8192, %s36, [#allocation6], 512, 512, 32
    $region9: #{tpu_custom_call.1} parent=1 // pred_fallthru
      _
    // Predicated region
    $region10: #{tpu_custom_call.1} parent=1 // pred_check
      _
    $region11: #{tpu_custom_call.1} parent=1 // pred_check_branch
      %43 = sbr.rel (0) target = $region13
    $region12: #{tpu_custom_call.1} parent=1 // pred_region
      %s45 = ssub.s32 128, 128
      %46 = vsyncadd [#allocation6], %s45
      %s48 = sshll.u32 [#allocation7], 4
      %s49 = int_to_ptr.vmem [resolvable:$true] %s48
      %51 = dma.hbm_to_vmem [thread:$0]  %s2, 128, %s49, [#allocation6]
    $region13: #{tpu_custom_call.1} parent=1 // pred_fallthru
      _
    // Predicated region
    $region14: #{tpu_custom_call.1} parent=1 // pred_check
      _
    $region15: #{tpu_custom_call.1} parent=1 // pred_check_branch
      %53 = sbr.rel (0) target = $region17
    $region16: #{tpu_custom_call.1} parent=1 // pred_region
      %s55 = ssub.s32 65536, 65536
      %56 = vsyncadd [#allocation9], %s55
      %s57 = sshll.u32 [#allocation8], 4
      %s58 = int_to_ptr.vmem [resolvable:$true] %s57
      %63 = dma.hbm_to_vmem [thread:$0]  %s3, 65536, %s58, [#allocation9], 512, 512, 32
    $region17: #{tpu_custom_call.1} parent=1 // pred_fallthru
      _
    // Predicated region
    $region18: #{tpu_custom_call.1} parent=1 // pred_check
      _
    $region19: #{tpu_custom_call.1} parent=1 // pred_check_branch
      %65 = sbr.rel (0) target = $region21
    $region20: #{tpu_custom_call.1} parent=1 // pred_region
      %s67 = ssub.s32 128, 128
      %68 = vsyncadd [#allocation9], %s67
      %s70 = sshll.u32 [#allocation10], 4
      %s71 = int_to_ptr.vmem [resolvable:$true] %s70
      %73 = dma.hbm_to_vmem [thread:$0]  %s4, 128, %s71, [#allocation9]
    $region21: #{tpu_custom_call.1} parent=1 // pred_fallthru
      _
    // Predicated region
    $region22: #{tpu_custom_call.1} parent=1 // pred_check
      _
    $region23: #{tpu_custom_call.1} parent=1 // pred_check_branch
      %75 = sbr.rel (0) target = $region25
    $region24: #{tpu_custom_call.1} parent=1 // pred_region
      %s77 = ssub.s32 32768, 32768
      %78 = vsyncadd [#allocation12], %s77
      %s79 = sshll.u32 [#allocation11], 4
      %s80 = int_to_ptr.vmem [resolvable:$true] %s79
      %85 = dma.hbm_to_vmem [thread:$0]  %s5, 32768, %s80, [#allocation12], 256, 256, 16
    $region25: #{tpu_custom_call.1} parent=1 // pred_fallthru
      _
    // Predicated region
    $region26: #{tpu_custom_call.1} parent=1 // pred_check
      _
    $region27: #{tpu_custom_call.1} parent=1 // pred_check_branch
      %87 = sbr.rel (0) target = $region29
    $region28: #{tpu_custom_call.1} parent=1 // pred_region
      %s89 = ssub.s32 64, 64
      %90 = vsyncadd [#allocation12], %s89
      %s92 = sshll.u32 [#allocation13], 4
      %s93 = int_to_ptr.vmem [resolvable:$true] %s92
      %95 = dma.hbm_to_vmem [thread:$0]  %s6, 64, %s93, [#allocation12]
    $region29: #{tpu_custom_call.1} parent=1 // pred_fallthru
      _
    // Predicated region
    $region30: #{tpu_custom_call.1} parent=1 // pred_check
      _
    $region31: #{tpu_custom_call.1} parent=1 // pred_check_branch
      %97 = sbr.rel (0) target = $region33
    $region32: #{tpu_custom_call.1} parent=1 // pred_region
      %s99 = ssub.s32 4096, 4096
      %100 = vsyncadd [#allocation15], %s99
      %s101 = sshll.u32 [#allocation14], 4
      %s102 = int_to_ptr.vmem [resolvable:$true] %s101
      %107 = dma.hbm_to_vmem [thread:$0]  %s7, 4096, %s102, [#allocation15], 64, 64, 4
    $region33: #{tpu_custom_call.1} parent=1 // pred_fallthru
      _
    // Predicated region
    $region34: #{tpu_custom_call.1} parent=1 // pred_check
      _
    $region35: #{tpu_custom_call.1} parent=1 // pred_check_branch
      %109 = sbr.rel (0) target = $region37
    $region36: #{tpu_custom_call.1} parent=1 // pred_region
      %s111 = ssub.s32 16, 16
      %112 = vsyncadd [#allocation15], %s111
      %s114 = sshll.u32 [#allocation16], 4
      %s115 = int_to_ptr.vmem [resolvable:$true] %s114
      %117 = dma.hbm_to_vmem [thread:$0]  %s8, 16, %s115, [#allocation15]
    $region37: #{tpu_custom_call.1} parent=1 // pred_fallthru
      _
    // Predicated region
    $region38: #{tpu_custom_call.1} parent=1 // pred_check
      _
    $region39: #{tpu_custom_call.1} parent=1 // pred_check_branch
      %119 = sbr.rel (0) target = $region41
    $region40: #{tpu_custom_call.1} parent=1 // pred_region
      %120 = dma.done [#allocation3], 64
    $region41: #{tpu_custom_call.1} parent=1 // pred_fallthru
      _
    // Predicated region
    $region42: #{tpu_custom_call.1} parent=1 // pred_check
      _
    $region43: #{tpu_custom_call.1} parent=1 // pred_check_branch
      %122 = sbr.rel (0) target = $region45
    $region44: #{tpu_custom_call.1} parent=1 // pred_region
      %123 = dma.done [#allocation6], 8192
    $region45: #{tpu_custom_call.1} parent=1 // pred_fallthru
      _
    // Predicated region
    $region46: #{tpu_custom_call.1} parent=1 // pred_check
      _
    $region47: #{tpu_custom_call.1} parent=1 // pred_check_branch
      %125 = sbr.rel (0) target = $region49
    $region48: #{tpu_custom_call.1} parent=1 // pred_region
      %126 = dma.done [#allocation6], 128
    $region49: #{tpu_custom_call.1} parent=1 // pred_fallthru
      _
    // Predicated region
    $region50: #{tpu_custom_call.1} parent=1 // pred_check
      _
    $region51: #{tpu_custom_call.1} parent=1 // pred_check_branch
      %128 = sbr.rel (0) target = $region53
    $region52: #{tpu_custom_call.1} parent=1 // pred_region
      %129 = dma.done [#allocation9], 65536
    $region53: #{tpu_custom_call.1} parent=1 // pred_fallthru
      _
    // Predicated region
    $region54: #{tpu_custom_call.1} parent=1 // pred_check
      _
    $region55: #{tpu_custom_call.1} parent=1 // pred_check_branch
      %131 = sbr.rel (0) target = $region57
    $region56: #{tpu_custom_call.1} parent=1 // pred_region
      %132 = dma.done [#allocation9], 128
    $region57: #{tpu_custom_call.1} parent=1 // pred_fallthru
      _
    // Predicated region
    $region58: #{tpu_custom_call.1} parent=1 // pred_check
      _
    $region59: #{tpu_custom_call.1} parent=1 // pred_check_branch
      %134 = sbr.rel (0) target = $region61
    $region60: #{tpu_custom_call.1} parent=1 // pred_region
      %135 = dma.done [#allocation12], 32768
    $region61: #{tpu_custom_call.1} parent=1 // pred_fallthru
      _
    // Predicated region
    $region62: #{tpu_custom_call.1} parent=1 // pred_check
      _
    $region63: #{tpu_custom_call.1} parent=1 // pred_check_branch
      %137 = sbr.rel (0) target = $region65
    $region64: #{tpu_custom_call.1} parent=1 // pred_region
      %138 = dma.done [#allocation12], 64
    $region65: #{tpu_custom_call.1} parent=1 // pred_fallthru
      _
    // Predicated region
    $region66: #{tpu_custom_call.1} parent=1 // pred_check
      _
    $region67: #{tpu_custom_call.1} parent=1 // pred_check_branch
      %140 = sbr.rel (0) target = $region69
    $region68: #{tpu_custom_call.1} parent=1 // pred_region
      %141 = dma.done [#allocation15], 4096
    $region69: #{tpu_custom_call.1} parent=1 // pred_fallthru
      _
    // Predicated region
    $region70: #{tpu_custom_call.1} parent=1 // pred_check
      _
    $region71: #{tpu_custom_call.1} parent=1 // pred_check_branch
      %143 = sbr.rel (0) target = $region73
    $region72: #{tpu_custom_call.1} parent=1 // pred_region
      %144 = dma.done [#allocation15], 16
    $region73: #{tpu_custom_call.1} parent=1 // pred_fallthru
      _
    %v146 = vld [vmem:[#allocation2] sm:$0xf]
    %v147 = vld [vmem:[#allocation5] sm:$0xff]
    %v148 = vld [vmem:[#allocation5 + $0x8] sm:$0xff]
    %v149 = vld [vmem:[#allocation5 + $0x10] sm:$0xff]
    %v150 = vld [vmem:[#allocation5 + $0x18] sm:$0xff]
    %v151 = vld [vmem:[#allocation5 + $0x20] sm:$0xff]
    %v152 = vld [vmem:[#allocation5 + $0x28] sm:$0xff]
    %v153 = vld [vmem:[#allocation5 + $0x30] sm:$0xff]
    %v154 = vld [vmem:[#allocation5 + $0x38] sm:$0xff]
    %v155 = vld [vmem:[#allocation5 + $0x40] sm:$0xff]
    %v156 = vld [vmem:[#allocation5 + $0x48] sm:$0xff]
    %v157 = vld [vmem:[#allocation5 + $0x50] sm:$0xff]
    %v158 = vld [vmem:[#allocation5 + $0x58] sm:$0xff]
    %v159 = vld [vmem:[#allocation5 + $0x60] sm:$0xff]
    %v160 = vld [vmem:[#allocation5 + $0x68] sm:$0xff]
    %v161 = vld [vmem:[#allocation5 + $0x70] sm:$0xff]
    %v162 = vld [vmem:[#allocation5 + $0x78] sm:$0xff]
    %v163 = vld [vmem:[#allocation5 + $0x80] sm:$0xff]
    %v164 = vld [vmem:[#allocation5 + $0x88] sm:$0xff]
    %v165 = vld [vmem:[#allocation5 + $0x90] sm:$0xff]
    %v166 = vld [vmem:[#allocation5 + $0x98] sm:$0xff]
    %v167 = vld [vmem:[#allocation5 + $0xa0] sm:$0xff]
    %v168 = vld [vmem:[#allocation5 + $0xa8] sm:$0xff]
    %v169 = vld [vmem:[#allocation5 + $0xb0] sm:$0xff]
    %v170 = vld [vmem:[#allocation5 + $0xb8] sm:$0xff]
    %v171 = vld [vmem:[#allocation5 + $0xc0] sm:$0xff]
    %v172 = vld [vmem:[#allocation5 + $0xc8] sm:$0xff]
    %v173 = vld [vmem:[#allocation5 + $0xd0] sm:$0xff]
    %v174 = vld [vmem:[#allocation5 + $0xd8] sm:$0xff]
    %v175 = vld [vmem:[#allocation5 + $0xe0] sm:$0xff]
    %v176 = vld [vmem:[#allocation5 + $0xe8] sm:$0xff]
    %v177 = vld [vmem:[#allocation5 + $0xf0] sm:$0xff]
    %v178 = vld [vmem:[#allocation5 + $0xf8] sm:$0xff]
    %v179 = vld [vmem:[#allocation5 + $0x100] sm:$0xff]
    %v180 = vld [vmem:[#allocation5 + $0x108] sm:$0xff]
    %v181 = vld [vmem:[#allocation5 + $0x110] sm:$0xff]
    %v182 = vld [vmem:[#allocation5 + $0x118] sm:$0xff]
    %v183 = vld [vmem:[#allocation5 + $0x120] sm:$0xff]
    %v184 = vld [vmem:[#allocation5 + $0x128] sm:$0xff]
    %v185 = vld [vmem:[#allocation5 + $0x130] sm:$0xff]
    %v186 = vld [vmem:[#allocation5 + $0x138] sm:$0xff]
    %v187 = vld [vmem:[#allocation5 + $0x140] sm:$0xff]
    %v188 = vld [vmem:[#allocation5 + $0x148] sm:$0xff]
    %v189 = vld [vmem:[#allocation5 + $0x150] sm:$0xff]
    %v190 = vld [vmem:[#allocation5 + $0x158] sm:$0xff]
    %v191 = vld [vmem:[#allocation5 + $0x160] sm:$0xff]
    %v192 = vld [vmem:[#allocation5 + $0x168] sm:$0xff]
    %v193 = vld [vmem:[#allocation5 + $0x170] sm:$0xff]
    %v194 = vld [vmem:[#allocation5 + $0x178] sm:$0xff]
    %v195 = vld [vmem:[#allocation5 + $0x180] sm:$0xff]
    %v196 = vld [vmem:[#allocation5 + $0x188] sm:$0xff]
    %v197 = vld [vmem:[#allocation5 + $0x190] sm:$0xff]
    %v198 = vld [vmem:[#allocation5 + $0x198] sm:$0xff]
    %v199 = vld [vmem:[#allocation5 + $0x1a0] sm:$0xff]
    %v200 = vld [vmem:[#allocation5 + $0x1a8] sm:$0xff]
    %v201 = vld [vmem:[#allocation5 + $0x1b0] sm:$0xff]
    %v202 = vld [vmem:[#allocation5 + $0x1b8] sm:$0xff]
    %v203 = vld [vmem:[#allocation5 + $0x1c0] sm:$0xff]
    %v204 = vld [vmem:[#allocation5 + $0x1c8] sm:$0xff]
    %v205 = vld [vmem:[#allocation5 + $0x1d0] sm:$0xff]
    %v206 = vld [vmem:[#allocation5 + $0x1d8] sm:$0xff]
    %v207 = vld [vmem:[#allocation5 + $0x1e0] sm:$0xff]
    %v208 = vld [vmem:[#allocation5 + $0x1e8] sm:$0xff]
    %v209 = vld [vmem:[#allocation5 + $0x1f0] sm:$0xff]
    %v210 = vld [vmem:[#allocation5 + $0x1f8] sm:$0xff]
    %v211 = vld [vmem:[#allocation7] sm:$0xff]
    %v213 = vlaneseq
    %v214 = vshrl.u32 %v213, 7
    %v215 = vsub.s32 0, %v214
    %v216 = vrot.slane %v211, %v215
    %v217 = vlaneseq
    %v218 = vshrl.u32 %v217, 7
    %v219 = vsub.s32 1, %v218
    %v220 = vrot.slane %v211, %v219
    %v221 = vlaneseq
    %v222 = vshrl.u32 %v221, 7
    %v223 = vsub.s32 2, %v222
    %v224 = vrot.slane %v211, %v223
    %v225 = vlaneseq
    %v226 = vshrl.u32 %v225, 7
    %v227 = vsub.s32 3, %v226
    %v228 = vrot.slane %v211, %v227
    %v229 = vlaneseq
    %v230 = vshrl.u32 %v229, 7
    %v231 = vsub.s32 4, %v230
    %v232 = vrot.slane %v211, %v231
    %v233 = vlaneseq
    %v234 = vshrl.u32 %v233, 7
    %v235 = vsub.s32 5, %v234
    %v236 = vrot.slane %v211, %v235
    %v237 = vlaneseq
    %v238 = vshrl.u32 %v237, 7
    %v239 = vsub.s32 6, %v238
    %v240 = vrot.slane %v211, %v239
    %v241 = vlaneseq
    %v242 = vshrl.u32 %v241, 7
    %v243 = vsub.s32 7, %v242
    %v244 = vrot.slane %v211, %v243
    %v317 = vunpack.c.l.b16 %v147
    %v318 = vunpack.c.h.b16 %v147
    %v319 = vunpack.c.l.b16 %v148
    %v320 = vunpack.c.h.b16 %v148
    %v321 = vunpack.c.l.b16 %v149
    %v322 = vunpack.c.h.b16 %v149
    %v323 = vunpack.c.l.b16 %v150
    %v324 = vunpack.c.h.b16 %v150
    %v325 = vunpack.c.l.b16 %v151
    %v326 = vunpack.c.h.b16 %v151
    %v327 = vunpack.c.l.b16 %v152
    %v328 = vunpack.c.h.b16 %v152
    %v329 = vunpack.c.l.b16 %v153
    %v330 = vunpack.c.h.b16 %v153
    %v331 = vunpack.c.l.b16 %v154
    %v332 = vunpack.c.h.b16 %v154
    %v333 = vunpack.c.l.b16 %v155
    %v334 = vunpack.c.h.b16 %v155
    %v335 = vunpack.c.l.b16 %v156
    %v336 = vunpack.c.h.b16 %v156
    %v337 = vunpack.c.l.b16 %v157
    %v338 = vunpack.c.h.b16 %v157
    %v339 = vunpack.c.l.b16 %v158
    %v340 = vunpack.c.h.b16 %v158
    %v341 = vunpack.c.l.b16 %v159
    %v342 = vunpack.c.h.b16 %v159
    %v343 = vunpack.c.l.b16 %v160
    %v344 = vunpack.c.h.b16 %v160
    %v345 = vunpack.c.l.b16 %v161
    %v346 = vunpack.c.h.b16 %v161
    %v347 = vunpack.c.l.b16 %v162
    %v348 = vunpack.c.h.b16 %v162
    %v349 = vunpack.c.l.b16 %v163
    %v350 = vunpack.c.h.b16 %v163
    %v351 = vunpack.c.l.b16 %v164
    %v352 = vunpack.c.h.b16 %v164
    %v353 = vunpack.c.l.b16 %v165
    %v354 = vunpack.c.h.b16 %v165
    %v355 = vunpack.c.l.b16 %v166
    %v356 = vunpack.c.h.b16 %v166
    %v357 = vunpack.c.l.b16 %v167
    %v358 = vunpack.c.h.b16 %v167
    %v359 = vunpack.c.l.b16 %v168
    %v360 = vunpack.c.h.b16 %v168
    %v361 = vunpack.c.l.b16 %v169
    %v362 = vunpack.c.h.b16 %v169
    %v363 = vunpack.c.l.b16 %v170
    %v364 = vunpack.c.h.b16 %v170
    %v365 = vunpack.c.l.b16 %v171
    %v366 = vunpack.c.h.b16 %v171
    %v367 = vunpack.c.l.b16 %v172
    %v368 = vunpack.c.h.b16 %v172
    %v369 = vunpack.c.l.b16 %v173
    %v370 = vunpack.c.h.b16 %v173
    %v371 = vunpack.c.l.b16 %v174
    %v372 = vunpack.c.h.b16 %v174
    %v373 = vunpack.c.l.b16 %v175
    %v374 = vunpack.c.h.b16 %v175
    %v375 = vunpack.c.l.b16 %v176
    %v376 = vunpack.c.h.b16 %v176
    %v377 = vunpack.c.l.b16 %v177
    %v378 = vunpack.c.h.b16 %v177
    %v379 = vunpack.c.l.b16 %v178
    %v380 = vunpack.c.h.b16 %v178
    %v381 = vunpack.c.l.b16 %v179
    %v382 = vunpack.c.h.b16 %v179
    %v383 = vunpack.c.l.b16 %v180
    %v384 = vunpack.c.h.b16 %v180
    %v385 = vunpack.c.l.b16 %v181
    %v386 = vunpack.c.h.b16 %v181
    %v387 = vunpack.c.l.b16 %v182
    %v388 = vunpack.c.h.b16 %v182
    %v389 = vunpack.c.l.b16 %v183
    %v390 = vunpack.c.h.b16 %v183
    %v391 = vunpack.c.l.b16 %v184
    %v392 = vunpack.c.h.b16 %v184
    %v393 = vunpack.c.l.b16 %v185
    %v394 = vunpack.c.h.b16 %v185
    %v395 = vunpack.c.l.b16 %v186
    %v396 = vunpack.c.h.b16 %v186
    %v397 = vunpack.c.l.b16 %v187
    %v398 = vunpack.c.h.b16 %v187
    %v399 = vunpack.c.l.b16 %v188
    %v400 = vunpack.c.h.b16 %v188
    %v401 = vunpack.c.l.b16 %v189
    %v402 = vunpack.c.h.b16 %v189
    %v403 = vunpack.c.l.b16 %v190
    %v404 = vunpack.c.h.b16 %v190
    %v405 = vunpack.c.l.b16 %v191
    %v406 = vunpack.c.h.b16 %v191
    %v407 = vunpack.c.l.b16 %v192
    %v408 = vunpack.c.h.b16 %v192
    %v409 = vunpack.c.l.b16 %v193
    %v410 = vunpack.c.h.b16 %v193
    %v411 = vunpack.c.l.b16 %v194
    %v412 = vunpack.c.h.b16 %v194
    %v413 = vunpack.c.l.b16 %v195
    %v414 = vunpack.c.h.b16 %v195
    %v415 = vunpack.c.l.b16 %v196
    %v416 = vunpack.c.h.b16 %v196
    %v417 = vunpack.c.l.b16 %v197
    %v418 = vunpack.c.h.b16 %v197
    %v419 = vunpack.c.l.b16 %v198
    %v420 = vunpack.c.h.b16 %v198
    %v421 = vunpack.c.l.b16 %v199
    %v422 = vunpack.c.h.b16 %v199
    %v423 = vunpack.c.l.b16 %v200
    %v424 = vunpack.c.h.b16 %v200
    %v425 = vunpack.c.l.b16 %v201
    %v426 = vunpack.c.h.b16 %v201
    %v427 = vunpack.c.l.b16 %v202
    %v428 = vunpack.c.h.b16 %v202
    %v429 = vunpack.c.l.b16 %v203
    %v430 = vunpack.c.h.b16 %v203
    %v431 = vunpack.c.l.b16 %v204
    %v432 = vunpack.c.h.b16 %v204
    %v433 = vunpack.c.l.b16 %v205
    %v434 = vunpack.c.h.b16 %v205
    %v435 = vunpack.c.l.b16 %v206
    %v436 = vunpack.c.h.b16 %v206
    %v437 = vunpack.c.l.b16 %v207
    %v438 = vunpack.c.h.b16 %v207
    %v439 = vunpack.c.l.b16 %v208
    %v440 = vunpack.c.h.b16 %v208
    %v441 = vunpack.c.l.b16 %v209
    %v442 = vunpack.c.h.b16 %v209
    %v443 = vunpack.c.l.b16 %v210
    %v444 = vunpack.c.h.b16 %v210
    %v445 = vpack.c.b16 %v325, %v317
    %v446 = vpack.c.b16 %v326, %v318
    %v447 = vpack.c.b16 %v327, %v319
    %v448 = vpack.c.b16 %v328, %v320
    %v449 = vpack.c.b16 %v329, %v321
    %v450 = vpack.c.b16 %v330, %v322
    %v451 = vpack.c.b16 %v331, %v323
    %v452 = vpack.c.b16 %v332, %v324
    %v453 = vpack.c.b16 %v341, %v333
    %v454 = vpack.c.b16 %v342, %v334
    %v455 = vpack.c.b16 %v343, %v335
    %v456 = vpack.c.b16 %v344, %v336
    %v457 = vpack.c.b16 %v345, %v337
    %v458 = vpack.c.b16 %v346, %v338
    %v459 = vpack.c.b16 %v347, %v339
    %v460 = vpack.c.b16 %v348, %v340
    %v461 = vpack.c.b16 %v357, %v349
    %v462 = vpack.c.b16 %v358, %v350
    %v463 = vpack.c.b16 %v359, %v351
    %v464 = vpack.c.b16 %v360, %v352
    %v465 = vpack.c.b16 %v361, %v353
    %v466 = vpack.c.b16 %v362, %v354
    %v467 = vpack.c.b16 %v363, %v355
    %v468 = vpack.c.b16 %v364, %v356
    %v469 = vpack.c.b16 %v373, %v365
    %v470 = vpack.c.b16 %v374, %v366
    %v471 = vpack.c.b16 %v375, %v367
    %v472 = vpack.c.b16 %v376, %v368
    %v473 = vpack.c.b16 %v377, %v369
    %v474 = vpack.c.b16 %v378, %v370
    %v475 = vpack.c.b16 %v379, %v371
    %v476 = vpack.c.b16 %v380, %v372
    %v477 = vpack.c.b16 %v389, %v381
    %v478 = vpack.c.b16 %v390, %v382
    %v479 = vpack.c.b16 %v391, %v383
    %v480 = vpack.c.b16 %v392, %v384
    %v481 = vpack.c.b16 %v393, %v385
    %v482 = vpack.c.b16 %v394, %v386
    %v483 = vpack.c.b16 %v395, %v387
    %v484 = vpack.c.b16 %v396, %v388
    %v485 = vpack.c.b16 %v405, %v397
    %v486 = vpack.c.b16 %v406, %v398
    %v487 = vpack.c.b16 %v407, %v399
    %v488 = vpack.c.b16 %v408, %v400
    %v489 = vpack.c.b16 %v409, %v401
    %v490 = vpack.c.b16 %v410, %v402
    %v491 = vpack.c.b16 %v411, %v403
    %v492 = vpack.c.b16 %v412, %v404
    %v493 = vpack.c.b16 %v421, %v413
    %v494 = vpack.c.b16 %v422, %v414
    %v495 = vpack.c.b16 %v423, %v415
    %v496 = vpack.c.b16 %v424, %v416
    %v497 = vpack.c.b16 %v425, %v417
    %v498 = vpack.c.b16 %v426, %v418
    %v499 = vpack.c.b16 %v427, %v419
    %v500 = vpack.c.b16 %v428, %v420
    %v501 = vpack.c.b16 %v437, %v429
    %v502 = vpack.c.b16 %v438, %v430
    %v503 = vpack.c.b16 %v439, %v431
    %v504 = vpack.c.b16 %v440, %v432
    %v505 = vpack.c.b16 %v441, %v433
    %v506 = vpack.c.b16 %v442, %v434
    %v507 = vpack.c.b16 %v443, %v435
    %v508 = vpack.c.b16 %v444, %v436
    %573 = vmatprep.subr.bf16.mxu0 %v446
    %574 = vmatpush1.bf16.msra.mxu0 %v445
    %575 = vmatprep.subr.bf16.mxu0 %v454
    %576 = vmatpush1.bf16.msra.mxu0 %v453
    %577 = vmatprep.subr.bf16.mxu0 %v462
    %578 = vmatpush1.bf16.msra.mxu0 %v461
    %579 = vmatprep.subr.bf16.mxu0 %v470
    %580 = vmatpush1.bf16.msra.mxu0 %v469
    %581 = vmatprep.subr.bf16.mxu0 %v478
    %582 = vmatpush1.bf16.msra.mxu0 %v477
    %583 = vmatprep.subr.bf16.mxu0 %v486
    %584 = vmatpush1.bf16.msra.mxu0 %v485
    %585 = vmatprep.subr.bf16.mxu0 %v494
    %586 = vmatpush1.bf16.msra.mxu0 %v493
    %587 = vmatprep.subr.bf16.mxu0 %v502
    %588 = vmatpush1.bf16.msra.mxu0 %v501
    %589 = vmatprep.subr.bf16.mxu0 0
    %590 = vmatpush1.bf16.msra.mxu0 0
    %591 = vmatprep.subr.bf16.mxu0 0
    %592 = vmatpush1.bf16.msra.mxu0 0
    %593 = vmatprep.subr.bf16.mxu0 0
    %594 = vmatpush1.bf16.msra.mxu0 0
    %595 = vmatprep.subr.bf16.mxu0 0
    %596 = vmatpush1.bf16.msra.mxu0 0
    %597 = vmatprep.subr.bf16.mxu0 0
    %598 = vmatpush1.bf16.msra.mxu0 0
    %599 = vmatprep.subr.bf16.mxu0 0
    %600 = vmatpush1.bf16.msra.mxu0 0
    %601 = vmatprep.subr.bf16.mxu0 0
    %602 = vmatpush1.bf16.msra.mxu0 0
    %603 = vmatprep.subr.bf16.mxu0 0
    %604 = vmatpush1.bf16.msra.mxu0 0
    %605 = vmatprep.mubr.bf16.mxu0 0
    %606 = vmatmul.mubr.bf16.gmra.mrb[0].mxu0 %v146
    %v607 = vpop.f32.mrb[0].mxu0
    %v608 = vadd.f32 %v216, %v607
    %v609 = vpop.f32.mrb[0].mxu0
    %v610 = vadd.f32 %v220, %v609
    %v611 = vpop.f32.mrb[0].mxu0
    %v612 = vpop.f32.mrb[0].mxu0
    %613 = vdwg.mxu0
    %614 = vmatprep.subr.bf16.mxu0 %v448
    %615 = vmatpush1.bf16.msra.mxu0 %v447
    %616 = vmatprep.subr.bf16.mxu0 %v456
    %617 = vmatpush1.bf16.msra.mxu0 %v455
    %618 = vmatprep.subr.bf16.mxu0 %v464
    %619 = vmatpush1.bf16.msra.mxu0 %v463
    %620 = vmatprep.subr.bf16.mxu0 %v472
    %621 = vmatpush1.bf16.msra.mxu0 %v471
    %622 = vmatprep.subr.bf16.mxu0 %v480
    %623 = vmatpush1.bf16.msra.mxu0 %v479
    %624 = vmatprep.subr.bf16.mxu0 %v488
    %625 = vmatpush1.bf16.msra.mxu0 %v487
    %626 = vmatprep.subr.bf16.mxu0 %v496
    %627 = vmatpush1.bf16.msra.mxu0 %v495
    %628 = vmatprep.subr.bf16.mxu0 %v504
    %629 = vmatpush1.bf16.msra.mxu0 %v503
    %630 = vmatprep.subr.bf16.mxu0 0
    %631 = vmatpush1.bf16.msra.mxu0 0
    %632 = vmatprep.subr.bf16.mxu0 0
    %633 = vmatpush1.bf16.msra.mxu0 0
    %634 = vmatprep.subr.bf16.mxu0 0
    %635 = vmatpush1.bf16.msra.mxu0 0
    %636 = vmatprep.subr.bf16.mxu0 0
    %637 = vmatpush1.bf16.msra.mxu0 0
    %638 = vmatprep.subr.bf16.mxu0 0
    %639 = vmatpush1.bf16.msra.mxu0 0
    %640 = vmatprep.subr.bf16.mxu0 0
    %641 = vmatpush1.bf16.msra.mxu0 0
    %642 = vmatprep.subr.bf16.mxu0 0
    %643 = vmatpush1.bf16.msra.mxu0 0
    %644 = vmatprep.subr.bf16.mxu0 0
    %645 = vmatpush1.bf16.msra.mxu0 0
    %646 = vmatprep.mubr.bf16.mxu0 0
    %647 = vmatmul.mubr.bf16.gmra.mrb[0].mxu0 %v146
    %v648 = vpop.f32.mrb[0].mxu0
    %v649 = vadd.f32 %v224, %v648
    %v650 = vpop.f32.mrb[0].mxu0
    %v651 = vadd.f32 %v228, %v650
    %v652 = vpop.f32.mrb[0].mxu0
    %v653 = vpop.f32.mrb[0].mxu0
    %654 = vdwg.mxu0
    %655 = vmatprep.subr.bf16.mxu0 %v450
    %656 = vmatpush1.bf16.msra.mxu0 %v449
    %657 = vmatprep.subr.bf16.mxu0 %v458
    %658 = vmatpush1.bf16.msra.mxu0 %v457
    %659 = vmatprep.subr.bf16.mxu0 %v466
    %660 = vmatpush1.bf16.msra.mxu0 %v465
    %661 = vmatprep.subr.bf16.mxu0 %v474
    %662 = vmatpush1.bf16.msra.mxu0 %v473
    %663 = vmatprep.subr.bf16.mxu0 %v482
    %664 = vmatpush1.bf16.msra.mxu0 %v481
    %665 = vmatprep.subr.bf16.mxu0 %v490
    %666 = vmatpush1.bf16.msra.mxu0 %v489
    %667 = vmatprep.subr.bf16.mxu0 %v498
    %668 = vmatpush1.bf16.msra.mxu0 %v497
    %669 = vmatprep.subr.bf16.mxu0 %v506
    %670 = vmatpush1.bf16.msra.mxu0 %v505
    %671 = vmatprep.subr.bf16.mxu0 0
    %672 = vmatpush1.bf16.msra.mxu0 0
    %673 = vmatprep.subr.bf16.mxu0 0
    %674 = vmatpush1.bf16.msra.mxu0 0
    %675 = vmatprep.subr.bf16.mxu0 0
    %676 = vmatpush1.bf16.msra.mxu0 0
    %677 = vmatprep.subr.bf16.mxu0 0
    %678 = vmatpush1.bf16.msra.mxu0 0
    %679 = vmatprep.subr.bf16.mxu0 0
    %680 = vmatpush1.bf16.msra.mxu0 0
    %681 = vmatprep.subr.bf16.mxu0 0
    %682 = vmatpush1.bf16.msra.mxu0 0
    %683 = vmatprep.subr.bf16.mxu0 0
    %684 = vmatpush1.bf16.msra.mxu0 0
    %685 = vmatprep.subr.bf16.mxu0 0
    %686 = vmatpush1.bf16.msra.mxu0 0
    %687 = vmatprep.mubr.bf16.mxu0 0
    %688 = vmatmul.mubr.bf16.gmra.mrb[0].mxu0 %v146
    %v689 = vpop.f32.mrb[0].mxu0
    %v690 = vadd.f32 %v232, %v689
    %v691 = vpop.f32.mrb[0].mxu0
    %v692 = vadd.f32 %v236, %v691
    %v693 = vpop.f32.mrb[0].mxu0
    %v694 = vpop.f32.mrb[0].mxu0
    %695 = vdwg.mxu0
    %696 = vmatprep.subr.bf16.mxu0 %v452
    %697 = vmatpush1.bf16.msra.mxu0 %v451
    %698 = vmatprep.subr.bf16.mxu0 %v460
    %699 = vmatpush1.bf16.msra.mxu0 %v459
    %700 = vmatprep.subr.bf16.mxu0 %v468
    %701 = vmatpush1.bf16.msra.mxu0 %v467
    %702 = vmatprep.subr.bf16.mxu0 %v476
    %703 = vmatpush1.bf16.msra.mxu0 %v475
    %704 = vmatprep.subr.bf16.mxu0 %v484
    %705 = vmatpush1.bf16.msra.mxu0 %v483
    %706 = vmatprep.subr.bf16.mxu0 %v492
    %707 = vmatpush1.bf16.msra.mxu0 %v491
    %708 = vmatprep.subr.bf16.mxu0 %v500
    %709 = vmatpush1.bf16.msra.mxu0 %v499
    %710 = vmatprep.subr.bf16.mxu0 %v508
    %711 = vmatpush1.bf16.msra.mxu0 %v507
    %712 = vmatprep.subr.bf16.mxu0 0
    %713 = vmatpush1.bf16.msra.mxu0 0
    %714 = vmatprep.subr.bf16.mxu0 0
    %715 = vmatpush1.bf16.msra.mxu0 0
    %716 = vmatprep.subr.bf16.mxu0 0
    %717 = vmatpush1.bf16.msra.mxu0 0
    %718 = vmatprep.subr.bf16.mxu0 0
    %719 = vmatpush1.bf16.msra.mxu0 0
    %720 = vmatprep.subr.bf16.mxu0 0
    %721 = vmatpush1.bf16.msra.mxu0 0
    %722 = vmatprep.subr.bf16.mxu0 0
    %723 = vmatpush1.bf16.msra.mxu0 0
    %724 = vmatprep.subr.bf16.mxu0 0
    %725 = vmatpush1.bf16.msra.mxu0 0
    %726 = vmatprep.subr.bf16.mxu0 0
    %727 = vmatpush1.bf16.msra.mxu0 0
    %728 = vmatprep.mubr.bf16.mxu0 0
    %729 = vmatmul.mubr.bf16.gmra.mrb[0].mxu0 %v146
    %v730 = vpop.f32.mrb[0].mxu0
    %v731 = vadd.f32 %v240, %v730
    %v732 = vpop.f32.mrb[0].mxu0
    %v733 = vadd.f32 %v244, %v732
    %v734 = vpop.f32.mrb[0].mxu0
    %v735 = vpop.f32.mrb[0].mxu0
    %736 = vdwg.mxu0
    %v737 = vmul.f32 %v608, 0.5
    %v738 = vmul.f32 %v610, 0.5
    %v739 = vmul.f32 %v649, 0.5
    %v740 = vmul.f32 %v651, 0.5
    %v741 = vmul.f32 %v690, 0.5
    %v742 = vmul.f32 %v692, 0.5
    %v743 = vmul.f32 %v731, 0.5
    %v744 = vmul.f32 %v733, 0.5
    %v745 = vmul.f32 %v608, 0.70710677
    %v746 = vmul.f32 %v610, 0.70710677
    %v747 = vmul.f32 %v649, 0.70710677
    %v748 = vmul.f32 %v651, 0.70710677
    %v749 = vmul.f32 %v690, 0.70710677
    %v750 = vmul.f32 %v692, 0.70710677
    %v751 = vmul.f32 %v731, 0.70710677
    %v752 = vmul.f32 %v733, 0.70710677
    %v753 = verf.f32.pop %v745
    %v754 = verf.f32.pop %v746
    %v755 = verf.f32.pop %v747
    %v756 = verf.f32.pop %v748
    %v757 = verf.f32.pop %v749
    %v758 = verf.f32.pop %v750
    %v759 = verf.f32.pop %v751
    %v760 = verf.f32.pop %v752
    %v761 = vadd.f32 %v753, 1.0
    %v762 = vadd.f32 %v754, 1.0
    %v763 = vadd.f32 %v755, 1.0
    %v764 = vadd.f32 %v756, 1.0
    %v765 = vadd.f32 %v757, 1.0
    %v766 = vadd.f32 %v758, 1.0
    %v767 = vadd.f32 %v759, 1.0
    %v768 = vadd.f32 %v760, 1.0
    %v769 = vmul.f32 %v737, %v761
    %v770 = vmul.f32 %v738, %v762
    %v771 = vmul.f32 %v739, %v763
    %v772 = vmul.f32 %v740, %v764
    %v773 = vmul.f32 %v741, %v765
    %v774 = vmul.f32 %v742, %v766
    %v775 = vmul.f32 %v743, %v767
    %v776 = vmul.f32 %v744, %v768
    %v777 = vpack.c.bf16 %v769, %v769
    %v778 = vpack.c.bf16 %v770, %v770
    %v779 = vpack.c.bf16 %v771, %v771
    %v780 = vpack.c.bf16 %v772, %v772
    %v781 = vpack.c.bf16 %v773, %v773
    %v782 = vpack.c.bf16 %v774, %v774
    %v783 = vpack.c.bf16 %v775, %v775
    %v784 = vpack.c.bf16 %v776, %v776
    %v785 = vld [vmem:[#allocation8] sm:$0xff]
    %v786 = vld [vmem:[#allocation8 + $0x8] sm:$0xff]
    %v787 = vld [vmem:[#allocation8 + $0x10] sm:$0xff]
    %v788 = vld [vmem:[#allocation8 + $0x18] sm:$0xff]
    %v789 = vld [vmem:[#allocation8 + $0x20] sm:$0xff]
    %v790 = vld [vmem:[#allocation8 + $0x28] sm:$0xff]
    %v791 = vld [vmem:[#allocation8 + $0x30] sm:$0xff]
    %v792 = vld [vmem:[#allocation8 + $0x38] sm:$0xff]
    %v793 = vld [vmem:[#allocation8 + $0x40] sm:$0xff]
    %v794 = vld [vmem:[#allocation8 + $0x48] sm:$0xff]
    %v795 = vld [vmem:[#allocation8 + $0x50] sm:$0xff]
    %v796 = vld [vmem:[#allocation8 + $0x58] sm:$0xff]
    %v797 = vld [vmem:[#allocation8 + $0x60] sm:$0xff]
    %v798 = vld [vmem:[#allocation8 + $0x68] sm:$0xff]
    %v799 = vld [vmem:[#allocation8 + $0x70] sm:$0xff]
    %v800 = vld [vmem:[#allocation8 + $0x78] sm:$0xff]
    %v801 = vld [vmem:[#allocation8 + $0x80] sm:$0xff]
    %v802 = vld [vmem:[#allocation8 + $0x88] sm:$0xff]
    %v803 = vld [vmem:[#allocation8 + $0x90] sm:$0xff]
    %v804 = vld [vmem:[#allocation8 + $0x98] sm:$0xff]
    %v805 = vld [vmem:[#allocation8 + $0xa0] sm:$0xff]
    %v806 = vld [vmem:[#allocation8 + $0xa8] sm:$0xff]
    %v807 = vld [vmem:[#allocation8 + $0xb0] sm:$0xff]
    %v808 = vld [vmem:[#allocation8 + $0xb8] sm:$0xff]
    %v809 = vld [vmem:[#allocation8 + $0xc0] sm:$0xff]
    %v810 = vld [vmem:[#allocation8 + $0xc8] sm:$0xff]
    %v811 = vld [vmem:[#allocation8 + $0xd0] sm:$0xff]
    %v812 = vld [vmem:[#allocation8 + $0xd8] sm:$0xff]
    %v813 = vld [vmem:[#allocation8 + $0xe0] sm:$0xff]
    %v814 = vld [vmem:[#allocation8 + $0xe8] sm:$0xff]
    %v815 = vld [vmem:[#allocation8 + $0xf0] sm:$0xff]
    %v816 = vld [vmem:[#allocation8 + $0xf8] sm:$0xff]
    %v817 = vld [vmem:[#allocation8 + $0x100] sm:$0xff]
    %v818 = vld [vmem:[#allocation8 + $0x108] sm:$0xff]
    %v819 = vld [vmem:[#allocation8 + $0x110] sm:$0xff]
    %v820 = vld [vmem:[#allocation8 + $0x118] sm:$0xff]
    %v821 = vld [vmem:[#allocation8 + $0x120] sm:$0xff]
    %v822 = vld [vmem:[#allocation8 + $0x128] sm:$0xff]
    %v823 = vld [vmem:[#allocation8 + $0x130] sm:$0xff]
    %v824 = vld [vmem:[#allocation8 + $0x138] sm:$0xff]
    %v825 = vld [vmem:[#allocation8 + $0x140] sm:$0xff]
    %v826 = vld [vmem:[#allocation8 + $0x148] sm:$0xff]
    %v827 = vld [vmem:[#allocation8 + $0x150] sm:$0xff]
    %v828 = vld [vmem:[#allocation8 + $0x158] sm:$0xff]
    %v829 = vld [vmem:[#allocation8 + $0x160] sm:$0xff]
    %v830 = vld [vmem:[#allocation8 + $0x168] sm:$0xff]
    %v831 = vld [vmem:[#allocation8 + $0x170] sm:$0xff]
    %v832 = vld [vmem:[#allocation8 + $0x178] sm:$0xff]
    %v833 = vld [vmem:[#allocation8 + $0x180] sm:$0xff]
    %v834 = vld [vmem:[#allocation8 + $0x188] sm:$0xff]
    %v835 = vld [vmem:[#allocation8 + $0x190] sm:$0xff]
    %v836 = vld [vmem:[#allocation8 + $0x198] sm:$0xff]
    %v837 = vld [vmem:[#allocation8 + $0x1a0] sm:$0xff]
    %v838 = vld [vmem:[#allocation8 + $0x1a8] sm:$0xff]
    %v839 = vld [vmem:[#allocation8 + $0x1b0] sm:$0xff]
    %v840 = vld [vmem:[#allocation8 + $0x1b8] sm:$0xff]
    %v841 = vld [vmem:[#allocation8 + $0x1c0] sm:$0xff]
    %v842 = vld [vmem:[#allocation8 + $0x1c8] sm:$0xff]
    %v843 = vld [vmem:[#allocation8 + $0x1d0] sm:$0xff]
    %v844 = vld [vmem:[#allocation8 + $0x1d8] sm:$0xff]
    %v845 = vld [vmem:[#allocation8 + $0x1e0] sm:$0xff]
    %v846 = vld [vmem:[#allocation8 + $0x1e8] sm:$0xff]
    %v847 = vld [vmem:[#allocation8 + $0x1f0] sm:$0xff]
    %v848 = vld [vmem:[#allocation8 + $0x1f8] sm:$0xff]
    %v849 = vld [vmem:[#allocation8 + $0x200] sm:$0xff]
    %v850 = vld [vmem:[#allocation8 + $0x208] sm:$0xff]
    %v851 = vld [vmem:[#allocation8 + $0x210] sm:$0xff]
    %v852 = vld [vmem:[#allocation8 + $0x218] sm:$0xff]
    %v853 = vld [vmem:[#allocation8 + $0x220] sm:$0xff]
    %v854 = vld [vmem:[#allocation8 + $0x228] sm:$0xff]
    %v855 = vld [vmem:[#allocation8 + $0x230] sm:$0xff]
    %v856 = vld [vmem:[#allocation8 + $0x238] sm:$0xff]
    %v857 = vld [vmem:[#allocation8 + $0x240] sm:$0xff]
    %v858 = vld [vmem:[#allocation8 + $0x248] sm:$0xff]
    %v859 = vld [vmem:[#allocation8 + $0x250] sm:$0xff]
    %v860 = vld [vmem:[#allocation8 + $0x258] sm:$0xff]
    %v861 = vld [vmem:[#allocation8 + $0x260] sm:$0xff]
    %v862 = vld [vmem:[#allocation8 + $0x268] sm:$0xff]
    %v863 = vld [vmem:[#allocation8 + $0x270] sm:$0xff]
    %v864 = vld [vmem:[#allocation8 + $0x278] sm:$0xff]
    %v865 = vld [vmem:[#allocation8 + $0x280] sm:$0xff]
    %v866 = vld [vmem:[#allocation8 + $0x288] sm:$0xff]
    %v867 = vld [vmem:[#allocation8 + $0x290] sm:$0xff]
    %v868 = vld [vmem:[#allocation8 + $0x298] sm:$0xff]
    %v869 = vld [vmem:[#allocation8 + $0x2a0] sm:$0xff]
    %v870 = vld [vmem:[#allocation8 + $0x2a8] sm:$0xff]
    %v871 = vld [vmem:[#allocation8 + $0x2b0] sm:$0xff]
    %v872 = vld [vmem:[#allocation8 + $0x2b8] sm:$0xff]
    %v873 = vld [vmem:[#allocation8 + $0x2c0] sm:$0xff]
    %v874 = vld [vmem:[#allocation8 + $0x2c8] sm:$0xff]
    %v875 = vld [vmem:[#allocation8 + $0x2d0] sm:$0xff]
    %v876 = vld [vmem:[#allocation8 + $0x2d8] sm:$0xff]
    %v877 = vld [vmem:[#allocation8 + $0x2e0] sm:$0xff]
    %v878 = vld [vmem:[#allocation8 + $0x2e8] sm:$0xff]
    %v879 = vld [vmem:[#allocation8 + $0x2f0] sm:$0xff]
    %v880 = vld [vmem:[#allocation8 + $0x2f8] sm:$0xff]
    %v881 = vld [vmem:[#allocation8 + $0x300] sm:$0xff]
    %v882 = vld [vmem:[#allocation8 + $0x308] sm:$0xff]
    %v883 = vld [vmem:[#allocation8 + $0x310] sm:$0xff]
    %v884 = vld [vmem:[#allocation8 + $0x318] sm:$0xff]
    %v885 = vld [vmem:[#allocation8 + $0x320] sm:$0xff]
    %v886 = vld [vmem:[#allocation8 + $0x328] sm:$0xff]
    %v887 = vld [vmem:[#allocation8 + $0x330] sm:$0xff]
    %v888 = vld [vmem:[#allocation8 + $0x338] sm:$0xff]
    %v889 = vld [vmem:[#allocation8 + $0x340] sm:$0xff]
    %v890 = vld [vmem:[#allocation8 + $0x348] sm:$0xff]
    %v891 = vld [vmem:[#allocation8 + $0x350] sm:$0xff]
    %v892 = vld [vmem:[#allocation8 + $0x358] sm:$0xff]
    %v893 = vld [vmem:[#allocation8 + $0x360] sm:$0xff]
    %v894 = vld [vmem:[#allocation8 + $0x368] sm:$0xff]
    %v895 = vld [vmem:[#allocation8 + $0x370] sm:$0xff]
    %v896 = vld [vmem:[#allocation8 + $0x378] sm:$0xff]
    %v897 = vld [vmem:[#allocation8 + $0x380] sm:$0xff]
    %v898 = vld [vmem:[#allocation8 + $0x388] sm:$0xff]
    %v899 = vld [vmem:[#allocation8 + $0x390] sm:$0xff]
    %v900 = vld [vmem:[#allocation8 + $0x398] sm:$0xff]
    %v901 = vld [vmem:[#allocation8 + $0x3a0] sm:$0xff]
    %v902 = vld [vmem:[#allocation8 + $0x3a8] sm:$0xff]
    %v903 = vld [vmem:[#allocation8 + $0x3b0] sm:$0xff]
    %v904 = vld [vmem:[#allocation8 + $0x3b8] sm:$0xff]
    %v905 = vld [vmem:[#allocation8 + $0x3c0] sm:$0xff]
    %v906 = vld [vmem:[#allocation8 + $0x3c8] sm:$0xff]
    %v907 = vld [vmem:[#allocation8 + $0x3d0] sm:$0xff]
    %v908 = vld [vmem:[#allocation8 + $0x3d8] sm:$0xff]
    %v909 = vld [vmem:[#allocation8 + $0x3e0] sm:$0xff]
    %v910 = vld [vmem:[#allocation8 + $0x3e8] sm:$0xff]
    %v911 = vld [vmem:[#allocation8 + $0x3f0] sm:$0xff]
    %v912 = vld [vmem:[#allocation8 + $0x3f8] sm:$0xff]
    %v913 = vld [vmem:[#allocation8 + $0x400] sm:$0xff]
    %v914 = vld [vmem:[#allocation8 + $0x408] sm:$0xff]
    %v915 = vld [vmem:[#allocation8 + $0x410] sm:$0xff]
    %v916 = vld [vmem:[#allocation8 + $0x418] sm:$0xff]
    %v917 = vld [vmem:[#allocation8 + $0x420] sm:$0xff]
    %v918 = vld [vmem:[#allocation8 + $0x428] sm:$0xff]
    %v919 = vld [vmem:[#allocation8 + $0x430] sm:$0xff]
    %v920 = vld [vmem:[#allocation8 + $0x438] sm:$0xff]
    %v921 = vld [vmem:[#allocation8 + $0x440] sm:$0xff]
    %v922 = vld [vmem:[#allocation8 + $0x448] sm:$0xff]
    %v923 = vld [vmem:[#allocation8 + $0x450] sm:$0xff]
    %v924 = vld [vmem:[#allocation8 + $0x458] sm:$0xff]
    %v925 = vld [vmem:[#allocation8 + $0x460] sm:$0xff]
    %v926 = vld [vmem:[#allocation8 + $0x468] sm:$0xff]
    %v927 = vld [vmem:[#allocation8 + $0x470] sm:$0xff]
    %v928 = vld [vmem:[#allocation8 + $0x478] sm:$0xff]
    %v929 = vld [vmem:[#allocation8 + $0x480] sm:$0xff]
    %v930 = vld [vmem:[#allocation8 + $0x488] sm:$0xff]
    %v931 = vld [vmem:[#allocation8 + $0x490] sm:$0xff]
    %v932 = vld [vmem:[#allocation8 + $0x498] sm:$0xff]
    %v933 = vld [vmem:[#allocation8 + $0x4a0] sm:$0xff]
    %v934 = vld [vmem:[#allocation8 + $0x4a8] sm:$0xff]
    %v935 = vld [vmem:[#allocation8 + $0x4b0] sm:$0xff]
    %v936 = vld [vmem:[#allocation8 + $0x4b8] sm:$0xff]
    %v937 = vld [vmem:[#allocation8 + $0x4c0] sm:$0xff]
    %v938 = vld [vmem:[#allocation8 + $0x4c8] sm:$0xff]
    %v939 = vld [vmem:[#allocation8 + $0x4d0] sm:$0xff]
    %v940 = vld [vmem:[#allocation8 + $0x4d8] sm:$0xff]
    %v941 = vld [vmem:[#allocation8 + $0x4e0] sm:$0xff]
    %v942 = vld [vmem:[#allocation8 + $0x4e8] sm:$0xff]
    %v943 = vld [vmem:[#allocation8 + $0x4f0] sm:$0xff]
    %v944 = vld [vmem:[#allocation8 + $0x4f8] sm:$0xff]
    %v945 = vld [vmem:[#allocation8 + $0x500] sm:$0xff]
    %v946 = vld [vmem:[#allocation8 + $0x508] sm:$0xff]
    %v947 = vld [vmem:[#allocation8 + $0x510] sm:$0xff]
    %v948 = vld [vmem:[#allocation8 + $0x518] sm:$0xff]
    %v949 = vld [vmem:[#allocation8 + $0x520] sm:$0xff]
    %v950 = vld [vmem:[#allocation8 + $0x528] sm:$0xff]
    %v951 = vld [vmem:[#allocation8 + $0x530] sm:$0xff]
    %v952 = vld [vmem:[#allocation8 + $0x538] sm:$0xff]
    %v953 = vld [vmem:[#allocation8 + $0x540] sm:$0xff]
    %v954 = vld [vmem:[#allocation8 + $0x548] sm:$0xff]
    %v955 = vld [vmem:[#allocation8 + $0x550] sm:$0xff]
    %v956 = vld [vmem:[#allocation8 + $0x558] sm:$0xff]
    %v957 = vld [vmem:[#allocation8 + $0x560] sm:$0xff]
    %v958 = vld [vmem:[#allocation8 + $0x568] sm:$0xff]
    %v959 = vld [vmem:[#allocation8 + $0x570] sm:$0xff]
    %v960 = vld [vmem:[#allocation8 + $0x578] sm:$0xff]
    %v961 = vld [vmem:[#allocation8 + $0x580] sm:$0xff]
    %v962 = vld [vmem:[#allocation8 + $0x588] sm:$0xff]
    %v963 = vld [vmem:[#allocation8 + $0x590] sm:$0xff]
    %v964 = vld [vmem:[#allocation8 + $0x598] sm:$0xff]
    %v965 = vld [vmem:[#allocation8 + $0x5a0] sm:$0xff]
    %v966 = vld [vmem:[#allocation8 + $0x5a8] sm:$0xff]
    %v967 = vld [vmem:[#allocation8 + $0x5b0] sm:$0xff]
    %v968 = vld [vmem:[#allocation8 + $0x5b8] sm:$0xff]
    %v969 = vld [vmem:[#allocation8 + $0x5c0] sm:$0xff]
    %v970 = vld [vmem:[#allocation8 + $0x5c8] sm:$0xff]
    %v971 = vld [vmem:[#allocation8 + $0x5d0] sm:$0xff]
    %v972 = vld [vmem:[#allocation8 + $0x5d8] sm:$0xff]
    %v973 = vld [vmem:[#allocation8 + $0x5e0] sm:$0xff]
    %v974 = vld [vmem:[#allocation8 + $0x5e8] sm:$0xff]
    %v975 = vld [vmem:[#allocation8 + $0x5f0] sm:$0xff]
    %v976 = vld [vmem:[#allocation8 + $0x5f8] sm:$0xff]
    %v977 = vld [vmem:[#allocation8 + $0x600] sm:$0xff]
    %v978 = vld [vmem:[#allocation8 + $0x608] sm:$0xff]
    %v979 = vld [vmem:[#allocation8 + $0x610] sm:$0xff]
    %v980 = vld [vmem:[#allocation8 + $0x618] sm:$0xff]
    %v981 = vld [vmem:[#allocation8 + $0x620] sm:$0xff]
    %v982 = vld [vmem:[#allocation8 + $0x628] sm:$0xff]
    %v983 = vld [vmem:[#allocation8 + $0x630] sm:$0xff]
    %v984 = vld [vmem:[#allocation8 + $0x638] sm:$0xff]
    %v985 = vld [vmem:[#allocation8 + $0x640] sm:$0xff]
    %v986 = vld [vmem:[#allocation8 + $0x648] sm:$0xff]
    %v987 = vld [vmem:[#allocation8 + $0x650] sm:$0xff]
    %v988 = vld [vmem:[#allocation8 + $0x658] sm:$0xff]
    %v989 = vld [vmem:[#allocation8 + $0x660] sm:$0xff]
    %v990 = vld [vmem:[#allocation8 + $0x668] sm:$0xff]
    %v991 = vld [vmem:[#allocation8 + $0x670] sm:$0xff]
    %v992 = vld [vmem:[#allocation8 + $0x678] sm:$0xff]
    %v993 = vld [vmem:[#allocation8 + $0x680] sm:$0xff]
    %v994 = vld [vmem:[#allocation8 + $0x688] sm:$0xff]
    %v995 = vld [vmem:[#allocation8 + $0x690] sm:$0xff]
    %v996 = vld [vmem:[#allocation8 + $0x698] sm:$0xff]
    %v997 = vld [vmem:[#allocation8 + $0x6a0] sm:$0xff]
    %v998 = vld [vmem:[#allocation8 + $0x6a8] sm:$0xff]
    %v999 = vld [vmem:[#allocation8 + $0x6b0] sm:$0xff]
    %v1000 = vld [vmem:[#allocation8 + $0x6b8] sm:$0xff]
    %v1001 = vld [vmem:[#allocation8 + $0x6c0] sm:$0xff]
    %v1002 = vld [vmem:[#allocation8 + $0x6c8] sm:$0xff]
    %v1003 = vld [vmem:[#allocation8 + $0x6d0] sm:$0xff]
    %v1004 = vld [vmem:[#allocation8 + $0x6d8] sm:$0xff]
    %v1005 = vld [vmem:[#allocation8 + $0x6e0] sm:$0xff]
    %v1006 = vld [vmem:[#allocation8 + $0x6e8] sm:$0xff]
    %v1007 = vld [vmem:[#allocation8 + $0x6f0] sm:$0xff]
    %v1008 = vld [vmem:[#allocation8 + $0x6f8] sm:$0xff]
    %v1009 = vld [vmem:[#allocation8 + $0x700] sm:$0xff]
    %v1010 = vld [vmem:[#allocation8 + $0x708] sm:$0xff]
    %v1011 = vld [vmem:[#allocation8 + $0x710] sm:$0xff]
    %v1012 = vld [vmem:[#allocation8 + $0x718] sm:$0xff]
    %v1013 = vld [vmem:[#allocation8 + $0x720] sm:$0xff]
    %v1014 = vld [vmem:[#allocation8 + $0x728] sm:$0xff]
    %v1015 = vld [vmem:[#allocation8 + $0x730] sm:$0xff]
    %v1016 = vld [vmem:[#allocation8 + $0x738] sm:$0xff]
    %v1017 = vld [vmem:[#allocation8 + $0x740] sm:$0xff]
    %v1018 = vld [vmem:[#allocation8 + $0x748] sm:$0xff]
    %v1019 = vld [vmem:[#allocation8 + $0x750] sm:$0xff]
    %v1020 = vld [vmem:[#allocation8 + $0x758] sm:$0xff]
    %v1021 = vld [vmem:[#allocation8 + $0x760] sm:$0xff]
    %v1022 = vld [vmem:[#allocation8 + $0x768] sm:$0xff]
    %v1023 = vld [vmem:[#allocation8 + $0x770] sm:$0xff]
    %v1024 = vld [vmem:[#allocation8 + $0x778] sm:$0xff]
    %v1025 = vld [vmem:[#allocation8 + $0x780] sm:$0xff]
    %v1026 = vld [vmem:[#allocation8 + $0x788] sm:$0xff]
    %v1027 = vld [vmem:[#allocation8 + $0x790] sm:$0xff]
    %v1028 = vld [vmem:[#allocation8 + $0x798] sm:$0xff]
    %v1029 = vld [vmem:[#allocation8 + $0x7a0] sm:$0xff]
    %v1030 = vld [vmem:[#allocation8 + $0x7a8] sm:$0xff]
    %v1031 = vld [vmem:[#allocation8 + $0x7b0] sm:$0xff]
    %v1032 = vld [vmem:[#allocation8 + $0x7b8] sm:$0xff]
    %v1033 = vld [vmem:[#allocation8 + $0x7c0] sm:$0xff]
    %v1034 = vld [vmem:[#allocation8 + $0x7c8] sm:$0xff]
    %v1035 = vld [vmem:[#allocation8 + $0x7d0] sm:$0xff]
    %v1036 = vld [vmem:[#allocation8 + $0x7d8] sm:$0xff]
    %v1037 = vld [vmem:[#allocation8 + $0x7e0] sm:$0xff]
    %v1038 = vld [vmem:[#allocation8 + $0x7e8] sm:$0xff]
    %v1039 = vld [vmem:[#allocation8 + $0x7f0] sm:$0xff]
    %v1040 = vld [vmem:[#allocation8 + $0x7f8] sm:$0xff]
    %v1041 = vld [vmem:[#allocation8 + $0x800] sm:$0xff]
    %v1042 = vld [vmem:[#allocation8 + $0x808] sm:$0xff]
    %v1043 = vld [vmem:[#allocation8 + $0x810] sm:$0xff]
    %v1044 = vld [vmem:[#allocation8 + $0x818] sm:$0xff]
    %v1045 = vld [vmem:[#allocation8 + $0x820] sm:$0xff]
    %v1046 = vld [vmem:[#allocation8 + $0x828] sm:$0xff]
    %v1047 = vld [vmem:[#allocation8 + $0x830] sm:$0xff]
    %v1048 = vld [vmem:[#allocation8 + $0x838] sm:$0xff]
    %v1049 = vld [vmem:[#allocation8 + $0x840] sm:$0xff]
    %v1050 = vld [vmem:[#allocation8 + $0x848] sm:$0xff]
    %v1051 = vld [vmem:[#allocation8 + $0x850] sm:$0xff]
    %v1052 = vld [vmem:[#allocation8 + $0x858] sm:$0xff]
    %v1053 = vld [vmem:[#allocation8 + $0x860] sm:$0xff]
    %v1054 = vld [vmem:[#allocation8 + $0x868] sm:$0xff]
    %v1055 = vld [vmem:[#allocation8 + $0x870] sm:$0xff]
    %v1056 = vld [vmem:[#allocation8 + $0x878] sm:$0xff]
    %v1057 = vld [vmem:[#allocation8 + $0x880] sm:$0xff]
    %v1058 = vld [vmem:[#allocation8 + $0x888] sm:$0xff]
    %v1059 = vld [vmem:[#allocation8 + $0x890] sm:$0xff]
    %v1060 = vld [vmem:[#allocation8 + $0x898] sm:$0xff]
    %v1061 = vld [vmem:[#allocation8 + $0x8a0] sm:$0xff]
    %v1062 = vld [vmem:[#allocation8 + $0x8a8] sm:$0xff]
    %v1063 = vld [vmem:[#allocation8 + $0x8b0] sm:$0xff]
    %v1064 = vld [vmem:[#allocation8 + $0x8b8] sm:$0xff]
    %v1065 = vld [vmem:[#allocation8 + $0x8c0] sm:$0xff]
    %v1066 = vld [vmem:[#allocation8 + $0x8c8] sm:$0xff]
    %v1067 = vld [vmem:[#allocation8 + $0x8d0] sm:$0xff]
    %v1068 = vld [vmem:[#allocation8 + $0x8d8] sm:$0xff]
    %v1069 = vld [vmem:[#allocation8 + $0x8e0] sm:$0xff]
    %v1070 = vld [vmem:[#allocation8 + $0x8e8] sm:$0xff]
    %v1071 = vld [vmem:[#allocation8 + $0x8f0] sm:$0xff]
    %v1072 = vld [vmem:[#allocation8 + $0x8f8] sm:$0xff]
    %v1073 = vld [vmem:[#allocation8 + $0x900] sm:$0xff]
    %v1074 = vld [vmem:[#allocation8 + $0x908] sm:$0xff]
    %v1075 = vld [vmem:[#allocation8 + $0x910] sm:$0xff]
    %v1076 = vld [vmem:[#allocation8 + $0x918] sm:$0xff]
    %v1077 = vld [vmem:[#allocation8 + $0x920] sm:$0xff]
    %v1078 = vld [vmem:[#allocation8 + $0x928] sm:$0xff]
    %v1079 = vld [vmem:[#allocation8 + $0x930] sm:$0xff]
    %v1080 = vld [vmem:[#allocation8 + $0x938] sm:$0xff]
    %v1081 = vld [vmem:[#allocation8 + $0x940] sm:$0xff]
    %v1082 = vld [vmem:[#allocation8 + $0x948] sm:$0xff]
    %v1083 = vld [vmem:[#allocation8 + $0x950] sm:$0xff]
    %v1084 = vld [vmem:[#allocation8 + $0x958] sm:$0xff]
    %v1085 = vld [vmem:[#allocation8 + $0x960] sm:$0xff]
    %v1086 = vld [vmem:[#allocation8 + $0x968] sm:$0xff]
    %v1087 = vld [vmem:[#allocation8 + $0x970] sm:$0xff]
    %v1088 = vld [vmem:[#allocation8 + $0x978] sm:$0xff]
    %v1089 = vld [vmem:[#allocation8 + $0x980] sm:$0xff]
    %v1090 = vld [vmem:[#allocation8 + $0x988] sm:$0xff]
    %v1091 = vld [vmem:[#allocation8 + $0x990] sm:$0xff]
    %v1092 = vld [vmem:[#allocation8 + $0x998] sm:$0xff]
    %v1093 = vld [vmem:[#allocation8 + $0x9a0] sm:$0xff]
    %v1094 = vld [vmem:[#allocation8 + $0x9a8] sm:$0xff]
    %v1095 = vld [vmem:[#allocation8 + $0x9b0] sm:$0xff]
    %v1096 = vld [vmem:[#allocation8 + $0x9b8] sm:$0xff]
    %v1097 = vld [vmem:[#allocation8 + $0x9c0] sm:$0xff]
    %v1098 = vld [vmem:[#allocation8 + $0x9c8] sm:$0xff]
    %v1099 = vld [vmem:[#allocation8 + $0x9d0] sm:$0xff]
    %v1100 = vld [vmem:[#allocation8 + $0x9d8] sm:$0xff]
    %v1101 = vld [vmem:[#allocation8 + $0x9e0] sm:$0xff]
    %v1102 = vld [vmem:[#allocation8 + $0x9e8] sm:$0xff]
    %v1103 = vld [vmem:[#allocation8 + $0x9f0] sm:$0xff]
    %v1104 = vld [vmem:[#allocation8 + $0x9f8] sm:$0xff]
    %v1105 = vld [vmem:[#allocation8 + $0xa00] sm:$0xff]
    %v1106 = vld [vmem:[#allocation8 + $0xa08] sm:$0xff]
    %v1107 = vld [vmem:[#allocation8 + $0xa10] sm:$0xff]
    %v1108 = vld [vmem:[#allocation8 + $0xa18] sm:$0xff]
    %v1109 = vld [vmem:[#allocation8 + $0xa20] sm:$0xff]
    %v1110 = vld [vmem:[#allocation8 + $0xa28] sm:$0xff]
    %v1111 = vld [vmem:[#allocation8 + $0xa30] sm:$0xff]
    %v1112 = vld [vmem:[#allocation8 + $0xa38] sm:$0xff]
    %v1113 = vld [vmem:[#allocation8 + $0xa40] sm:$0xff]
    %v1114 = vld [vmem:[#allocation8 + $0xa48] sm:$0xff]
    %v1115 = vld [vmem:[#allocation8 + $0xa50] sm:$0xff]
    %v1116 = vld [vmem:[#allocation8 + $0xa58] sm:$0xff]
    %v1117 = vld [vmem:[#allocation8 + $0xa60] sm:$0xff]
    %v1118 = vld [vmem:[#allocation8 + $0xa68] sm:$0xff]
    %v1119 = vld [vmem:[#allocation8 + $0xa70] sm:$0xff]
    %v1120 = vld [vmem:[#allocation8 + $0xa78] sm:$0xff]
    %v1121 = vld [vmem:[#allocation8 + $0xa80] sm:$0xff]
    %v1122 = vld [vmem:[#allocation8 + $0xa88] sm:$0xff]
    %v1123 = vld [vmem:[#allocation8 + $0xa90] sm:$0xff]
    %v1124 = vld [vmem:[#allocation8 + $0xa98] sm:$0xff]
    %v1125 = vld [vmem:[#allocation8 + $0xaa0] sm:$0xff]
    %v1126 = vld [vmem:[#allocation8 + $0xaa8] sm:$0xff]
    %v1127 = vld [vmem:[#allocation8 + $0xab0] sm:$0xff]
    %v1128 = vld [vmem:[#allocation8 + $0xab8] sm:$0xff]
    %v1129 = vld [vmem:[#allocation8 + $0xac0] sm:$0xff]
    %v1130 = vld [vmem:[#allocation8 + $0xac8] sm:$0xff]
    %v1131 = vld [vmem:[#allocation8 + $0xad0] sm:$0xff]
    %v1132 = vld [vmem:[#allocation8 + $0xad8] sm:$0xff]
    %v1133 = vld [vmem:[#allocation8 + $0xae0] sm:$0xff]
    %v1134 = vld [vmem:[#allocation8 + $0xae8] sm:$0xff]
    %v1135 = vld [vmem:[#allocation8 + $0xaf0] sm:$0xff]
    %v1136 = vld [vmem:[#allocation8 + $0xaf8] sm:$0xff]
    %v1137 = vld [vmem:[#allocation8 + $0xb00] sm:$0xff]
    %v1138 = vld [vmem:[#allocation8 + $0xb08] sm:$0xff]
    %v1139 = vld [vmem:[#allocation8 + $0xb10] sm:$0xff]
    %v1140 = vld [vmem:[#allocation8 + $0xb18] sm:$0xff]
    %v1141 = vld [vmem:[#allocation8 + $0xb20] sm:$0xff]
    %v1142 = vld [vmem:[#allocation8 + $0xb28] sm:$0xff]
    %v1143 = vld [vmem:[#allocation8 + $0xb30] sm:$0xff]
    %v1144 = vld [vmem:[#allocation8 + $0xb38] sm:$0xff]
    %v1145 = vld [vmem:[#allocation8 + $0xb40] sm:$0xff]
    %v1146 = vld [vmem:[#allocation8 + $0xb48] sm:$0xff]
    %v1147 = vld [vmem:[#allocation8 + $0xb50] sm:$0xff]
    %v1148 = vld [vmem:[#allocation8 + $0xb58] sm:$0xff]
    %v1149 = vld [vmem:[#allocation8 + $0xb60] sm:$0xff]
    %v1150 = vld [vmem:[#allocation8 + $0xb68] sm:$0xff]
    %v1151 = vld [vmem:[#allocation8 + $0xb70] sm:$0xff]
    %v1152 = vld [vmem:[#allocation8 + $0xb78] sm:$0xff]
    %v1153 = vld [vmem:[#allocation8 + $0xb80] sm:$0xff]
    %v1154 = vld [vmem:[#allocation8 + $0xb88] sm:$0xff]
    %v1155 = vld [vmem:[#allocation8 + $0xb90] sm:$0xff]
    %v1156 = vld [vmem:[#allocation8 + $0xb98] sm:$0xff]
    %v1157 = vld [vmem:[#allocation8 + $0xba0] sm:$0xff]
    %v1158 = vld [vmem:[#allocation8 + $0xba8] sm:$0xff]
    %v1159 = vld [vmem:[#allocation8 + $0xbb0] sm:$0xff]
    %v1160 = vld [vmem:[#allocation8 + $0xbb8] sm:$0xff]
    %v1161 = vld [vmem:[#allocation8 + $0xbc0] sm:$0xff]
    %v1162 = vld [vmem:[#allocation8 + $0xbc8] sm:$0xff]
    %v1163 = vld [vmem:[#allocation8 + $0xbd0] sm:$0xff]
    %v1164 = vld [vmem:[#allocation8 + $0xbd8] sm:$0xff]
    %v1165 = vld [vmem:[#allocation8 + $0xbe0] sm:$0xff]
    %v1166 = vld [vmem:[#allocation8 + $0xbe8] sm:$0xff]
    %v1167 = vld [vmem:[#allocation8 + $0xbf0] sm:$0xff]
    %v1168 = vld [vmem:[#allocation8 + $0xbf8] sm:$0xff]
    %v1169 = vld [vmem:[#allocation8 + $0xc00] sm:$0xff]
    %v1170 = vld [vmem:[#allocation8 + $0xc08] sm:$0xff]
    %v1171 = vld [vmem:[#allocation8 + $0xc10] sm:$0xff]
    %v1172 = vld [vmem:[#allocation8 + $0xc18] sm:$0xff]
    %v1173 = vld [vmem:[#allocation8 + $0xc20] sm:$0xff]
    %v1174 = vld [vmem:[#allocation8 + $0xc28] sm:$0xff]
    %v1175 = vld [vmem:[#allocation8 + $0xc30] sm:$0xff]
    %v1176 = vld [vmem:[#allocation8 + $0xc38] sm:$0xff]
    %v1177 = vld [vmem:[#allocation8 + $0xc40] sm:$0xff]
    %v1178 = vld [vmem:[#allocation8 + $0xc48] sm:$0xff]
    %v1179 = vld [vmem:[#allocation8 + $0xc50] sm:$0xff]
    %v1180 = vld [vmem:[#allocation8 + $0xc58] sm:$0xff]
    %v1181 = vld [vmem:[#allocation8 + $0xc60] sm:$0xff]
    %v1182 = vld [vmem:[#allocation8 + $0xc68] sm:$0xff]
    %v1183 = vld [vmem:[#allocation8 + $0xc70] sm:$0xff]
    %v1184 = vld [vmem:[#allocation8 + $0xc78] sm:$0xff]
    %v1185 = vld [vmem:[#allocation8 + $0xc80] sm:$0xff]
    %v1186 = vld [vmem:[#allocation8 + $0xc88] sm:$0xff]
    %v1187 = vld [vmem:[#allocation8 + $0xc90] sm:$0xff]
    %v1188 = vld [vmem:[#allocation8 + $0xc98] sm:$0xff]
    %v1189 = vld [vmem:[#allocation8 + $0xca0] sm:$0xff]
    %v1190 = vld [vmem:[#allocation8 + $0xca8] sm:$0xff]
    %v1191 = vld [vmem:[#allocation8 + $0xcb0] sm:$0xff]
    %v1192 = vld [vmem:[#allocation8 + $0xcb8] sm:$0xff]
    %v1193 = vld [vmem:[#allocation8 + $0xcc0] sm:$0xff]
    %v1194 = vld [vmem:[#allocation8 + $0xcc8] sm:$0xff]
    %v1195 = vld [vmem:[#allocation8 + $0xcd0] sm:$0xff]
    %v1196 = vld [vmem:[#allocation8 + $0xcd8] sm:$0xff]
    %v1197 = vld [vmem:[#allocation8 + $0xce0] sm:$0xff]
    %v1198 = vld [vmem:[#allocation8 + $0xce8] sm:$0xff]
    %v1199 = vld [vmem:[#allocation8 + $0xcf0] sm:$0xff]
    %v1200 = vld [vmem:[#allocation8 + $0xcf8] sm:$0xff]
    %v1201 = vld [vmem:[#allocation8 + $0xd00] sm:$0xff]
    %v1202 = vld [vmem:[#allocation8 + $0xd08] sm:$0xff]
    %v1203 = vld [vmem:[#allocation8 + $0xd10] sm:$0xff]
    %v1204 = vld [vmem:[#allocation8 + $0xd18] sm:$0xff]
    %v1205 = vld [vmem:[#allocation8 + $0xd20] sm:$0xff]
    %v1206 = vld [vmem:[#allocation8 + $0xd28] sm:$0xff]
    %v1207 = vld [vmem:[#allocation8 + $0xd30] sm:$0xff]
    %v1208 = vld [vmem:[#allocation8 + $0xd38] sm:$0xff]
    %v1209 = vld [vmem:[#allocation8 + $0xd40] sm:$0xff]
    %v1210 = vld [vmem:[#allocation8 + $0xd48] sm:$0xff]
    %v1211 = vld [vmem:[#allocation8 + $0xd50] sm:$0xff]
    %v1212 = vld [vmem:[#allocation8 + $0xd58] sm:$0xff]
    %v1213 = vld [vmem:[#allocation8 + $0xd60] sm:$0xff]
    %v1214 = vld [vmem:[#allocation8 + $0xd68] sm:$0xff]
    %v1215 = vld [vmem:[#allocation8 + $0xd70] sm:$0xff]
    %v1216 = vld [vmem:[#allocation8 + $0xd78] sm:$0xff]
    %v1217 = vld [vmem:[#allocation8 + $0xd80] sm:$0xff]
    %v1218 = vld [vmem:[#allocation8 + $0xd88] sm:$0xff]
    %v1219 = vld [vmem:[#allocation8 + $0xd90] sm:$0xff]
    %v1220 = vld [vmem:[#allocation8 + $0xd98] sm:$0xff]
    %v1221 = vld [vmem:[#allocation8 + $0xda0] sm:$0xff]
    %v1222 = vld [vmem:[#allocation8 + $0xda8] sm:$0xff]
    %v1223 = vld [vmem:[#allocation8 + $0xdb0] sm:$0xff]
    %v1224 = vld [vmem:[#allocation8 + $0xdb8] sm:$0xff]
    %v1225 = vld [vmem:[#allocation8 + $0xdc0] sm:$0xff]
    %v1226 = vld [vmem:[#allocation8 + $0xdc8] sm:$0xff]
    %v1227 = vld [vmem:[#allocation8 + $0xdd0] sm:$0xff]
    %v1228 = vld [vmem:[#allocation8 + $0xdd8] sm:$0xff]
    %v1229 = vld [vmem:[#allocation8 + $0xde0] sm:$0xff]
    %v1230 = vld [vmem:[#allocation8 + $0xde8] sm:$0xff]
    %v1231 = vld [vmem:[#allocation8 + $0xdf0] sm:$0xff]
    %v1232 = vld [vmem:[#allocation8 + $0xdf8] sm:$0xff]
    %v1233 = vld [vmem:[#allocation8 + $0xe00] sm:$0xff]
    %v1234 = vld [vmem:[#allocation8 + $0xe08] sm:$0xff]
    %v1235 = vld [vmem:[#allocation8 + $0xe10] sm:$0xff]
    %v1236 = vld [vmem:[#allocation8 + $0xe18] sm:$0xff]
    %v1237 = vld [vmem:[#allocation8 + $0xe20] sm:$0xff]
    %v1238 = vld [vmem:[#allocation8 + $0xe28] sm:$0xff]
    %v1239 = vld [vmem:[#allocation8 + $0xe30] sm:$0xff]
    %v1240 = vld [vmem:[#allocation8 + $0xe38] sm:$0xff]
    %v1241 = vld [vmem:[#allocation8 + $0xe40] sm:$0xff]
    %v1242 = vld [vmem:[#allocation8 + $0xe48] sm:$0xff]
    %v1243 = vld [vmem:[#allocation8 + $0xe50] sm:$0xff]
    %v1244 = vld [vmem:[#allocation8 + $0xe58] sm:$0xff]
    %v1245 = vld [vmem:[#allocation8 + $0xe60] sm:$0xff]
    %v1246 = vld [vmem:[#allocation8 + $0xe68] sm:$0xff]
    %v1247 = vld [vmem:[#allocation8 + $0xe70] sm:$0xff]
    %v1248 = vld [vmem:[#allocation8 + $0xe78] sm:$0xff]
    %v1249 = vld [vmem:[#allocation8 + $0xe80] sm:$0xff]
    %v1250 = vld [vmem:[#allocation8 + $0xe88] sm:$0xff]
    %v1251 = vld [vmem:[#allocation8 + $0xe90] sm:$0xff]
    %v1252 = vld [vmem:[#allocation8 + $0xe98] sm:$0xff]
    %v1253 = vld [vmem:[#allocation8 + $0xea0] sm:$0xff]
    %v1254 = vld [vmem:[#allocation8 + $0xea8] sm:$0xff]
    %v1255 = vld [vmem:[#allocation8 + $0xeb0] sm:$0xff]
    %v1256 = vld [vmem:[#allocation8 + $0xeb8] sm:$0xff]
    %v1257 = vld [vmem:[#allocation8 + $0xec0] sm:$0xff]
    %v1258 = vld [vmem:[#allocation8 + $0xec8] sm:$0xff]
    %v1259 = vld [vmem:[#allocation8 + $0xed0] sm:$0xff]
    %v1260 = vld [vmem:[#allocation8 + $0xed8] sm:$0xff]
    %v1261 = vld [vmem:[#allocation8 + $0xee0] sm:$0xff]
    %v1262 = vld [vmem:[#allocation8 + $0xee8] sm:$0xff]
    %v1263 = vld [vmem:[#allocation8 + $0xef0] sm:$0xff]
    %v1264 = vld [vmem:[#allocation8 + $0xef8] sm:$0xff]
    %v1265 = vld [vmem:[#allocation8 + $0xf00] sm:$0xff]
    %v1266 = vld [vmem:[#allocation8 + $0xf08] sm:$0xff]
    %v1267 = vld [vmem:[#allocation8 + $0xf10] sm:$0xff]
    %v1268 = vld [vmem:[#allocation8 + $0xf18] sm:$0xff]
    %v1269 = vld [vmem:[#allocation8 + $0xf20] sm:$0xff]
    %v1270 = vld [vmem:[#allocation8 + $0xf28] sm:$0xff]
    %v1271 = vld [vmem:[#allocation8 + $0xf30] sm:$0xff]
    %v1272 = vld [vmem:[#allocation8 + $0xf38] sm:$0xff]
    %v1273 = vld [vmem:[#allocation8 + $0xf40] sm:$0xff]
    %v1274 = vld [vmem:[#allocation8 + $0xf48] sm:$0xff]
    %v1275 = vld [vmem:[#allocation8 + $0xf50] sm:$0xff]
    %v1276 = vld [vmem:[#allocation8 + $0xf58] sm:$0xff]
    %v1277 = vld [vmem:[#allocation8 + $0xf60] sm:$0xff]
    %v1278 = vld [vmem:[#allocation8 + $0xf68] sm:$0xff]
    %v1279 = vld [vmem:[#allocation8 + $0xf70] sm:$0xff]
    %v1280 = vld [vmem:[#allocation8 + $0xf78] sm:$0xff]
    %v1281 = vld [vmem:[#allocation8 + $0xf80] sm:$0xff]
    %v1282 = vld [vmem:[#allocation8 + $0xf88] sm:$0xff]
    %v1283 = vld [vmem:[#allocation8 + $0xf90] sm:$0xff]
    %v1284 = vld [vmem:[#allocation8 + $0xf98] sm:$0xff]
    %v1285 = vld [vmem:[#allocation8 + $0xfa0] sm:$0xff]
    %v1286 = vld [vmem:[#allocation8 + $0xfa8] sm:$0xff]
    %v1287 = vld [vmem:[#allocation8 + $0xfb0] sm:$0xff]
    %v1288 = vld [vmem:[#allocation8 + $0xfb8] sm:$0xff]
    %v1289 = vld [vmem:[#allocation8 + $0xfc0] sm:$0xff]
    %v1290 = vld [vmem:[#allocation8 + $0xfc8] sm:$0xff]
    %v1291 = vld [vmem:[#allocation8 + $0xfd0] sm:$0xff]
    %v1292 = vld [vmem:[#allocation8 + $0xfd8] sm:$0xff]
    %v1293 = vld [vmem:[#allocation8 + $0xfe0] sm:$0xff]
    %v1294 = vld [vmem:[#allocation8 + $0xfe8] sm:$0xff]
    %v1295 = vld [vmem:[#allocation8 + $0xff0] sm:$0xff]
    %v1296 = vld [vmem:[#allocation8 + $0xff8] sm:$0xff]
    %v1297 = vld [vmem:[#allocation10] sm:$0xff]
    %v1299 = vlaneseq
    %v1300 = vshrl.u32 %v1299, 7
    %v1301 = vsub.s32 0, %v1300
    %v1302 = vrot.slane %v1297, %v1301
    %v1303 = vlaneseq
    %v1304 = vshrl.u32 %v1303, 7
    %v1305 = vsub.s32 1, %v1304
    %v1306 = vrot.slane %v1297, %v1305
    %v1307 = vlaneseq
    %v1308 = vshrl.u32 %v1307, 7
    %v1309 = vsub.s32 2, %v1308
    %v1310 = vrot.slane %v1297, %v1309
    %v1311 = vlaneseq
    %v1312 = vshrl.u32 %v1311, 7
    %v1313 = vsub.s32 3, %v1312
    %v1314 = vrot.slane %v1297, %v1313
    %v1315 = vlaneseq
    %v1316 = vshrl.u32 %v1315, 7
    %v1317 = vsub.s32 4, %v1316
    %v1318 = vrot.slane %v1297, %v1317
    %v1319 = vlaneseq
    %v1320 = vshrl.u32 %v1319, 7
    %v1321 = vsub.s32 5, %v1320
    %v1322 = vrot.slane %v1297, %v1321
    %v1323 = vlaneseq
    %v1324 = vshrl.u32 %v1323, 7
    %v1325 = vsub.s32 6, %v1324
    %v1326 = vrot.slane %v1297, %v1325
    %v1327 = vlaneseq
    %v1328 = vshrl.u32 %v1327, 7
    %v1329 = vsub.s32 7, %v1328
    %v1330 = vrot.slane %v1297, %v1329
    %v1851 = vunpack.c.l.b16 %v785
    %v1852 = vunpack.c.h.b16 %v785
    %v1853 = vunpack.c.l.b16 %v786
    %v1854 = vunpack.c.h.b16 %v786
    %v1855 = vunpack.c.l.b16 %v787
    %v1856 = vunpack.c.h.b16 %v787
    %v1857 = vunpack.c.l.b16 %v788
    %v1858 = vunpack.c.h.b16 %v788
    %v1859 = vunpack.c.l.b16 %v789
    %v1860 = vunpack.c.h.b16 %v789
    %v1861 = vunpack.c.l.b16 %v790
    %v1862 = vunpack.c.h.b16 %v790
    %v1863 = vunpack.c.l.b16 %v791
    %v1864 = vunpack.c.h.b16 %v791
    %v1865 = vunpack.c.l.b16 %v792
    %v1866 = vunpack.c.h.b16 %v792
    %v1867 = vunpack.c.l.b16 %v793
    %v1868 = vunpack.c.h.b16 %v793
    %v1869 = vunpack.c.l.b16 %v794
    %v1870 = vunpack.c.h.b16 %v794
    %v1871 = vunpack.c.l.b16 %v795
    %v1872 = vunpack.c.h.b16 %v795
    %v1873 = vunpack.c.l.b16 %v796
    %v1874 = vunpack.c.h.b16 %v796
    %v1875 = vunpack.c.l.b16 %v797
    %v1876 = vunpack.c.h.b16 %v797
    %v1877 = vunpack.c.l.b16 %v798
    %v1878 = vunpack.c.h.b16 %v798
    %v1879 = vunpack.c.l.b16 %v799
    %v1880 = vunpack.c.h.b16 %v799
    %v1881 = vunpack.c.l.b16 %v800
    %v1882 = vunpack.c.h.b16 %v800
    %v1883 = vunpack.c.l.b16 %v801
    %v1884 = vunpack.c.h.b16 %v801
    %v1885 = vunpack.c.l.b16 %v802
    %v1886 = vunpack.c.h.b16 %v802
    %v1887 = vunpack.c.l.b16 %v803
    %v1888 = vunpack.c.h.b16 %v803
    %v1889 = vunpack.c.l.b16 %v804
    %v1890 = vunpack.c.h.b16 %v804
    %v1891 = vunpack.c.l.b16 %v805
    %v1892 = vunpack.c.h.b16 %v805
    %v1893 = vunpack.c.l.b16 %v806
    %v1894 = vunpack.c.h.b16 %v806
    %v1895 = vunpack.c.l.b16 %v807
    %v1896 = vunpack.c.h.b16 %v807
    %v1897 = vunpack.c.l.b16 %v808
    %v1898 = vunpack.c.h.b16 %v808
    %v1899 = vunpack.c.l.b16 %v809
    %v1900 = vunpack.c.h.b16 %v809
    %v1901 = vunpack.c.l.b16 %v810
    %v1902 = vunpack.c.h.b16 %v810
    %v1903 = vunpack.c.l.b16 %v811
    %v1904 = vunpack.c.h.b16 %v811
    %v1905 = vunpack.c.l.b16 %v812
    %v1906 = vunpack.c.h.b16 %v812
    %v1907 = vunpack.c.l.b16 %v813
    %v1908 = vunpack.c.h.b16 %v813
    %v1909 = vunpack.c.l.b16 %v814
    %v1910 = vunpack.c.h.b16 %v814
    %v1911 = vunpack.c.l.b16 %v815
    %v1912 = vunpack.c.h.b16 %v815
    %v1913 = vunpack.c.l.b16 %v816
    %v1914 = vunpack.c.h.b16 %v816
    %v1915 = vunpack.c.l.b16 %v817
    %v1916 = vunpack.c.h.b16 %v817
    %v1917 = vunpack.c.l.b16 %v818
    %v1918 = vunpack.c.h.b16 %v818
    %v1919 = vunpack.c.l.b16 %v819
    %v1920 = vunpack.c.h.b16 %v819
    %v1921 = vunpack.c.l.b16 %v820
    %v1922 = vunpack.c.h.b16 %v820
    %v1923 = vunpack.c.l.b16 %v821
    %v1924 = vunpack.c.h.b16 %v821
    %v1925 = vunpack.c.l.b16 %v822
    %v1926 = vunpack.c.h.b16 %v822
    %v1927 = vunpack.c.l.b16 %v823
    %v1928 = vunpack.c.h.b16 %v823
    %v1929 = vunpack.c.l.b16 %v824
    %v1930 = vunpack.c.h.b16 %v824
    %v1931 = vunpack.c.l.b16 %v825
    %v1932 = vunpack.c.h.b16 %v825
    %v1933 = vunpack.c.l.b16 %v826
    %v1934 = vunpack.c.h.b16 %v826
    %v1935 = vunpack.c.l.b16 %v827
    %v1936 = vunpack.c.h.b16 %v827
    %v1937 = vunpack.c.l.b16 %v828
    %v1938 = vunpack.c.h.b16 %v828
    %v1939 = vunpack.c.l.b16 %v829
    %v1940 = vunpack.c.h.b16 %v829
    %v1941 = vunpack.c.l.b16 %v830
    %v1942 = vunpack.c.h.b16 %v830
    %v1943 = vunpack.c.l.b16 %v831
    %v1944 = vunpack.c.h.b16 %v831
    %v1945 = vunpack.c.l.b16 %v832
    %v1946 = vunpack.c.h.b16 %v832
    %v1947 = vunpack.c.l.b16 %v833
    %v1948 = vunpack.c.h.b16 %v833
    %v1949 = vunpack.c.l.b16 %v834
    %v1950 = vunpack.c.h.b16 %v834
    %v1951 = vunpack.c.l.b16 %v835
    %v1952 = vunpack.c.h.b16 %v835
    %v1953 = vunpack.c.l.b16 %v836
    %v1954 = vunpack.c.h.b16 %v836
    %v1955 = vunpack.c.l.b16 %v837
    %v1956 = vunpack.c.h.b16 %v837
    %v1957 = vunpack.c.l.b16 %v838
    %v1958 = vunpack.c.h.b16 %v838
    %v1959 = vunpack.c.l.b16 %v839
    %v1960 = vunpack.c.h.b16 %v839
    %v1961 = vunpack.c.l.b16 %v840
    %v1962 = vunpack.c.h.b16 %v840
    %v1963 = vunpack.c.l.b16 %v841
    %v1964 = vunpack.c.h.b16 %v841
    %v1965 = vunpack.c.l.b16 %v842
    %v1966 = vunpack.c.h.b16 %v842
    %v1967 = vunpack.c.l.b16 %v843
    %v1968 = vunpack.c.h.b16 %v843
    %v1969 = vunpack.c.l.b16 %v844
    %v1970 = vunpack.c.h.b16 %v844
    %v1971 = vunpack.c.l.b16 %v845
    %v1972 = vunpack.c.h.b16 %v845
    %v1973 = vunpack.c.l.b16 %v846
    %v1974 = vunpack.c.h.b16 %v846
    %v1975 = vunpack.c.l.b16 %v847
    %v1976 = vunpack.c.h.b16 %v847
    %v1977 = vunpack.c.l.b16 %v848
    %v1978 = vunpack.c.h.b16 %v848
    %v1979 = vunpack.c.l.b16 %v849
    %v1980 = vunpack.c.h.b16 %v849
    %v1981 = vunpack.c.l.b16 %v850
    %v1982 = vunpack.c.h.b16 %v850
    %v1983 = vunpack.c.l.b16 %v851
    %v1984 = vunpack.c.h.b16 %v851
    %v1985 = vunpack.c.l.b16 %v852
    %v1986 = vunpack.c.h.b16 %v852
    %v1987 = vunpack.c.l.b16 %v853
    %v1988 = vunpack.c.h.b16 %v853
    %v1989 = vunpack.c.l.b16 %v854
    %v1990 = vunpack.c.h.b16 %v854
    %v1991 = vunpack.c.l.b16 %v855
    %v1992 = vunpack.c.h.b16 %v855
    %v1993 = vunpack.c.l.b16 %v856
    %v1994 = vunpack.c.h.b16 %v856
    %v1995 = vunpack.c.l.b16 %v857
    %v1996 = vunpack.c.h.b16 %v857
    %v1997 = vunpack.c.l.b16 %v858
    %v1998 = vunpack.c.h.b16 %v858
    %v1999 = vunpack.c.l.b16 %v859
    %v2000 = vunpack.c.h.b16 %v859
    %v2001 = vunpack.c.l.b16 %v860
    %v2002 = vunpack.c.h.b16 %v860
    %v2003 = vunpack.c.l.b16 %v861
    %v2004 = vunpack.c.h.b16 %v861
    %v2005 = vunpack.c.l.b16 %v862
    %v2006 = vunpack.c.h.b16 %v862
    %v2007 = vunpack.c.l.b16 %v863
    %v2008 = vunpack.c.h.b16 %v863
    %v2009 = vunpack.c.l.b16 %v864
    %v2010 = vunpack.c.h.b16 %v864
    %v2011 = vunpack.c.l.b16 %v865
    %v2012 = vunpack.c.h.b16 %v865
    %v2013 = vunpack.c.l.b16 %v866
    %v2014 = vunpack.c.h.b16 %v866
    %v2015 = vunpack.c.l.b16 %v867
    %v2016 = vunpack.c.h.b16 %v867
    %v2017 = vunpack.c.l.b16 %v868
    %v2018 = vunpack.c.h.b16 %v868
    %v2019 = vunpack.c.l.b16 %v869
    %v2020 = vunpack.c.h.b16 %v869
    %v2021 = vunpack.c.l.b16 %v870
    %v2022 = vunpack.c.h.b16 %v870
    %v2023 = vunpack.c.l.b16 %v871
    %v2024 = vunpack.c.h.b16 %v871
    %v2025 = vunpack.c.l.b16 %v872
    %v2026 = vunpack.c.h.b16 %v872
    %v2027 = vunpack.c.l.b16 %v873
    %v2028 = vunpack.c.h.b16 %v873
    %v2029 = vunpack.c.l.b16 %v874
    %v2030 = vunpack.c.h.b16 %v874
    %v2031 = vunpack.c.l.b16 %v875
    %v2032 = vunpack.c.h.b16 %v875
    %v2033 = vunpack.c.l.b16 %v876
    %v2034 = vunpack.c.h.b16 %v876
    %v2035 = vunpack.c.l.b16 %v877
    %v2036 = vunpack.c.h.b16 %v877
    %v2037 = vunpack.c.l.b16 %v878
    %v2038 = vunpack.c.h.b16 %v878
    %v2039 = vunpack.c.l.b16 %v879
    %v2040 = vunpack.c.h.b16 %v879
    %v2041 = vunpack.c.l.b16 %v880
    %v2042 = vunpack.c.h.b16 %v880
    %v2043 = vunpack.c.l.b16 %v881
    %v2044 = vunpack.c.h.b16 %v881
    %v2045 = vunpack.c.l.b16 %v882
    %v2046 = vunpack.c.h.b16 %v882
    %v2047 = vunpack.c.l.b16 %v883
    %v2048 = vunpack.c.h.b16 %v883
    %v2049 = vunpack.c.l.b16 %v884
    %v2050 = vunpack.c.h.b16 %v884
    %v2051 = vunpack.c.l.b16 %v885
    %v2052 = vunpack.c.h.b16 %v885
    %v2053 = vunpack.c.l.b16 %v886
    %v2054 = vunpack.c.h.b16 %v886
    %v2055 = vunpack.c.l.b16 %v887
    %v2056 = vunpack.c.h.b16 %v887
    %v2057 = vunpack.c.l.b16 %v888
    %v2058 = vunpack.c.h.b16 %v888
    %v2059 = vunpack.c.l.b16 %v889
    %v2060 = vunpack.c.h.b16 %v889
    %v2061 = vunpack.c.l.b16 %v890
    %v2062 = vunpack.c.h.b16 %v890
    %v2063 = vunpack.c.l.b16 %v891
    %v2064 = vunpack.c.h.b16 %v891
    %v2065 = vunpack.c.l.b16 %v892
    %v2066 = vunpack.c.h.b16 %v892
    %v2067 = vunpack.c.l.b16 %v893
    %v2068 = vunpack.c.h.b16 %v893
    %v2069 = vunpack.c.l.b16 %v894
    %v2070 = vunpack.c.h.b16 %v894
    %v2071 = vunpack.c.l.b16 %v895
    %v2072 = vunpack.c.h.b16 %v895
    %v2073 = vunpack.c.l.b16 %v896
    %v2074 = vunpack.c.h.b16 %v896
    %v2075 = vunpack.c.l.b16 %v897
    %v2076 = vunpack.c.h.b16 %v897
    %v2077 = vunpack.c.l.b16 %v898
    %v2078 = vunpack.c.h.b16 %v898
    %v2079 = vunpack.c.l.b16 %v899
    %v2080 = vunpack.c.h.b16 %v899
    %v2081 = vunpack.c.l.b16 %v900
    %v2082 = vunpack.c.h.b16 %v900
    %v2083 = vunpack.c.l.b16 %v901
    %v2084 = vunpack.c.h.b16 %v901
    %v2085 = vunpack.c.l.b16 %v902
    %v2086 = vunpack.c.h.b16 %v902
    %v2087 = vunpack.c.l.b16 %v903
    %v2088 = vunpack.c.h.b16 %v903
    %v2089 = vunpack.c.l.b16 %v904
    %v2090 = vunpack.c.h.b16 %v904
    %v2091 = vunpack.c.l.b16 %v905
    %v2092 = vunpack.c.h.b16 %v905
    %v2093 = vunpack.c.l.b16 %v906
    %v2094 = vunpack.c.h.b16 %v906
    %v2095 = vunpack.c.l.b16 %v907
    %v2096 = vunpack.c.h.b16 %v907
    %v2097 = vunpack.c.l.b16 %v908
    %v2098 = vunpack.c.h.b16 %v908
    %v2099 = vunpack.c.l.b16 %v909
    %v2100 = vunpack.c.h.b16 %v909
    %v2101 = vunpack.c.l.b16 %v910
    %v2102 = vunpack.c.h.b16 %v910
    %v2103 = vunpack.c.l.b16 %v911
    %v2104 = vunpack.c.h.b16 %v911
    %v2105 = vunpack.c.l.b16 %v912
    %v2106 = vunpack.c.h.b16 %v912
    %v2107 = vunpack.c.l.b16 %v913
    %v2108 = vunpack.c.h.b16 %v913
    %v2109 = vunpack.c.l.b16 %v914
    %v2110 = vunpack.c.h.b16 %v914
    %v2111 = vunpack.c.l.b16 %v915
    %v2112 = vunpack.c.h.b16 %v915
    %v2113 = vunpack.c.l.b16 %v916
    %v2114 = vunpack.c.h.b16 %v916
    %v2115 = vunpack.c.l.b16 %v917
    %v2116 = vunpack.c.h.b16 %v917
    %v2117 = vunpack.c.l.b16 %v918
    %v2118 = vunpack.c.h.b16 %v918
    %v2119 = vunpack.c.l.b16 %v919
    %v2120 = vunpack.c.h.b16 %v919
    %v2121 = vunpack.c.l.b16 %v920
    %v2122 = vunpack.c.h.b16 %v920
    %v2123 = vunpack.c.l.b16 %v921
    %v2124 = vunpack.c.h.b16 %v921
    %v2125 = vunpack.c.l.b16 %v922
    %v2126 = vunpack.c.h.b16 %v922
    %v2127 = vunpack.c.l.b16 %v923
    %v2128 = vunpack.c.h.b16 %v923
    %v2129 = vunpack.c.l.b16 %v924
    %v2130 = vunpack.c.h.b16 %v924
    %v2131 = vunpack.c.l.b16 %v925
    %v2132 = vunpack.c.h.b16 %v925
    %v2133 = vunpack.c.l.b16 %v926
    %v2134 = vunpack.c.h.b16 %v926
    %v2135 = vunpack.c.l.b16 %v927
    %v2136 = vunpack.c.h.b16 %v927
    %v2137 = vunpack.c.l.b16 %v928
    %v2138 = vunpack.c.h.b16 %v928
    %v2139 = vunpack.c.l.b16 %v929
    %v2140 = vunpack.c.h.b16 %v929
    %v2141 = vunpack.c.l.b16 %v930
    %v2142 = vunpack.c.h.b16 %v930
    %v2143 = vunpack.c.l.b16 %v931
    %v2144 = vunpack.c.h.b16 %v931
    %v2145 = vunpack.c.l.b16 %v932
    %v2146 = vunpack.c.h.b16 %v932
    %v2147 = vunpack.c.l.b16 %v933
    %v2148 = vunpack.c.h.b16 %v933
    %v2149 = vunpack.c.l.b16 %v934
    %v2150 = vunpack.c.h.b16 %v934
    %v2151 = vunpack.c.l.b16 %v935
    %v2152 = vunpack.c.h.b16 %v935
    %v2153 = vunpack.c.l.b16 %v936
    %v2154 = vunpack.c.h.b16 %v936
    %v2155 = vunpack.c.l.b16 %v937
    %v2156 = vunpack.c.h.b16 %v937
    %v2157 = vunpack.c.l.b16 %v938
    %v2158 = vunpack.c.h.b16 %v938
    %v2159 = vunpack.c.l.b16 %v939
    %v2160 = vunpack.c.h.b16 %v939
    %v2161 = vunpack.c.l.b16 %v940
    %v2162 = vunpack.c.h.b16 %v940
    %v2163 = vunpack.c.l.b16 %v941
    %v2164 = vunpack.c.h.b16 %v941
    %v2165 = vunpack.c.l.b16 %v942
    %v2166 = vunpack.c.h.b16 %v942
    %v2167 = vunpack.c.l.b16 %v943
    %v2168 = vunpack.c.h.b16 %v943
    %v2169 = vunpack.c.l.b16 %v944
    %v2170 = vunpack.c.h.b16 %v944
    %v2171 = vunpack.c.l.b16 %v945
    %v2172 = vunpack.c.h.b16 %v945
    %v2173 = vunpack.c.l.b16 %v946
    %v2174 = vunpack.c.h.b16 %v946
    %v2175 = vunpack.c.l.b16 %v947
    %v2176 = vunpack.c.h.b16 %v947
    %v2177 = vunpack.c.l.b16 %v948
    %v2178 = vunpack.c.h.b16 %v948
    %v2179 = vunpack.c.l.b16 %v949
    %v2180 = vunpack.c.h.b16 %v949
    %v2181 = vunpack.c.l.b16 %v950
    %v2182 = vunpack.c.h.b16 %v950
    %v2183 = vunpack.c.l.b16 %v951
    %v2184 = vunpack.c.h.b16 %v951
    %v2185 = vunpack.c.l.b16 %v952
    %v2186 = vunpack.c.h.b16 %v952
    %v2187 = vunpack.c.l.b16 %v953
    %v2188 = vunpack.c.h.b16 %v953
    %v2189 = vunpack.c.l.b16 %v954
    %v2190 = vunpack.c.h.b16 %v954
    %v2191 = vunpack.c.l.b16 %v955
    %v2192 = vunpack.c.h.b16 %v955
    %v2193 = vunpack.c.l.b16 %v956
    %v2194 = vunpack.c.h.b16 %v956
    %v2195 = vunpack.c.l.b16 %v957
    %v2196 = vunpack.c.h.b16 %v957
    %v2197 = vunpack.c.l.b16 %v958
    %v2198 = vunpack.c.h.b16 %v958
    %v2199 = vunpack.c.l.b16 %v959
    %v2200 = vunpack.c.h.b16 %v959
    %v2201 = vunpack.c.l.b16 %v960
    %v2202 = vunpack.c.h.b16 %v960
    %v2203 = vunpack.c.l.b16 %v961
    %v2204 = vunpack.c.h.b16 %v961
    %v2205 = vunpack.c.l.b16 %v962
    %v2206 = vunpack.c.h.b16 %v962
    %v2207 = vunpack.c.l.b16 %v963
    %v2208 = vunpack.c.h.b16 %v963
    %v2209 = vunpack.c.l.b16 %v964
    %v2210 = vunpack.c.h.b16 %v964
    %v2211 = vunpack.c.l.b16 %v965
    %v2212 = vunpack.c.h.b16 %v965
    %v2213 = vunpack.c.l.b16 %v966
    %v2214 = vunpack.c.h.b16 %v966
    %v2215 = vunpack.c.l.b16 %v967
    %v2216 = vunpack.c.h.b16 %v967
    %v2217 = vunpack.c.l.b16 %v968
    %v2218 = vunpack.c.h.b16 %v968
    %v2219 = vunpack.c.l.b16 %v969
    %v2220 = vunpack.c.h.b16 %v969
    %v2221 = vunpack.c.l.b16 %v970
    %v2222 = vunpack.c.h.b16 %v970
    %v2223 = vunpack.c.l.b16 %v971
    %v2224 = vunpack.c.h.b16 %v971
    %v2225 = vunpack.c.l.b16 %v972
    %v2226 = vunpack.c.h.b16 %v972
    %v2227 = vunpack.c.l.b16 %v973
    %v2228 = vunpack.c.h.b16 %v973
    %v2229 = vunpack.c.l.b16 %v974
    %v2230 = vunpack.c.h.b16 %v974
    %v2231 = vunpack.c.l.b16 %v975
    %v2232 = vunpack.c.h.b16 %v975
    %v2233 = vunpack.c.l.b16 %v976
    %v2234 = vunpack.c.h.b16 %v976
    %v2235 = vunpack.c.l.b16 %v977
    %v2236 = vunpack.c.h.b16 %v977
    %v2237 = vunpack.c.l.b16 %v978
    %v2238 = vunpack.c.h.b16 %v978
    %v2239 = vunpack.c.l.b16 %v979
    %v2240 = vunpack.c.h.b16 %v979
    %v2241 = vunpack.c.l.b16 %v980
    %v2242 = vunpack.c.h.b16 %v980
    %v2243 = vunpack.c.l.b16 %v981
    %v2244 = vunpack.c.h.b16 %v981
    %v2245 = vunpack.c.l.b16 %v982
    %v2246 = vunpack.c.h.b16 %v982
    %v2247 = vunpack.c.l.b16 %v983
    %v2248 = vunpack.c.h.b16 %v983
    %v2249 = vunpack.c.l.b16 %v984
    %v2250 = vunpack.c.h.b16 %v984
    %v2251 = vunpack.c.l.b16 %v985
    %v2252 = vunpack.c.h.b16 %v985
    %v2253 = vunpack.c.l.b16 %v986
    %v2254 = vunpack.c.h.b16 %v986
    %v2255 = vunpack.c.l.b16 %v987
    %v2256 = vunpack.c.h.b16 %v987
    %v2257 = vunpack.c.l.b16 %v988
    %v2258 = vunpack.c.h.b16 %v988
    %v2259 = vunpack.c.l.b16 %v989
    %v2260 = vunpack.c.h.b16 %v989
    %v2261 = vunpack.c.l.b16 %v990
    %v2262 = vunpack.c.h.b16 %v990
    %v2263 = vunpack.c.l.b16 %v991
    %v2264 = vunpack.c.h.b16 %v991
    %v2265 = vunpack.c.l.b16 %v992
    %v2266 = vunpack.c.h.b16 %v992
    %v2267 = vunpack.c.l.b16 %v993
    %v2268 = vunpack.c.h.b16 %v993
    %v2269 = vunpack.c.l.b16 %v994
    %v2270 = vunpack.c.h.b16 %v994
    %v2271 = vunpack.c.l.b16 %v995
    %v2272 = vunpack.c.h.b16 %v995
    %v2273 = vunpack.c.l.b16 %v996
    %v2274 = vunpack.c.h.b16 %v996
    %v2275 = vunpack.c.l.b16 %v997
    %v2276 = vunpack.c.h.b16 %v997
    %v2277 = vunpack.c.l.b16 %v998
    %v2278 = vunpack.c.h.b16 %v998
    %v2279 = vunpack.c.l.b16 %v999
    %v2280 = vunpack.c.h.b16 %v999
    %v2281 = vunpack.c.l.b16 %v1000
    %v2282 = vunpack.c.h.b16 %v1000
    %v2283 = vunpack.c.l.b16 %v1001
    %v2284 = vunpack.c.h.b16 %v1001
    %v2285 = vunpack.c.l.b16 %v1002
    %v2286 = vunpack.c.h.b16 %v1002
    %v2287 = vunpack.c.l.b16 %v1003
    %v2288 = vunpack.c.h.b16 %v1003
    %v2289 = vunpack.c.l.b16 %v1004
    %v2290 = vunpack.c.h.b16 %v1004
    %v2291 = vunpack.c.l.b16 %v1005
    %v2292 = vunpack.c.h.b16 %v1005
    %v2293 = vunpack.c.l.b16 %v1006
    %v2294 = vunpack.c.h.b16 %v1006
    %v2295 = vunpack.c.l.b16 %v1007
    %v2296 = vunpack.c.h.b16 %v1007
    %v2297 = vunpack.c.l.b16 %v1008
    %v2298 = vunpack.c.h.b16 %v1008
    %v2299 = vunpack.c.l.b16 %v1009
    %v2300 = vunpack.c.h.b16 %v1009
    %v2301 = vunpack.c.l.b16 %v1010
    %v2302 = vunpack.c.h.b16 %v1010
    %v2303 = vunpack.c.l.b16 %v1011
    %v2304 = vunpack.c.h.b16 %v1011
    %v2305 = vunpack.c.l.b16 %v1012
    %v2306 = vunpack.c.h.b16 %v1012
    %v2307 = vunpack.c.l.b16 %v1013
    %v2308 = vunpack.c.h.b16 %v1013
    %v2309 = vunpack.c.l.b16 %v1014
    %v2310 = vunpack.c.h.b16 %v1014
    %v2311 = vunpack.c.l.b16 %v1015
    %v2312 = vunpack.c.h.b16 %v1015
    %v2313 = vunpack.c.l.b16 %v1016
    %v2314 = vunpack.c.h.b16 %v1016
    %v2315 = vunpack.c.l.b16 %v1017
    %v2316 = vunpack.c.h.b16 %v1017
    %v2317 = vunpack.c.l.b16 %v1018
    %v2318 = vunpack.c.h.b16 %v1018
    %v2319 = vunpack.c.l.b16 %v1019
    %v2320 = vunpack.c.h.b16 %v1019
    %v2321 = vunpack.c.l.b16 %v1020
    %v2322 = vunpack.c.h.b16 %v1020
    %v2323 = vunpack.c.l.b16 %v1021
    %v2324 = vunpack.c.h.b16 %v1021
    %v2325 = vunpack.c.l.b16 %v1022
    %v2326 = vunpack.c.h.b16 %v1022
    %v2327 = vunpack.c.l.b16 %v1023
    %v2328 = vunpack.c.h.b16 %v1023
    %v2329 = vunpack.c.l.b16 %v1024
    %v2330 = vunpack.c.h.b16 %v1024
    %v2331 = vunpack.c.l.b16 %v1025
    %v2332 = vunpack.c.h.b16 %v1025
    %v2333 = vunpack.c.l.b16 %v1026
    %v2334 = vunpack.c.h.b16 %v1026
    %v2335 = vunpack.c.l.b16 %v1027
    %v2336 = vunpack.c.h.b16 %v1027
    %v2337 = vunpack.c.l.b16 %v1028
    %v2338 = vunpack.c.h.b16 %v1028
    %v2339 = vunpack.c.l.b16 %v1029
    %v2340 = vunpack.c.h.b16 %v1029
    %v2341 = vunpack.c.l.b16 %v1030
    %v2342 = vunpack.c.h.b16 %v1030
    %v2343 = vunpack.c.l.b16 %v1031
    %v2344 = vunpack.c.h.b16 %v1031
    %v2345 = vunpack.c.l.b16 %v1032
    %v2346 = vunpack.c.h.b16 %v1032
    %v2347 = vunpack.c.l.b16 %v1033
    %v2348 = vunpack.c.h.b16 %v1033
    %v2349 = vunpack.c.l.b16 %v1034
    %v2350 = vunpack.c.h.b16 %v1034
    %v2351 = vunpack.c.l.b16 %v1035
    %v2352 = vunpack.c.h.b16 %v1035
    %v2353 = vunpack.c.l.b16 %v1036
    %v2354 = vunpack.c.h.b16 %v1036
    %v2355 = vunpack.c.l.b16 %v1037
    %v2356 = vunpack.c.h.b16 %v1037
    %v2357 = vunpack.c.l.b16 %v1038
    %v2358 = vunpack.c.h.b16 %v1038
    %v2359 = vunpack.c.l.b16 %v1039
    %v2360 = vunpack.c.h.b16 %v1039
    %v2361 = vunpack.c.l.b16 %v1040
    %v2362 = vunpack.c.h.b16 %v1040
    %v2363 = vunpack.c.l.b16 %v1041
    %v2364 = vunpack.c.h.b16 %v1041
    %v2365 = vunpack.c.l.b16 %v1042
    %v2366 = vunpack.c.h.b16 %v1042
    %v2367 = vunpack.c.l.b16 %v1043
    %v2368 = vunpack.c.h.b16 %v1043
    %v2369 = vunpack.c.l.b16 %v1044
    %v2370 = vunpack.c.h.b16 %v1044
    %v2371 = vunpack.c.l.b16 %v1045
    %v2372 = vunpack.c.h.b16 %v1045
    %v2373 = vunpack.c.l.b16 %v1046
    %v2374 = vunpack.c.h.b16 %v1046
    %v2375 = vunpack.c.l.b16 %v1047
    %v2376 = vunpack.c.h.b16 %v1047
    %v2377 = vunpack.c.l.b16 %v1048
    %v2378 = vunpack.c.h.b16 %v1048
    %v2379 = vunpack.c.l.b16 %v1049
    %v2380 = vunpack.c.h.b16 %v1049
    %v2381 = vunpack.c.l.b16 %v1050
    %v2382 = vunpack.c.h.b16 %v1050
    %v2383 = vunpack.c.l.b16 %v1051
    %v2384 = vunpack.c.h.b16 %v1051
    %v2385 = vunpack.c.l.b16 %v1052
    %v2386 = vunpack.c.h.b16 %v1052
    %v2387 = vunpack.c.l.b16 %v1053
    %v2388 = vunpack.c.h.b16 %v1053
    %v2389 = vunpack.c.l.b16 %v1054
    %v2390 = vunpack.c.h.b16 %v1054
    %v2391 = vunpack.c.l.b16 %v1055
    %v2392 = vunpack.c.h.b16 %v1055
    %v2393 = vunpack.c.l.b16 %v1056
    %v2394 = vunpack.c.h.b16 %v1056
    %v2395 = vunpack.c.l.b16 %v1057
    %v2396 = vunpack.c.h.b16 %v1057
    %v2397 = vunpack.c.l.b16 %v1058
    %v2398 = vunpack.c.h.b16 %v1058
    %v2399 = vunpack.c.l.b16 %v1059
    %v2400 = vunpack.c.h.b16 %v1059
    %v2401 = vunpack.c.l.b16 %v1060
    %v2402 = vunpack.c.h.b16 %v1060
    %v2403 = vunpack.c.l.b16 %v1061
    %v2404 = vunpack.c.h.b16 %v1061
    %v2405 = vunpack.c.l.b16 %v1062
    %v2406 = vunpack.c.h.b16 %v1062
    %v2407 = vunpack.c.l.b16 %v1063
    %v2408 = vunpack.c.h.b16 %v1063
    %v2409 = vunpack.c.l.b16 %v1064
    %v2410 = vunpack.c.h.b16 %v1064
    %v2411 = vunpack.c.l.b16 %v1065
    %v2412 = vunpack.c.h.b16 %v1065
    %v2413 = vunpack.c.l.b16 %v1066
    %v2414 = vunpack.c.h.b16 %v1066
    %v2415 = vunpack.c.l.b16 %v1067
    %v2416 = vunpack.c.h.b16 %v1067
    %v2417 = vunpack.c.l.b16 %v1068
    %v2418 = vunpack.c.h.b16 %v1068
    %v2419 = vunpack.c.l.b16 %v1069
    %v2420 = vunpack.c.h.b16 %v1069
    %v2421 = vunpack.c.l.b16 %v1070
    %v2422 = vunpack.c.h.b16 %v1070
    %v2423 = vunpack.c.l.b16 %v1071
    %v2424 = vunpack.c.h.b16 %v1071
    %v2425 = vunpack.c.l.b16 %v1072
    %v2426 = vunpack.c.h.b16 %v1072
    %v2427 = vunpack.c.l.b16 %v1073
    %v2428 = vunpack.c.h.b16 %v1073
    %v2429 = vunpack.c.l.b16 %v1074
    %v2430 = vunpack.c.h.b16 %v1074
    %v2431 = vunpack.c.l.b16 %v1075
    %v2432 = vunpack.c.h.b16 %v1075
    %v2433 = vunpack.c.l.b16 %v1076
    %v2434 = vunpack.c.h.b16 %v1076
    %v2435 = vunpack.c.l.b16 %v1077
    %v2436 = vunpack.c.h.b16 %v1077
    %v2437 = vunpack.c.l.b16 %v1078
    %v2438 = vunpack.c.h.b16 %v1078
    %v2439 = vunpack.c.l.b16 %v1079
    %v2440 = vunpack.c.h.b16 %v1079
    %v2441 = vunpack.c.l.b16 %v1080
    %v2442 = vunpack.c.h.b16 %v1080
    %v2443 = vunpack.c.l.b16 %v1081
    %v2444 = vunpack.c.h.b16 %v1081
    %v2445 = vunpack.c.l.b16 %v1082
    %v2446 = vunpack.c.h.b16 %v1082
    %v2447 = vunpack.c.l.b16 %v1083
    %v2448 = vunpack.c.h.b16 %v1083
    %v2449 = vunpack.c.l.b16 %v1084
    %v2450 = vunpack.c.h.b16 %v1084
    %v2451 = vunpack.c.l.b16 %v1085
    %v2452 = vunpack.c.h.b16 %v1085
    %v2453 = vunpack.c.l.b16 %v1086
    %v2454 = vunpack.c.h.b16 %v1086
    %v2455 = vunpack.c.l.b16 %v1087
    %v2456 = vunpack.c.h.b16 %v1087
    %v2457 = vunpack.c.l.b16 %v1088
    %v2458 = vunpack.c.h.b16 %v1088
    %v2459 = vunpack.c.l.b16 %v1089
    %v2460 = vunpack.c.h.b16 %v1089
    %v2461 = vunpack.c.l.b16 %v1090
    %v2462 = vunpack.c.h.b16 %v1090
    %v2463 = vunpack.c.l.b16 %v1091
    %v2464 = vunpack.c.h.b16 %v1091
    %v2465 = vunpack.c.l.b16 %v1092
    %v2466 = vunpack.c.h.b16 %v1092
    %v2467 = vunpack.c.l.b16 %v1093
    %v2468 = vunpack.c.h.b16 %v1093
    %v2469 = vunpack.c.l.b16 %v1094
    %v2470 = vunpack.c.h.b16 %v1094
    %v2471 = vunpack.c.l.b16 %v1095
    %v2472 = vunpack.c.h.b16 %v1095
    %v2473 = vunpack.c.l.b16 %v1096
    %v2474 = vunpack.c.h.b16 %v1096
    %v2475 = vunpack.c.l.b16 %v1097
    %v2476 = vunpack.c.h.b16 %v1097
    %v2477 = vunpack.c.l.b16 %v1098
    %v2478 = vunpack.c.h.b16 %v1098
    %v2479 = vunpack.c.l.b16 %v1099
    %v2480 = vunpack.c.h.b16 %v1099
    %v2481 = vunpack.c.l.b16 %v1100
    %v2482 = vunpack.c.h.b16 %v1100
    %v2483 = vunpack.c.l.b16 %v1101
    %v2484 = vunpack.c.h.b16 %v1101
    %v2485 = vunpack.c.l.b16 %v1102
    %v2486 = vunpack.c.h.b16 %v1102
    %v2487 = vunpack.c.l.b16 %v1103
    %v2488 = vunpack.c.h.b16 %v1103
    %v2489 = vunpack.c.l.b16 %v1104
    %v2490 = vunpack.c.h.b16 %v1104
    %v2491 = vunpack.c.l.b16 %v1105
    %v2492 = vunpack.c.h.b16 %v1105
    %v2493 = vunpack.c.l.b16 %v1106
    %v2494 = vunpack.c.h.b16 %v1106
    %v2495 = vunpack.c.l.b16 %v1107
    %v2496 = vunpack.c.h.b16 %v1107
    %v2497 = vunpack.c.l.b16 %v1108
    %v2498 = vunpack.c.h.b16 %v1108
    %v2499 = vunpack.c.l.b16 %v1109
    %v2500 = vunpack.c.h.b16 %v1109
    %v2501 = vunpack.c.l.b16 %v1110
    %v2502 = vunpack.c.h.b16 %v1110
    %v2503 = vunpack.c.l.b16 %v1111
    %v2504 = vunpack.c.h.b16 %v1111
    %v2505 = vunpack.c.l.b16 %v1112
    %v2506 = vunpack.c.h.b16 %v1112
    %v2507 = vunpack.c.l.b16 %v1113
    %v2508 = vunpack.c.h.b16 %v1113
    %v2509 = vunpack.c.l.b16 %v1114
    %v2510 = vunpack.c.h.b16 %v1114
    %v2511 = vunpack.c.l.b16 %v1115
    %v2512 = vunpack.c.h.b16 %v1115
    %v2513 = vunpack.c.l.b16 %v1116
    %v2514 = vunpack.c.h.b16 %v1116
    %v2515 = vunpack.c.l.b16 %v1117
    %v2516 = vunpack.c.h.b16 %v1117
    %v2517 = vunpack.c.l.b16 %v1118
    %v2518 = vunpack.c.h.b16 %v1118
    %v2519 = vunpack.c.l.b16 %v1119
    %v2520 = vunpack.c.h.b16 %v1119
    %v2521 = vunpack.c.l.b16 %v1120
    %v2522 = vunpack.c.h.b16 %v1120
    %v2523 = vunpack.c.l.b16 %v1121
    %v2524 = vunpack.c.h.b16 %v1121
    %v2525 = vunpack.c.l.b16 %v1122
    %v2526 = vunpack.c.h.b16 %v1122
    %v2527 = vunpack.c.l.b16 %v1123
    %v2528 = vunpack.c.h.b16 %v1123
    %v2529 = vunpack.c.l.b16 %v1124
    %v2530 = vunpack.c.h.b16 %v1124
    %v2531 = vunpack.c.l.b16 %v1125
    %v2532 = vunpack.c.h.b16 %v1125
    %v2533 = vunpack.c.l.b16 %v1126
    %v2534 = vunpack.c.h.b16 %v1126
    %v2535 = vunpack.c.l.b16 %v1127
    %v2536 = vunpack.c.h.b16 %v1127
    %v2537 = vunpack.c.l.b16 %v1128
    %v2538 = vunpack.c.h.b16 %v1128
    %v2539 = vunpack.c.l.b16 %v1129
    %v2540 = vunpack.c.h.b16 %v1129
    %v2541 = vunpack.c.l.b16 %v1130
    %v2542 = vunpack.c.h.b16 %v1130
    %v2543 = vunpack.c.l.b16 %v1131
    %v2544 = vunpack.c.h.b16 %v1131
    %v2545 = vunpack.c.l.b16 %v1132
    %v2546 = vunpack.c.h.b16 %v1132
    %v2547 = vunpack.c.l.b16 %v1133
    %v2548 = vunpack.c.h.b16 %v1133
    %v2549 = vunpack.c.l.b16 %v1134
    %v2550 = vunpack.c.h.b16 %v1134
    %v2551 = vunpack.c.l.b16 %v1135
    %v2552 = vunpack.c.h.b16 %v1135
    %v2553 = vunpack.c.l.b16 %v1136
    %v2554 = vunpack.c.h.b16 %v1136
    %v2555 = vunpack.c.l.b16 %v1137
    %v2556 = vunpack.c.h.b16 %v1137
    %v2557 = vunpack.c.l.b16 %v1138
    %v2558 = vunpack.c.h.b16 %v1138
    %v2559 = vunpack.c.l.b16 %v1139
    %v2560 = vunpack.c.h.b16 %v1139
    %v2561 = vunpack.c.l.b16 %v1140
    %v2562 = vunpack.c.h.b16 %v1140
    %v2563 = vunpack.c.l.b16 %v1141
    %v2564 = vunpack.c.h.b16 %v1141
    %v2565 = vunpack.c.l.b16 %v1142
    %v2566 = vunpack.c.h.b16 %v1142
    %v2567 = vunpack.c.l.b16 %v1143
    %v2568 = vunpack.c.h.b16 %v1143
    %v2569 = vunpack.c.l.b16 %v1144
    %v2570 = vunpack.c.h.b16 %v1144
    %v2571 = vunpack.c.l.b16 %v1145
    %v2572 = vunpack.c.h.b16 %v1145
    %v2573 = vunpack.c.l.b16 %v1146
    %v2574 = vunpack.c.h.b16 %v1146
    %v2575 = vunpack.c.l.b16 %v1147
    %v2576 = vunpack.c.h.b16 %v1147
    %v2577 = vunpack.c.l.b16 %v1148
    %v2578 = vunpack.c.h.b16 %v1148
    %v2579 = vunpack.c.l.b16 %v1149
    %v2580 = vunpack.c.h.b16 %v1149
    %v2581 = vunpack.c.l.b16 %v1150
    %v2582 = vunpack.c.h.b16 %v1150
    %v2583 = vunpack.c.l.b16 %v1151
    %v2584 = vunpack.c.h.b16 %v1151
    %v2585 = vunpack.c.l.b16 %v1152
    %v2586 = vunpack.c.h.b16 %v1152
    %v2587 = vunpack.c.l.b16 %v1153
    %v2588 = vunpack.c.h.b16 %v1153
    %v2589 = vunpack.c.l.b16 %v1154
    %v2590 = vunpack.c.h.b16 %v1154
    %v2591 = vunpack.c.l.b16 %v1155
    %v2592 = vunpack.c.h.b16 %v1155
    %v2593 = vunpack.c.l.b16 %v1156
    %v2594 = vunpack.c.h.b16 %v1156
    %v2595 = vunpack.c.l.b16 %v1157
    %v2596 = vunpack.c.h.b16 %v1157
    %v2597 = vunpack.c.l.b16 %v1158
    %v2598 = vunpack.c.h.b16 %v1158
    %v2599 = vunpack.c.l.b16 %v1159
    %v2600 = vunpack.c.h.b16 %v1159
    %v2601 = vunpack.c.l.b16 %v1160
    %v2602 = vunpack.c.h.b16 %v1160
    %v2603 = vunpack.c.l.b16 %v1161
    %v2604 = vunpack.c.h.b16 %v1161
    %v2605 = vunpack.c.l.b16 %v1162
    %v2606 = vunpack.c.h.b16 %v1162
    %v2607 = vunpack.c.l.b16 %v1163
    %v2608 = vunpack.c.h.b16 %v1163
    %v2609 = vunpack.c.l.b16 %v1164
    %v2610 = vunpack.c.h.b16 %v1164
    %v2611 = vunpack.c.l.b16 %v1165
    %v2612 = vunpack.c.h.b16 %v1165
    %v2613 = vunpack.c.l.b16 %v1166
    %v2614 = vunpack.c.h.b16 %v1166
    %v2615 = vunpack.c.l.b16 %v1167
    %v2616 = vunpack.c.h.b16 %v1167
    %v2617 = vunpack.c.l.b16 %v1168
    %v2618 = vunpack.c.h.b16 %v1168
    %v2619 = vunpack.c.l.b16 %v1169
    %v2620 = vunpack.c.h.b16 %v1169
    %v2621 = vunpack.c.l.b16 %v1170
    %v2622 = vunpack.c.h.b16 %v1170
    %v2623 = vunpack.c.l.b16 %v1171
    %v2624 = vunpack.c.h.b16 %v1171
    %v2625 = vunpack.c.l.b16 %v1172
    %v2626 = vunpack.c.h.b16 %v1172
    %v2627 = vunpack.c.l.b16 %v1173
    %v2628 = vunpack.c.h.b16 %v1173
    %v2629 = vunpack.c.l.b16 %v1174
    %v2630 = vunpack.c.h.b16 %v1174
    %v2631 = vunpack.c.l.b16 %v1175
    %v2632 = vunpack.c.h.b16 %v1175
    %v2633 = vunpack.c.l.b16 %v1176
    %v2634 = vunpack.c.h.b16 %v1176
    %v2635 = vunpack.c.l.b16 %v1177
    %v2636 = vunpack.c.h.b16 %v1177
    %v2637 = vunpack.c.l.b16 %v1178
    %v2638 = vunpack.c.h.b16 %v1178
    %v2639 = vunpack.c.l.b16 %v1179
    %v2640 = vunpack.c.h.b16 %v1179
    %v2641 = vunpack.c.l.b16 %v1180
    %v2642 = vunpack.c.h.b16 %v1180
    %v2643 = vunpack.c.l.b16 %v1181
    %v2644 = vunpack.c.h.b16 %v1181
    %v2645 = vunpack.c.l.b16 %v1182
    %v2646 = vunpack.c.h.b16 %v1182
    %v2647 = vunpack.c.l.b16 %v1183
    %v2648 = vunpack.c.h.b16 %v1183
    %v2649 = vunpack.c.l.b16 %v1184
    %v2650 = vunpack.c.h.b16 %v1184
    %v2651 = vunpack.c.l.b16 %v1185
    %v2652 = vunpack.c.h.b16 %v1185
    %v2653 = vunpack.c.l.b16 %v1186
    %v2654 = vunpack.c.h.b16 %v1186
    %v2655 = vunpack.c.l.b16 %v1187
    %v2656 = vunpack.c.h.b16 %v1187
    %v2657 = vunpack.c.l.b16 %v1188
    %v2658 = vunpack.c.h.b16 %v1188
    %v2659 = vunpack.c.l.b16 %v1189
    %v2660 = vunpack.c.h.b16 %v1189
    %v2661 = vunpack.c.l.b16 %v1190
    %v2662 = vunpack.c.h.b16 %v1190
    %v2663 = vunpack.c.l.b16 %v1191
    %v2664 = vunpack.c.h.b16 %v1191
    %v2665 = vunpack.c.l.b16 %v1192
    %v2666 = vunpack.c.h.b16 %v1192
    %v2667 = vunpack.c.l.b16 %v1193
    %v2668 = vunpack.c.h.b16 %v1193
    %v2669 = vunpack.c.l.b16 %v1194
    %v2670 = vunpack.c.h.b16 %v1194
    %v2671 = vunpack.c.l.b16 %v1195
    %v2672 = vunpack.c.h.b16 %v1195
    %v2673 = vunpack.c.l.b16 %v1196
    %v2674 = vunpack.c.h.b16 %v1196
    %v2675 = vunpack.c.l.b16 %v1197
    %v2676 = vunpack.c.h.b16 %v1197
    %v2677 = vunpack.c.l.b16 %v1198
    %v2678 = vunpack.c.h.b16 %v1198
    %v2679 = vunpack.c.l.b16 %v1199
    %v2680 = vunpack.c.h.b16 %v1199
    %v2681 = vunpack.c.l.b16 %v1200
    %v2682 = vunpack.c.h.b16 %v1200
    %v2683 = vunpack.c.l.b16 %v1201
    %v2684 = vunpack.c.h.b16 %v1201
    %v2685 = vunpack.c.l.b16 %v1202
    %v2686 = vunpack.c.h.b16 %v1202
    %v2687 = vunpack.c.l.b16 %v1203
    %v2688 = vunpack.c.h.b16 %v1203
    %v2689 = vunpack.c.l.b16 %v1204
    %v2690 = vunpack.c.h.b16 %v1204
    %v2691 = vunpack.c.l.b16 %v1205
    %v2692 = vunpack.c.h.b16 %v1205
    %v2693 = vunpack.c.l.b16 %v1206
    %v2694 = vunpack.c.h.b16 %v1206
    %v2695 = vunpack.c.l.b16 %v1207
    %v2696 = vunpack.c.h.b16 %v1207
    %v2697 = vunpack.c.l.b16 %v1208
    %v2698 = vunpack.c.h.b16 %v1208
    %v2699 = vunpack.c.l.b16 %v1209
    %v2700 = vunpack.c.h.b16 %v1209
    %v2701 = vunpack.c.l.b16 %v1210
    %v2702 = vunpack.c.h.b16 %v1210
    %v2703 = vunpack.c.l.b16 %v1211
    %v2704 = vunpack.c.h.b16 %v1211
    %v2705 = vunpack.c.l.b16 %v1212
    %v2706 = vunpack.c.h.b16 %v1212
    %v2707 = vunpack.c.l.b16 %v1213
    %v2708 = vunpack.c.h.b16 %v1213
    %v2709 = vunpack.c.l.b16 %v1214
    %v2710 = vunpack.c.h.b16 %v1214
    %v2711 = vunpack.c.l.b16 %v1215
    %v2712 = vunpack.c.h.b16 %v1215
    %v2713 = vunpack.c.l.b16 %v1216
    %v2714 = vunpack.c.h.b16 %v1216
    %v2715 = vunpack.c.l.b16 %v1217
    %v2716 = vunpack.c.h.b16 %v1217
    %v2717 = vunpack.c.l.b16 %v1218
    %v2718 = vunpack.c.h.b16 %v1218
    %v2719 = vunpack.c.l.b16 %v1219
    %v2720 = vunpack.c.h.b16 %v1219
    %v2721 = vunpack.c.l.b16 %v1220
    %v2722 = vunpack.c.h.b16 %v1220
    %v2723 = vunpack.c.l.b16 %v1221
    %v2724 = vunpack.c.h.b16 %v1221
    %v2725 = vunpack.c.l.b16 %v1222
    %v2726 = vunpack.c.h.b16 %v1222
    %v2727 = vunpack.c.l.b16 %v1223
    %v2728 = vunpack.c.h.b16 %v1223
    %v2729 = vunpack.c.l.b16 %v1224
    %v2730 = vunpack.c.h.b16 %v1224
    %v2731 = vunpack.c.l.b16 %v1225
    %v2732 = vunpack.c.h.b16 %v1225
    %v2733 = vunpack.c.l.b16 %v1226
    %v2734 = vunpack.c.h.b16 %v1226
    %v2735 = vunpack.c.l.b16 %v1227
    %v2736 = vunpack.c.h.b16 %v1227
    %v2737 = vunpack.c.l.b16 %v1228
    %v2738 = vunpack.c.h.b16 %v1228
    %v2739 = vunpack.c.l.b16 %v1229
    %v2740 = vunpack.c.h.b16 %v1229
    %v2741 = vunpack.c.l.b16 %v1230
    %v2742 = vunpack.c.h.b16 %v1230
    %v2743 = vunpack.c.l.b16 %v1231
    %v2744 = vunpack.c.h.b16 %v1231
    %v2745 = vunpack.c.l.b16 %v1232
    %v2746 = vunpack.c.h.b16 %v1232
    %v2747 = vunpack.c.l.b16 %v1233
    %v2748 = vunpack.c.h.b16 %v1233
    %v2749 = vunpack.c.l.b16 %v1234
    %v2750 = vunpack.c.h.b16 %v1234
    %v2751 = vunpack.c.l.b16 %v1235
    %v2752 = vunpack.c.h.b16 %v1235
    %v2753 = vunpack.c.l.b16 %v1236
    %v2754 = vunpack.c.h.b16 %v1236
    %v2755 = vunpack.c.l.b16 %v1237
    %v2756 = vunpack.c.h.b16 %v1237
    %v2757 = vunpack.c.l.b16 %v1238
    %v2758 = vunpack.c.h.b16 %v1238
    %v2759 = vunpack.c.l.b16 %v1239
    %v2760 = vunpack.c.h.b16 %v1239
    %v2761 = vunpack.c.l.b16 %v1240
    %v2762 = vunpack.c.h.b16 %v1240
    %v2763 = vunpack.c.l.b16 %v1241
    %v2764 = vunpack.c.h.b16 %v1241
    %v2765 = vunpack.c.l.b16 %v1242
    %v2766 = vunpack.c.h.b16 %v1242
    %v2767 = vunpack.c.l.b16 %v1243
    %v2768 = vunpack.c.h.b16 %v1243
    %v2769 = vunpack.c.l.b16 %v1244
    %v2770 = vunpack.c.h.b16 %v1244
    %v2771 = vunpack.c.l.b16 %v1245
    %v2772 = vunpack.c.h.b16 %v1245
    %v2773 = vunpack.c.l.b16 %v1246
    %v2774 = vunpack.c.h.b16 %v1246
    %v2775 = vunpack.c.l.b16 %v1247
    %v2776 = vunpack.c.h.b16 %v1247
    %v2777 = vunpack.c.l.b16 %v1248
    %v2778 = vunpack.c.h.b16 %v1248
    %v2779 = vunpack.c.l.b16 %v1249
    %v2780 = vunpack.c.h.b16 %v1249
    %v2781 = vunpack.c.l.b16 %v1250
    %v2782 = vunpack.c.h.b16 %v1250
    %v2783 = vunpack.c.l.b16 %v1251
    %v2784 = vunpack.c.h.b16 %v1251
    %v2785 = vunpack.c.l.b16 %v1252
    %v2786 = vunpack.c.h.b16 %v1252
    %v2787 = vunpack.c.l.b16 %v1253
    %v2788 = vunpack.c.h.b16 %v1253
    %v2789 = vunpack.c.l.b16 %v1254
    %v2790 = vunpack.c.h.b16 %v1254
    %v2791 = vunpack.c.l.b16 %v1255
    %v2792 = vunpack.c.h.b16 %v1255
    %v2793 = vunpack.c.l.b16 %v1256
    %v2794 = vunpack.c.h.b16 %v1256
    %v2795 = vunpack.c.l.b16 %v1257
    %v2796 = vunpack.c.h.b16 %v1257
    %v2797 = vunpack.c.l.b16 %v1258
    %v2798 = vunpack.c.h.b16 %v1258
    %v2799 = vunpack.c.l.b16 %v1259
    %v2800 = vunpack.c.h.b16 %v1259
    %v2801 = vunpack.c.l.b16 %v1260
    %v2802 = vunpack.c.h.b16 %v1260
    %v2803 = vunpack.c.l.b16 %v1261
    %v2804 = vunpack.c.h.b16 %v1261
    %v2805 = vunpack.c.l.b16 %v1262
    %v2806 = vunpack.c.h.b16 %v1262
    %v2807 = vunpack.c.l.b16 %v1263
    %v2808 = vunpack.c.h.b16 %v1263
    %v2809 = vunpack.c.l.b16 %v1264
    %v2810 = vunpack.c.h.b16 %v1264
    %v2811 = vunpack.c.l.b16 %v1265
    %v2812 = vunpack.c.h.b16 %v1265
    %v2813 = vunpack.c.l.b16 %v1266
    %v2814 = vunpack.c.h.b16 %v1266
    %v2815 = vunpack.c.l.b16 %v1267
    %v2816 = vunpack.c.h.b16 %v1267
    %v2817 = vunpack.c.l.b16 %v1268
    %v2818 = vunpack.c.h.b16 %v1268
    %v2819 = vunpack.c.l.b16 %v1269
    %v2820 = vunpack.c.h.b16 %v1269
    %v2821 = vunpack.c.l.b16 %v1270
    %v2822 = vunpack.c.h.b16 %v1270
    %v2823 = vunpack.c.l.b16 %v1271
    %v2824 = vunpack.c.h.b16 %v1271
    %v2825 = vunpack.c.l.b16 %v1272
    %v2826 = vunpack.c.h.b16 %v1272
    %v2827 = vunpack.c.l.b16 %v1273
    %v2828 = vunpack.c.h.b16 %v1273
    %v2829 = vunpack.c.l.b16 %v1274
    %v2830 = vunpack.c.h.b16 %v1274
    %v2831 = vunpack.c.l.b16 %v1275
    %v2832 = vunpack.c.h.b16 %v1275
    %v2833 = vunpack.c.l.b16 %v1276
    %v2834 = vunpack.c.h.b16 %v1276
    %v2835 = vunpack.c.l.b16 %v1277
    %v2836 = vunpack.c.h.b16 %v1277
    %v2837 = vunpack.c.l.b16 %v1278
    %v2838 = vunpack.c.h.b16 %v1278
    %v2839 = vunpack.c.l.b16 %v1279
    %v2840 = vunpack.c.h.b16 %v1279
    %v2841 = vunpack.c.l.b16 %v1280
    %v2842 = vunpack.c.h.b16 %v1280
    %v2843 = vunpack.c.l.b16 %v1281
    %v2844 = vunpack.c.h.b16 %v1281
    %v2845 = vunpack.c.l.b16 %v1282
    %v2846 = vunpack.c.h.b16 %v1282
    %v2847 = vunpack.c.l.b16 %v1283
    %v2848 = vunpack.c.h.b16 %v1283
    %v2849 = vunpack.c.l.b16 %v1284
    %v2850 = vunpack.c.h.b16 %v1284
    %v2851 = vunpack.c.l.b16 %v1285
    %v2852 = vunpack.c.h.b16 %v1285
    %v2853 = vunpack.c.l.b16 %v1286
    %v2854 = vunpack.c.h.b16 %v1286
    %v2855 = vunpack.c.l.b16 %v1287
    %v2856 = vunpack.c.h.b16 %v1287
    %v2857 = vunpack.c.l.b16 %v1288
    %v2858 = vunpack.c.h.b16 %v1288
    %v2859 = vunpack.c.l.b16 %v1289
    %v2860 = vunpack.c.h.b16 %v1289
    %v2861 = vunpack.c.l.b16 %v1290
    %v2862 = vunpack.c.h.b16 %v1290
    %v2863 = vunpack.c.l.b16 %v1291
    %v2864 = vunpack.c.h.b16 %v1291
    %v2865 = vunpack.c.l.b16 %v1292
    %v2866 = vunpack.c.h.b16 %v1292
    %v2867 = vunpack.c.l.b16 %v1293
    %v2868 = vunpack.c.h.b16 %v1293
    %v2869 = vunpack.c.l.b16 %v1294
    %v2870 = vunpack.c.h.b16 %v1294
    %v2871 = vunpack.c.l.b16 %v1295
    %v2872 = vunpack.c.h.b16 %v1295
    %v2873 = vunpack.c.l.b16 %v1296
    %v2874 = vunpack.c.h.b16 %v1296
    %v2875 = vpack.c.b16 %v1859, %v1851
    %v2876 = vpack.c.b16 %v1860, %v1852
    %v2877 = vpack.c.b16 %v1861, %v1853
    %v2878 = vpack.c.b16 %v1862, %v1854
    %v2879 = vpack.c.b16 %v1863, %v1855
    %v2880 = vpack.c.b16 %v1864, %v1856
    %v2881 = vpack.c.b16 %v1865, %v1857
    %v2882 = vpack.c.b16 %v1866, %v1858
    %v2883 = vpack.c.b16 %v1875, %v1867
    %v2884 = vpack.c.b16 %v1876, %v1868
    %v2885 = vpack.c.b16 %v1877, %v1869
    %v2886 = vpack.c.b16 %v1878, %v1870
    %v2887 = vpack.c.b16 %v1879, %v1871
    %v2888 = vpack.c.b16 %v1880, %v1872
    %v2889 = vpack.c.b16 %v1881, %v1873
    %v2890 = vpack.c.b16 %v1882, %v1874
    %v2891 = vpack.c.b16 %v1891, %v1883
    %v2892 = vpack.c.b16 %v1892, %v1884
    %v2893 = vpack.c.b16 %v1893, %v1885
    %v2894 = vpack.c.b16 %v1894, %v1886
    %v2895 = vpack.c.b16 %v1895, %v1887
    %v2896 = vpack.c.b16 %v1896, %v1888
    %v2897 = vpack.c.b16 %v1897, %v1889
    %v2898 = vpack.c.b16 %v1898, %v1890
    %v2899 = vpack.c.b16 %v1907, %v1899
    %v2900 = vpack.c.b16 %v1908, %v1900
    %v2901 = vpack.c.b16 %v1909, %v1901
    %v2902 = vpack.c.b16 %v1910, %v1902
    %v2903 = vpack.c.b16 %v1911, %v1903
    %v2904 = vpack.c.b16 %v1912, %v1904
    %v2905 = vpack.c.b16 %v1913, %v1905
    %v2906 = vpack.c.b16 %v1914, %v1906
    %v2907 = vpack.c.b16 %v1923, %v1915
    %v2908 = vpack.c.b16 %v1924, %v1916
    %v2909 = vpack.c.b16 %v1925, %v1917
    %v2910 = vpack.c.b16 %v1926, %v1918
    %v2911 = vpack.c.b16 %v1927, %v1919
    %v2912 = vpack.c.b16 %v1928, %v1920
    %v2913 = vpack.c.b16 %v1929, %v1921
    %v2914 = vpack.c.b16 %v1930, %v1922
    %v2915 = vpack.c.b16 %v1939, %v1931
    %v2916 = vpack.c.b16 %v1940, %v1932
    %v2917 = vpack.c.b16 %v1941, %v1933
    %v2918 = vpack.c.b16 %v1942, %v1934
    %v2919 = vpack.c.b16 %v1943, %v1935
    %v2920 = vpack.c.b16 %v1944, %v1936
    %v2921 = vpack.c.b16 %v1945, %v1937
    %v2922 = vpack.c.b16 %v1946, %v1938
    %v2923 = vpack.c.b16 %v1955, %v1947
    %v2924 = vpack.c.b16 %v1956, %v1948
    %v2925 = vpack.c.b16 %v1957, %v1949
    %v2926 = vpack.c.b16 %v1958, %v1950
    %v2927 = vpack.c.b16 %v1959, %v1951
    %v2928 = vpack.c.b16 %v1960, %v1952
    %v2929 = vpack.c.b16 %v1961, %v1953
    %v2930 = vpack.c.b16 %v1962, %v1954
    %v2931 = vpack.c.b16 %v1971, %v1963
    %v2932 = vpack.c.b16 %v1972, %v1964
    %v2933 = vpack.c.b16 %v1973, %v1965
    %v2934 = vpack.c.b16 %v1974, %v1966
    %v2935 = vpack.c.b16 %v1975, %v1967
    %v2936 = vpack.c.b16 %v1976, %v1968
    %v2937 = vpack.c.b16 %v1977, %v1969
    %v2938 = vpack.c.b16 %v1978, %v1970
    %v2939 = vpack.c.b16 %v1987, %v1979
    %v2940 = vpack.c.b16 %v1988, %v1980
    %v2941 = vpack.c.b16 %v1989, %v1981
    %v2942 = vpack.c.b16 %v1990, %v1982
    %v2943 = vpack.c.b16 %v1991, %v1983
    %v2944 = vpack.c.b16 %v1992, %v1984
    %v2945 = vpack.c.b16 %v1993, %v1985
    %v2946 = vpack.c.b16 %v1994, %v1986
    %v2947 = vpack.c.b16 %v2003, %v1995
    %v2948 = vpack.c.b16 %v2004, %v1996
    %v2949 = vpack.c.b16 %v2005, %v1997
    %v2950 = vpack.c.b16 %v2006, %v1998
    %v2951 = vpack.c.b16 %v2007, %v1999
    %v2952 = vpack.c.b16 %v2008, %v2000
    %v2953 = vpack.c.b16 %v2009, %v2001
    %v2954 = vpack.c.b16 %v2010, %v2002
    %v2955 = vpack.c.b16 %v2019, %v2011
    %v2956 = vpack.c.b16 %v2020, %v2012
    %v2957 = vpack.c.b16 %v2021, %v2013
    %v2958 = vpack.c.b16 %v2022, %v2014
    %v2959 = vpack.c.b16 %v2023, %v2015
    %v2960 = vpack.c.b16 %v2024, %v2016
    %v2961 = vpack.c.b16 %v2025, %v2017
    %v2962 = vpack.c.b16 %v2026, %v2018
    %v2963 = vpack.c.b16 %v2035, %v2027
    %v2964 = vpack.c.b16 %v2036, %v2028
    %v2965 = vpack.c.b16 %v2037, %v2029
    %v2966 = vpack.c.b16 %v2038, %v2030
    %v2967 = vpack.c.b16 %v2039, %v2031
    %v2968 = vpack.c.b16 %v2040, %v2032
    %v2969 = vpack.c.b16 %v2041, %v2033
    %v2970 = vpack.c.b16 %v2042, %v2034
    %v2971 = vpack.c.b16 %v2051, %v2043
    %v2972 = vpack.c.b16 %v2052, %v2044
    %v2973 = vpack.c.b16 %v2053, %v2045
    %v2974 = vpack.c.b16 %v2054, %v2046
    %v2975 = vpack.c.b16 %v2055, %v2047
    %v2976 = vpack.c.b16 %v2056, %v2048
    %v2977 = vpack.c.b16 %v2057, %v2049
    %v2978 = vpack.c.b16 %v2058, %v2050
    %v2979 = vpack.c.b16 %v2067, %v2059
    %v2980 = vpack.c.b16 %v2068, %v2060
    %v2981 = vpack.c.b16 %v2069, %v2061
    %v2982 = vpack.c.b16 %v2070, %v2062
    %v2983 = vpack.c.b16 %v2071, %v2063
    %v2984 = vpack.c.b16 %v2072, %v2064
    %v2985 = vpack.c.b16 %v2073, %v2065
    %v2986 = vpack.c.b16 %v2074, %v2066
    %v2987 = vpack.c.b16 %v2083, %v2075
    %v2988 = vpack.c.b16 %v2084, %v2076
    %v2989 = vpack.c.b16 %v2085, %v2077
    %v2990 = vpack.c.b16 %v2086, %v2078
    %v2991 = vpack.c.b16 %v2087, %v2079
    %v2992 = vpack.c.b16 %v2088, %v2080
    %v2993 = vpack.c.b16 %v2089, %v2081
    %v2994 = vpack.c.b16 %v2090, %v2082
    %v2995 = vpack.c.b16 %v2099, %v2091
    %v2996 = vpack.c.b16 %v2100, %v2092
    %v2997 = vpack.c.b16 %v2101, %v2093
    %v2998 = vpack.c.b16 %v2102, %v2094
    %v2999 = vpack.c.b16 %v2103, %v2095
    %v3000 = vpack.c.b16 %v2104, %v2096
    %v3001 = vpack.c.b16 %v2105, %v2097
    %v3002 = vpack.c.b16 %v2106, %v2098
    %v3003 = vpack.c.b16 %v2115, %v2107
    %v3004 = vpack.c.b16 %v2116, %v2108
    %v3005 = vpack.c.b16 %v2117, %v2109
    %v3006 = vpack.c.b16 %v2118, %v2110
    %v3007 = vpack.c.b16 %v2119, %v2111
    %v3008 = vpack.c.b16 %v2120, %v2112
    %v3009 = vpack.c.b16 %v2121, %v2113
    %v3010 = vpack.c.b16 %v2122, %v2114
    %v3011 = vpack.c.b16 %v2131, %v2123
    %v3012 = vpack.c.b16 %v2132, %v2124
    %v3013 = vpack.c.b16 %v2133, %v2125
    %v3014 = vpack.c.b16 %v2134, %v2126
    %v3015 = vpack.c.b16 %v2135, %v2127
    %v3016 = vpack.c.b16 %v2136, %v2128
    %v3017 = vpack.c.b16 %v2137, %v2129
    %v3018 = vpack.c.b16 %v2138, %v2130
    %v3019 = vpack.c.b16 %v2147, %v2139
    %v3020 = vpack.c.b16 %v2148, %v2140
    %v3021 = vpack.c.b16 %v2149, %v2141
    %v3022 = vpack.c.b16 %v2150, %v2142
    %v3023 = vpack.c.b16 %v2151, %v2143
    %v3024 = vpack.c.b16 %v2152, %v2144
    %v3025 = vpack.c.b16 %v2153, %v2145
    %v3026 = vpack.c.b16 %v2154, %v2146
    %v3027 = vpack.c.b16 %v2163, %v2155
    %v3028 = vpack.c.b16 %v2164, %v2156
    %v3029 = vpack.c.b16 %v2165, %v2157
    %v3030 = vpack.c.b16 %v2166, %v2158
    %v3031 = vpack.c.b16 %v2167, %v2159
    %v3032 = vpack.c.b16 %v2168, %v2160
    %v3033 = vpack.c.b16 %v2169, %v2161
    %v3034 = vpack.c.b16 %v2170, %v2162
    %v3035 = vpack.c.b16 %v2179, %v2171
    %v3036 = vpack.c.b16 %v2180, %v2172
    %v3037 = vpack.c.b16 %v2181, %v2173
    %v3038 = vpack.c.b16 %v2182, %v2174
    %v3039 = vpack.c.b16 %v2183, %v2175
    %v3040 = vpack.c.b16 %v2184, %v2176
    %v3041 = vpack.c.b16 %v2185, %v2177
    %v3042 = vpack.c.b16 %v2186, %v2178
    %v3043 = vpack.c.b16 %v2195, %v2187
    %v3044 = vpack.c.b16 %v2196, %v2188
    %v3045 = vpack.c.b16 %v2197, %v2189
    %v3046 = vpack.c.b16 %v2198, %v2190
    %v3047 = vpack.c.b16 %v2199, %v2191
    %v3048 = vpack.c.b16 %v2200, %v2192
    %v3049 = vpack.c.b16 %v2201, %v2193
    %v3050 = vpack.c.b16 %v2202, %v2194
    %v3051 = vpack.c.b16 %v2211, %v2203
    %v3052 = vpack.c.b16 %v2212, %v2204
    %v3053 = vpack.c.b16 %v2213, %v2205
    %v3054 = vpack.c.b16 %v2214, %v2206
    %v3055 = vpack.c.b16 %v2215, %v2207
    %v3056 = vpack.c.b16 %v2216, %v2208
    %v3057 = vpack.c.b16 %v2217, %v2209
    %v3058 = vpack.c.b16 %v2218, %v2210
    %v3059 = vpack.c.b16 %v2227, %v2219
    %v3060 = vpack.c.b16 %v2228, %v2220
    %v3061 = vpack.c.b16 %v2229, %v2221
    %v3062 = vpack.c.b16 %v2230, %v2222
    %v3063 = vpack.c.b16 %v2231, %v2223
    %v3064 = vpack.c.b16 %v2232, %v2224
    %v3065 = vpack.c.b16 %v2233, %v2225
    %v3066 = vpack.c.b16 %v2234, %v2226
    %v3067 = vpack.c.b16 %v2243, %v2235
    %v3068 = vpack.c.b16 %v2244, %v2236
    %v3069 = vpack.c.b16 %v2245, %v2237
    %v3070 = vpack.c.b16 %v2246, %v2238
    %v3071 = vpack.c.b16 %v2247, %v2239
    %v3072 = vpack.c.b16 %v2248, %v2240
    %v3073 = vpack.c.b16 %v2249, %v2241
    %v3074 = vpack.c.b16 %v2250, %v2242
    %v3075 = vpack.c.b16 %v2259, %v2251
    %v3076 = vpack.c.b16 %v2260, %v2252
    %v3077 = vpack.c.b16 %v2261, %v2253
    %v3078 = vpack.c.b16 %v2262, %v2254
    %v3079 = vpack.c.b16 %v2263, %v2255
    %v3080 = vpack.c.b16 %v2264, %v2256
    %v3081 = vpack.c.b16 %v2265, %v2257
    %v3082 = vpack.c.b16 %v2266, %v2258
    %v3083 = vpack.c.b16 %v2275, %v2267
    %v3084 = vpack.c.b16 %v2276, %v2268
    %v3085 = vpack.c.b16 %v2277, %v2269
    %v3086 = vpack.c.b16 %v2278, %v2270
    %v3087 = vpack.c.b16 %v2279, %v2271
    %v3088 = vpack.c.b16 %v2280, %v2272
    %v3089 = vpack.c.b16 %v2281, %v2273
    %v3090 = vpack.c.b16 %v2282, %v2274
    %v3091 = vpack.c.b16 %v2291, %v2283
    %v3092 = vpack.c.b16 %v2292, %v2284
    %v3093 = vpack.c.b16 %v2293, %v2285
    %v3094 = vpack.c.b16 %v2294, %v2286
    %v3095 = vpack.c.b16 %v2295, %v2287
    %v3096 = vpack.c.b16 %v2296, %v2288
    %v3097 = vpack.c.b16 %v2297, %v2289
    %v3098 = vpack.c.b16 %v2298, %v2290
    %v3099 = vpack.c.b16 %v2307, %v2299
    %v3100 = vpack.c.b16 %v2308, %v2300
    %v3101 = vpack.c.b16 %v2309, %v2301
    %v3102 = vpack.c.b16 %v2310, %v2302
    %v3103 = vpack.c.b16 %v2311, %v2303
    %v3104 = vpack.c.b16 %v2312, %v2304
    %v3105 = vpack.c.b16 %v2313, %v2305
    %v3106 = vpack.c.b16 %v2314, %v2306
    %v3107 = vpack.c.b16 %v2323, %v2315
    %v3108 = vpack.c.b16 %v2324, %v2316
    %v3109 = vpack.c.b16 %v2325, %v2317
    %v3110 = vpack.c.b16 %v2326, %v2318
    %v3111 = vpack.c.b16 %v2327, %v2319
    %v3112 = vpack.c.b16 %v2328, %v2320
    %v3113 = vpack.c.b16 %v2329, %v2321
    %v3114 = vpack.c.b16 %v2330, %v2322
    %v3115 = vpack.c.b16 %v2339, %v2331
    %v3116 = vpack.c.b16 %v2340, %v2332
    %v3117 = vpack.c.b16 %v2341, %v2333
    %v3118 = vpack.c.b16 %v2342, %v2334
    %v3119 = vpack.c.b16 %v2343, %v2335
    %v3120 = vpack.c.b16 %v2344, %v2336
    %v3121 = vpack.c.b16 %v2345, %v2337
    %v3122 = vpack.c.b16 %v2346, %v2338
    %v3123 = vpack.c.b16 %v2355, %v2347
    %v3124 = vpack.c.b16 %v2356, %v2348
    %v3125 = vpack.c.b16 %v2357, %v2349
    %v3126 = vpack.c.b16 %v2358, %v2350
    %v3127 = vpack.c.b16 %v2359, %v2351
    %v3128 = vpack.c.b16 %v2360, %v2352
    %v3129 = vpack.c.b16 %v2361, %v2353
    %v3130 = vpack.c.b16 %v2362, %v2354
    %v3131 = vpack.c.b16 %v2371, %v2363
    %v3132 = vpack.c.b16 %v2372, %v2364
    %v3133 = vpack.c.b16 %v2373, %v2365
    %v3134 = vpack.c.b16 %v2374, %v2366
    %v3135 = vpack.c.b16 %v2375, %v2367
    %v3136 = vpack.c.b16 %v2376, %v2368
    %v3137 = vpack.c.b16 %v2377, %v2369
    %v3138 = vpack.c.b16 %v2378, %v2370
    %v3139 = vpack.c.b16 %v2387, %v2379
    %v3140 = vpack.c.b16 %v2388, %v2380
    %v3141 = vpack.c.b16 %v2389, %v2381
    %v3142 = vpack.c.b16 %v2390, %v2382
    %v3143 = vpack.c.b16 %v2391, %v2383
    %v3144 = vpack.c.b16 %v2392, %v2384
    %v3145 = vpack.c.b16 %v2393, %v2385
    %v3146 = vpack.c.b16 %v2394, %v2386
    %v3147 = vpack.c.b16 %v2403, %v2395
    %v3148 = vpack.c.b16 %v2404, %v2396
    %v3149 = vpack.c.b16 %v2405, %v2397
    %v3150 = vpack.c.b16 %v2406, %v2398
    %v3151 = vpack.c.b16 %v2407, %v2399
    %v3152 = vpack.c.b16 %v2408, %v2400
    %v3153 = vpack.c.b16 %v2409, %v2401
    %v3154 = vpack.c.b16 %v2410, %v2402
    %v3155 = vpack.c.b16 %v2419, %v2411
    %v3156 = vpack.c.b16 %v2420, %v2412
    %v3157 = vpack.c.b16 %v2421, %v2413
    %v3158 = vpack.c.b16 %v2422, %v2414
    %v3159 = vpack.c.b16 %v2423, %v2415
    %v3160 = vpack.c.b16 %v2424, %v2416
    %v3161 = vpack.c.b16 %v2425, %v2417
    %v3162 = vpack.c.b16 %v2426, %v2418
    %v3163 = vpack.c.b16 %v2435, %v2427
    %v3164 = vpack.c.b16 %v2436, %v2428
    %v3165 = vpack.c.b16 %v2437, %v2429
    %v3166 = vpack.c.b16 %v2438, %v2430
    %v3167 = vpack.c.b16 %v2439, %v2431
    %v3168 = vpack.c.b16 %v2440, %v2432
    %v3169 = vpack.c.b16 %v2441, %v2433
    %v3170 = vpack.c.b16 %v2442, %v2434
    %v3171 = vpack.c.b16 %v2451, %v2443
    %v3172 = vpack.c.b16 %v2452, %v2444
    %v3173 = vpack.c.b16 %v2453, %v2445
    %v3174 = vpack.c.b16 %v2454, %v2446
    %v3175 = vpack.c.b16 %v2455, %v2447
    %v3176 = vpack.c.b16 %v2456, %v2448
    %v3177 = vpack.c.b16 %v2457, %v2449
    %v3178 = vpack.c.b16 %v2458, %v2450
    %v3179 = vpack.c.b16 %v2467, %v2459
    %v3180 = vpack.c.b16 %v2468, %v2460
    %v3181 = vpack.c.b16 %v2469, %v2461
    %v3182 = vpack.c.b16 %v2470, %v2462
    %v3183 = vpack.c.b16 %v2471, %v2463
    %v3184 = vpack.c.b16 %v2472, %v2464
    %v3185 = vpack.c.b16 %v2473, %v2465
    %v3186 = vpack.c.b16 %v2474, %v2466
    %v3187 = vpack.c.b16 %v2483, %v2475
    %v3188 = vpack.c.b16 %v2484, %v2476
    %v3189 = vpack.c.b16 %v2485, %v2477
    %v3190 = vpack.c.b16 %v2486, %v2478
    %v3191 = vpack.c.b16 %v2487, %v2479
    %v3192 = vpack.c.b16 %v2488, %v2480
    %v3193 = vpack.c.b16 %v2489, %v2481
    %v3194 = vpack.c.b16 %v2490, %v2482
    %v3195 = vpack.c.b16 %v2499, %v2491
    %v3196 = vpack.c.b16 %v2500, %v2492
    %v3197 = vpack.c.b16 %v2501, %v2493
    %v3198 = vpack.c.b16 %v2502, %v2494
    %v3199 = vpack.c.b16 %v2503, %v2495
    %v3200 = vpack.c.b16 %v2504, %v2496
    %v3201 = vpack.c.b16 %v2505, %v2497
    %v3202 = vpack.c.b16 %v2506, %v2498
    %v3203 = vpack.c.b16 %v2515, %v2507
    %v3204 = vpack.c.b16 %v2516, %v2508
    %v3205 = vpack.c.b16 %v2517, %v2509
    %v3206 = vpack.c.b16 %v2518, %v2510
    %v3207 = vpack.c.b16 %v2519, %v2511
    %v3208 = vpack.c.b16 %v2520, %v2512
    %v3209 = vpack.c.b16 %v2521, %v2513
    %v3210 = vpack.c.b16 %v2522, %v2514
    %v3211 = vpack.c.b16 %v2531, %v2523
    %v3212 = vpack.c.b16 %v2532, %v2524
    %v3213 = vpack.c.b16 %v2533, %v2525
    %v3214 = vpack.c.b16 %v2534, %v2526
    %v3215 = vpack.c.b16 %v2535, %v2527
    %v3216 = vpack.c.b16 %v2536, %v2528
    %v3217 = vpack.c.b16 %v2537, %v2529
    %v3218 = vpack.c.b16 %v2538, %v2530
    %v3219 = vpack.c.b16 %v2547, %v2539
    %v3220 = vpack.c.b16 %v2548, %v2540
    %v3221 = vpack.c.b16 %v2549, %v2541
    %v3222 = vpack.c.b16 %v2550, %v2542
    %v3223 = vpack.c.b16 %v2551, %v2543
    %v3224 = vpack.c.b16 %v2552, %v2544
    %v3225 = vpack.c.b16 %v2553, %v2545
    %v3226 = vpack.c.b16 %v2554, %v2546
    %v3227 = vpack.c.b16 %v2563, %v2555
    %v3228 = vpack.c.b16 %v2564, %v2556
    %v3229 = vpack.c.b16 %v2565, %v2557
    %v3230 = vpack.c.b16 %v2566, %v2558
    %v3231 = vpack.c.b16 %v2567, %v2559
    %v3232 = vpack.c.b16 %v2568, %v2560
    %v3233 = vpack.c.b16 %v2569, %v2561
    %v3234 = vpack.c.b16 %v2570, %v2562
    %v3235 = vpack.c.b16 %v2579, %v2571
    %v3236 = vpack.c.b16 %v2580, %v2572
    %v3237 = vpack.c.b16 %v2581, %v2573
    %v3238 = vpack.c.b16 %v2582, %v2574
    %v3239 = vpack.c.b16 %v2583, %v2575
    %v3240 = vpack.c.b16 %v2584, %v2576
    %v3241 = vpack.c.b16 %v2585, %v2577
    %v3242 = vpack.c.b16 %v2586, %v2578
    %v3243 = vpack.c.b16 %v2595, %v2587
    %v3244 = vpack.c.b16 %v2596, %v2588
    %v3245 = vpack.c.b16 %v2597, %v2589
    %v3246 = vpack.c.b16 %v2598, %v2590
    %v3247 = vpack.c.b16 %v2599, %v2591
    %v3248 = vpack.c.b16 %v2600, %v2592
    %v3249 = vpack.c.b16 %v2601, %v2593
    %v3250 = vpack.c.b16 %v2602, %v2594
    %v3251 = vpack.c.b16 %v2611, %v2603
    %v3252 = vpack.c.b16 %v2612, %v2604
    %v3253 = vpack.c.b16 %v2613, %v2605
    %v3254 = vpack.c.b16 %v2614, %v2606
    %v3255 = vpack.c.b16 %v2615, %v2607
    %v3256 = vpack.c.b16 %v2616, %v2608
    %v3257 = vpack.c.b16 %v2617, %v2609
    %v3258 = vpack.c.b16 %v2618, %v2610
    %v3259 = vpack.c.b16 %v2627, %v2619
    %v3260 = vpack.c.b16 %v2628, %v2620
    %v3261 = vpack.c.b16 %v2629, %v2621
    %v3262 = vpack.c.b16 %v2630, %v2622
    %v3263 = vpack.c.b16 %v2631, %v2623
    %v3264 = vpack.c.b16 %v2632, %v2624
    %v3265 = vpack.c.b16 %v2633, %v2625
    %v3266 = vpack.c.b16 %v2634, %v2626
    %v3267 = vpack.c.b16 %v2643, %v2635
    %v3268 = vpack.c.b16 %v2644, %v2636
    %v3269 = vpack.c.b16 %v2645, %v2637
    %v3270 = vpack.c.b16 %v2646, %v2638
    %v3271 = vpack.c.b16 %v2647, %v2639
    %v3272 = vpack.c.b16 %v2648, %v2640
    %v3273 = vpack.c.b16 %v2649, %v2641
    %v3274 = vpack.c.b16 %v2650, %v2642
    %v3275 = vpack.c.b16 %v2659, %v2651
    %v3276 = vpack.c.b16 %v2660, %v2652
    %v3277 = vpack.c.b16 %v2661, %v2653
    %v3278 = vpack.c.b16 %v2662, %v2654
    %v3279 = vpack.c.b16 %v2663, %v2655
    %v3280 = vpack.c.b16 %v2664, %v2656
    %v3281 = vpack.c.b16 %v2665, %v2657
    %v3282 = vpack.c.b16 %v2666, %v2658
    %v3283 = vpack.c.b16 %v2675, %v2667
    %v3284 = vpack.c.b16 %v2676, %v2668
    %v3285 = vpack.c.b16 %v2677, %v2669
    %v3286 = vpack.c.b16 %v2678, %v2670
    %v3287 = vpack.c.b16 %v2679, %v2671
    %v3288 = vpack.c.b16 %v2680, %v2672
    %v3289 = vpack.c.b16 %v2681, %v2673
    %v3290 = vpack.c.b16 %v2682, %v2674
    %v3291 = vpack.c.b16 %v2691, %v2683
    %v3292 = vpack.c.b16 %v2692, %v2684
    %v3293 = vpack.c.b16 %v2693, %v2685
    %v3294 = vpack.c.b16 %v2694, %v2686
    %v3295 = vpack.c.b16 %v2695, %v2687
    %v3296 = vpack.c.b16 %v2696, %v2688
    %v3297 = vpack.c.b16 %v2697, %v2689
    %v3298 = vpack.c.b16 %v2698, %v2690
    %v3299 = vpack.c.b16 %v2707, %v2699
    %v3300 = vpack.c.b16 %v2708, %v2700
    %v3301 = vpack.c.b16 %v2709, %v2701
    %v3302 = vpack.c.b16 %v2710, %v2702
    %v3303 = vpack.c.b16 %v2711, %v2703
    %v3304 = vpack.c.b16 %v2712, %v2704
    %v3305 = vpack.c.b16 %v2713, %v2705
    %v3306 = vpack.c.b16 %v2714, %v2706
    %v3307 = vpack.c.b16 %v2723, %v2715
    %v3308 = vpack.c.b16 %v2724, %v2716
    %v3309 = vpack.c.b16 %v2725, %v2717
    %v3310 = vpack.c.b16 %v2726, %v2718
    %v3311 = vpack.c.b16 %v2727, %v2719
    %v3312 = vpack.c.b16 %v2728, %v2720
    %v3313 = vpack.c.b16 %v2729, %v2721
    %v3314 = vpack.c.b16 %v2730, %v2722
    %v3315 = vpack.c.b16 %v2739, %v2731
    %v3316 = vpack.c.b16 %v2740, %v2732
    %v3317 = vpack.c.b16 %v2741, %v2733
    %v3318 = vpack.c.b16 %v2742, %v2734
    %v3319 = vpack.c.b16 %v2743, %v2735
    %v3320 = vpack.c.b16 %v2744, %v2736
    %v3321 = vpack.c.b16 %v2745, %v2737
    %v3322 = vpack.c.b16 %v2746, %v2738
    %v3323 = vpack.c.b16 %v2755, %v2747
    %v3324 = vpack.c.b16 %v2756, %v2748
    %v3325 = vpack.c.b16 %v2757, %v2749
    %v3326 = vpack.c.b16 %v2758, %v2750
    %v3327 = vpack.c.b16 %v2759, %v2751
    %v3328 = vpack.c.b16 %v2760, %v2752
    %v3329 = vpack.c.b16 %v2761, %v2753
    %v3330 = vpack.c.b16 %v2762, %v2754
    %v3331 = vpack.c.b16 %v2771, %v2763
    %v3332 = vpack.c.b16 %v2772, %v2764
    %v3333 = vpack.c.b16 %v2773, %v2765
    %v3334 = vpack.c.b16 %v2774, %v2766
    %v3335 = vpack.c.b16 %v2775, %v2767
    %v3336 = vpack.c.b16 %v2776, %v2768
    %v3337 = vpack.c.b16 %v2777, %v2769
    %v3338 = vpack.c.b16 %v2778, %v2770
    %v3339 = vpack.c.b16 %v2787, %v2779
    %v3340 = vpack.c.b16 %v2788, %v2780
    %v3341 = vpack.c.b16 %v2789, %v2781
    %v3342 = vpack.c.b16 %v2790, %v2782
    %v3343 = vpack.c.b16 %v2791, %v2783
    %v3344 = vpack.c.b16 %v2792, %v2784
    %v3345 = vpack.c.b16 %v2793, %v2785
    %v3346 = vpack.c.b16 %v2794, %v2786
    %v3347 = vpack.c.b16 %v2803, %v2795
    %v3348 = vpack.c.b16 %v2804, %v2796
    %v3349 = vpack.c.b16 %v2805, %v2797
    %v3350 = vpack.c.b16 %v2806, %v2798
    %v3351 = vpack.c.b16 %v2807, %v2799
    %v3352 = vpack.c.b16 %v2808, %v2800
    %v3353 = vpack.c.b16 %v2809, %v2801
    %v3354 = vpack.c.b16 %v2810, %v2802
    %v3355 = vpack.c.b16 %v2819, %v2811
    %v3356 = vpack.c.b16 %v2820, %v2812
    %v3357 = vpack.c.b16 %v2821, %v2813
    %v3358 = vpack.c.b16 %v2822, %v2814
    %v3359 = vpack.c.b16 %v2823, %v2815
    %v3360 = vpack.c.b16 %v2824, %v2816
    %v3361 = vpack.c.b16 %v2825, %v2817
    %v3362 = vpack.c.b16 %v2826, %v2818
    %v3363 = vpack.c.b16 %v2835, %v2827
    %v3364 = vpack.c.b16 %v2836, %v2828
    %v3365 = vpack.c.b16 %v2837, %v2829
    %v3366 = vpack.c.b16 %v2838, %v2830
    %v3367 = vpack.c.b16 %v2839, %v2831
    %v3368 = vpack.c.b16 %v2840, %v2832
    %v3369 = vpack.c.b16 %v2841, %v2833
    %v3370 = vpack.c.b16 %v2842, %v2834
    %v3371 = vpack.c.b16 %v2851, %v2843
    %v3372 = vpack.c.b16 %v2852, %v2844
    %v3373 = vpack.c.b16 %v2853, %v2845
    %v3374 = vpack.c.b16 %v2854, %v2846
    %v3375 = vpack.c.b16 %v2855, %v2847
    %v3376 = vpack.c.b16 %v2856, %v2848
    %v3377 = vpack.c.b16 %v2857, %v2849
    %v3378 = vpack.c.b16 %v2858, %v2850
    %v3379 = vpack.c.b16 %v2867, %v2859
    %v3380 = vpack.c.b16 %v2868, %v2860
    %v3381 = vpack.c.b16 %v2869, %v2861
    %v3382 = vpack.c.b16 %v2870, %v2862
    %v3383 = vpack.c.b16 %v2871, %v2863
    %v3384 = vpack.c.b16 %v2872, %v2864
    %v3385 = vpack.c.b16 %v2873, %v2865
    %v3386 = vpack.c.b16 %v2874, %v2866
    %3899 = vmatprep.subr.bf16.mxu0 %v2876
    %3900 = vmatpush1.bf16.msra.mxu0 %v2875
    %3901 = vmatprep.subr.bf16.mxu0 %v2884
    %3902 = vmatpush1.bf16.msra.mxu0 %v2883
    %3903 = vmatprep.subr.bf16.mxu0 %v2892
    %3904 = vmatpush1.bf16.msra.mxu0 %v2891
    %3905 = vmatprep.subr.bf16.mxu0 %v2900
    %3906 = vmatpush1.bf16.msra.mxu0 %v2899
    %3907 = vmatprep.subr.bf16.mxu0 %v2908
    %3908 = vmatpush1.bf16.msra.mxu0 %v2907
    %3909 = vmatprep.subr.bf16.mxu0 %v2916
    %3910 = vmatpush1.bf16.msra.mxu0 %v2915
    %3911 = vmatprep.subr.bf16.mxu0 %v2924
    %3912 = vmatpush1.bf16.msra.mxu0 %v2923
    %3913 = vmatprep.subr.bf16.mxu0 %v2932
    %3914 = vmatpush1.bf16.msra.mxu0 %v2931
    %3915 = vmatprep.subr.bf16.mxu0 %v2940
    %3916 = vmatpush1.bf16.msra.mxu0 %v2939
    %3917 = vmatprep.subr.bf16.mxu0 %v2948
    %3918 = vmatpush1.bf16.msra.mxu0 %v2947
    %3919 = vmatprep.subr.bf16.mxu0 %v2956
    %3920 = vmatpush1.bf16.msra.mxu0 %v2955
    %3921 = vmatprep.subr.bf16.mxu0 %v2964
    %3922 = vmatpush1.bf16.msra.mxu0 %v2963
    %3923 = vmatprep.subr.bf16.mxu0 %v2972
    %3924 = vmatpush1.bf16.msra.mxu0 %v2971
    %3925 = vmatprep.subr.bf16.mxu0 %v2980
    %3926 = vmatpush1.bf16.msra.mxu0 %v2979
    %3927 = vmatprep.subr.bf16.mxu0 %v2988
    %3928 = vmatpush1.bf16.msra.mxu0 %v2987
    %3929 = vmatprep.subr.bf16.mxu0 %v2996
    %3930 = vmatpush1.bf16.msra.mxu0 %v2995
    %3931 = vmatprep.mubr.bf16.mxu0 %v778
    %3932 = vmatmul.mubr.bf16.gmra.mrb[0].mxu0 %v777
    %v3933 = vpop.f32.mrb[0].mxu0
    %v3934 = vadd.f32 %v1302, %v3933
    %v3935 = vpop.f32.mrb[0].mxu0
    %v3936 = vadd.f32 %v1306, %v3935
    %v3937 = vpop.f32.mrb[0].mxu0
    %v3938 = vpop.f32.mrb[0].mxu0
    %3939 = vdwg.mxu0
    %3940 = vmatprep.subr.bf16.mxu0 %v3004
    %3941 = vmatpush1.bf16.msra.mxu0 %v3003
    %3942 = vmatprep.subr.bf16.mxu0 %v3012
    %3943 = vmatpush1.bf16.msra.mxu0 %v3011
    %3944 = vmatprep.subr.bf16.mxu0 %v3020
    %3945 = vmatpush1.bf16.msra.mxu0 %v3019
    %3946 = vmatprep.subr.bf16.mxu0 %v3028
    %3947 = vmatpush1.bf16.msra.mxu0 %v3027
    %3948 = vmatprep.subr.bf16.mxu0 %v3036
    %3949 = vmatpush1.bf16.msra.mxu0 %v3035
    %3950 = vmatprep.subr.bf16.mxu0 %v3044
    %3951 = vmatpush1.bf16.msra.mxu0 %v3043
    %3952 = vmatprep.subr.bf16.mxu0 %v3052
    %3953 = vmatpush1.bf16.msra.mxu0 %v3051
    %3954 = vmatprep.subr.bf16.mxu0 %v3060
    %3955 = vmatpush1.bf16.msra.mxu0 %v3059
    %3956 = vmatprep.subr.bf16.mxu0 %v3068
    %3957 = vmatpush1.bf16.msra.mxu0 %v3067
    %3958 = vmatprep.subr.bf16.mxu0 %v3076
    %3959 = vmatpush1.bf16.msra.mxu0 %v3075
    %3960 = vmatprep.subr.bf16.mxu0 %v3084
    %3961 = vmatpush1.bf16.msra.mxu0 %v3083
    %3962 = vmatprep.subr.bf16.mxu0 %v3092
    %3963 = vmatpush1.bf16.msra.mxu0 %v3091
    %3964 = vmatprep.subr.bf16.mxu0 %v3100
    %3965 = vmatpush1.bf16.msra.mxu0 %v3099
    %3966 = vmatprep.subr.bf16.mxu0 %v3108
    %3967 = vmatpush1.bf16.msra.mxu0 %v3107
    %3968 = vmatprep.subr.bf16.mxu0 %v3116
    %3969 = vmatpush1.bf16.msra.mxu0 %v3115
    %3970 = vmatprep.subr.bf16.mxu0 %v3124
    %3971 = vmatpush1.bf16.msra.mxu0 %v3123
    %3972 = vmatprep.mubr.bf16.mxu0 %v780
    %3973 = vmatmul.mubr.bf16.gmra.mrb[0].mxu0 %v779
    %v3974 = vpop.f32.mrb[0].mxu0
    %v3975 = vadd.f32 %v3934, %v3974
    %v3976 = vpop.f32.mrb[0].mxu0
    %v3977 = vadd.f32 %v3936, %v3976
    %v3978 = vpop.f32.mrb[0].mxu0
    %v3979 = vpop.f32.mrb[0].mxu0
    %3980 = vdwg.mxu0
    %3981 = vmatprep.subr.bf16.mxu0 %v3132
    %3982 = vmatpush1.bf16.msra.mxu0 %v3131
    %3983 = vmatprep.subr.bf16.mxu0 %v3140
    %3984 = vmatpush1.bf16.msra.mxu0 %v3139
    %3985 = vmatprep.subr.bf16.mxu0 %v3148
    %3986 = vmatpush1.bf16.msra.mxu0 %v3147
    %3987 = vmatprep.subr.bf16.mxu0 %v3156
    %3988 = vmatpush1.bf16.msra.mxu0 %v3155
    %3989 = vmatprep.subr.bf16.mxu0 %v3164
    %3990 = vmatpush1.bf16.msra.mxu0 %v3163
    %3991 = vmatprep.subr.bf16.mxu0 %v3172
    %3992 = vmatpush1.bf16.msra.mxu0 %v3171
    %3993 = vmatprep.subr.bf16.mxu0 %v3180
    %3994 = vmatpush1.bf16.msra.mxu0 %v3179
    %3995 = vmatprep.subr.bf16.mxu0 %v3188
    %3996 = vmatpush1.bf16.msra.mxu0 %v3187
    %3997 = vmatprep.subr.bf16.mxu0 %v3196
    %3998 = vmatpush1.bf16.msra.mxu0 %v3195
    %3999 = vmatprep.subr.bf16.mxu0 %v3204
    %4000 = vmatpush1.bf16.msra.mxu0 %v3203
    %4001 = vmatprep.subr.bf16.mxu0 %v3212
    %4002 = vmatpush1.bf16.msra.mxu0 %v3211
    %4003 = vmatprep.subr.bf16.mxu0 %v3220
    %4004 = vmatpush1.bf16.msra.mxu0 %v3219
    %4005 = vmatprep.subr.bf16.mxu0 %v3228
    %4006 = vmatpush1.bf16.msra.mxu0 %v3227
    %4007 = vmatprep.subr.bf16.mxu0 %v3236
    %4008 = vmatpush1.bf16.msra.mxu0 %v3235
    %4009 = vmatprep.subr.bf16.mxu0 %v3244
    %4010 = vmatpush1.bf16.msra.mxu0 %v3243
    %4011 = vmatprep.subr.bf16.mxu0 %v3252
    %4012 = vmatpush1.bf16.msra.mxu0 %v3251
    %4013 = vmatprep.mubr.bf16.mxu0 %v782
    %4014 = vmatmul.mubr.bf16.gmra.mrb[0].mxu0 %v781
    %v4015 = vpop.f32.mrb[0].mxu0
    %v4016 = vadd.f32 %v3975, %v4015
    %v4017 = vpop.f32.mrb[0].mxu0
    %v4018 = vadd.f32 %v3977, %v4017
    %v4019 = vpop.f32.mrb[0].mxu0
    %v4020 = vpop.f32.mrb[0].mxu0
    %4021 = vdwg.mxu0
    %4022 = vmatprep.subr.bf16.mxu0 %v3260
    %4023 = vmatpush1.bf16.msra.mxu0 %v3259
    %4024 = vmatprep.subr.bf16.mxu0 %v3268
    %4025 = vmatpush1.bf16.msra.mxu0 %v3267
    %4026 = vmatprep.subr.bf16.mxu0 %v3276
    %4027 = vmatpush1.bf16.msra.mxu0 %v3275
    %4028 = vmatprep.subr.bf16.mxu0 %v3284
    %4029 = vmatpush1.bf16.msra.mxu0 %v3283
    %4030 = vmatprep.subr.bf16.mxu0 %v3292
    %4031 = vmatpush1.bf16.msra.mxu0 %v3291
    %4032 = vmatprep.subr.bf16.mxu0 %v3300
    %4033 = vmatpush1.bf16.msra.mxu0 %v3299
    %4034 = vmatprep.subr.bf16.mxu0 %v3308
    %4035 = vmatpush1.bf16.msra.mxu0 %v3307
    %4036 = vmatprep.subr.bf16.mxu0 %v3316
    %4037 = vmatpush1.bf16.msra.mxu0 %v3315
    %4038 = vmatprep.subr.bf16.mxu0 %v3324
    %4039 = vmatpush1.bf16.msra.mxu0 %v3323
    %4040 = vmatprep.subr.bf16.mxu0 %v3332
    %4041 = vmatpush1.bf16.msra.mxu0 %v3331
    %4042 = vmatprep.subr.bf16.mxu0 %v3340
    %4043 = vmatpush1.bf16.msra.mxu0 %v3339
    %4044 = vmatprep.subr.bf16.mxu0 %v3348
    %4045 = vmatpush1.bf16.msra.mxu0 %v3347
    %4046 = vmatprep.subr.bf16.mxu0 %v3356
    %4047 = vmatpush1.bf16.msra.mxu0 %v3355
    %4048 = vmatprep.subr.bf16.mxu0 %v3364
    %4049 = vmatpush1.bf16.msra.mxu0 %v3363
    %4050 = vmatprep.subr.bf16.mxu0 %v3372
    %4051 = vmatpush1.bf16.msra.mxu0 %v3371
    %4052 = vmatprep.subr.bf16.mxu0 %v3380
    %4053 = vmatpush1.bf16.msra.mxu0 %v3379
    %4054 = vmatprep.mubr.bf16.mxu0 %v784
    %4055 = vmatmul.mubr.bf16.gmra.mrb[0].mxu0 %v783
    %v4056 = vpop.f32.mrb[0].mxu0
    %v4057 = vadd.f32 %v4016, %v4056
    %v4058 = vpop.f32.mrb[0].mxu0
    %v4059 = vadd.f32 %v4018, %v4058
    %v4060 = vpop.f32.mrb[0].mxu0
    %v4061 = vpop.f32.mrb[0].mxu0
    %4062 = vdwg.mxu0
    %4063 = vmatprep.subr.bf16.mxu0 %v2878
    %4064 = vmatpush1.bf16.msra.mxu0 %v2877
    %4065 = vmatprep.subr.bf16.mxu0 %v2886
    %4066 = vmatpush1.bf16.msra.mxu0 %v2885
    %4067 = vmatprep.subr.bf16.mxu0 %v2894
    %4068 = vmatpush1.bf16.msra.mxu0 %v2893
    %4069 = vmatprep.subr.bf16.mxu0 %v2902
    %4070 = vmatpush1.bf16.msra.mxu0 %v2901
    %4071 = vmatprep.subr.bf16.mxu0 %v2910
    %4072 = vmatpush1.bf16.msra.mxu0 %v2909
    %4073 = vmatprep.subr.bf16.mxu0 %v2918
    %4074 = vmatpush1.bf16.msra.mxu0 %v2917
    %4075 = vmatprep.subr.bf16.mxu0 %v2926
    %4076 = vmatpush1.bf16.msra.mxu0 %v2925
    %4077 = vmatprep.subr.bf16.mxu0 %v2934
    %4078 = vmatpush1.bf16.msra.mxu0 %v2933
    %4079 = vmatprep.subr.bf16.mxu0 %v2942
    %4080 = vmatpush1.bf16.msra.mxu0 %v2941
    %4081 = vmatprep.subr.bf16.mxu0 %v2950
    %4082 = vmatpush1.bf16.msra.mxu0 %v2949
    %4083 = vmatprep.subr.bf16.mxu0 %v2958
    %4084 = vmatpush1.bf16.msra.mxu0 %v2957
    %4085 = vmatprep.subr.bf16.mxu0 %v2966
    %4086 = vmatpush1.bf16.msra.mxu0 %v2965
    %4087 = vmatprep.subr.bf16.mxu0 %v2974
    %4088 = vmatpush1.bf16.msra.mxu0 %v2973
    %4089 = vmatprep.subr.bf16.mxu0 %v2982
    %4090 = vmatpush1.bf16.msra.mxu0 %v2981
    %4091 = vmatprep.subr.bf16.mxu0 %v2990
    %4092 = vmatpush1.bf16.msra.mxu0 %v2989
    %4093 = vmatprep.subr.bf16.mxu0 %v2998
    %4094 = vmatpush1.bf16.msra.mxu0 %v2997
    %4095 = vmatprep.mubr.bf16.mxu0 %v778
    %4096 = vmatmul.mubr.bf16.gmra.mrb[0].mxu0 %v777
    %v4097 = vpop.f32.mrb[0].mxu0
    %v4098 = vadd.f32 %v1310, %v4097
    %v4099 = vpop.f32.mrb[0].mxu0
    %v4100 = vadd.f32 %v1314, %v4099
    %v4101 = vpop.f32.mrb[0].mxu0
    %v4102 = vpop.f32.mrb[0].mxu0
    %4103 = vdwg.mxu0
    %4104 = vmatprep.subr.bf16.mxu0 %v3006
    %4105 = vmatpush1.bf16.msra.mxu0 %v3005
    %4106 = vmatprep.subr.bf16.mxu0 %v3014
    %4107 = vmatpush1.bf16.msra.mxu0 %v3013
    %4108 = vmatprep.subr.bf16.mxu0 %v3022
    %4109 = vmatpush1.bf16.msra.mxu0 %v3021
    %4110 = vmatprep.subr.bf16.mxu0 %v3030
    %4111 = vmatpush1.bf16.msra.mxu0 %v3029
    %4112 = vmatprep.subr.bf16.mxu0 %v3038
    %4113 = vmatpush1.bf16.msra.mxu0 %v3037
    %4114 = vmatprep.subr.bf16.mxu0 %v3046
    %4115 = vmatpush1.bf16.msra.mxu0 %v3045
    %4116 = vmatprep.subr.bf16.mxu0 %v3054
    %4117 = vmatpush1.bf16.msra.mxu0 %v3053
    %4118 = vmatprep.subr.bf16.mxu0 %v3062
    %4119 = vmatpush1.bf16.msra.mxu0 %v3061
    %4120 = vmatprep.subr.bf16.mxu0 %v3070
    %4121 = vmatpush1.bf16.msra.mxu0 %v3069
    %4122 = vmatprep.subr.bf16.mxu0 %v3078
    %4123 = vmatpush1.bf16.msra.mxu0 %v3077
    %4124 = vmatprep.subr.bf16.mxu0 %v3086
    %4125 = vmatpush1.bf16.msra.mxu0 %v3085
    %4126 = vmatprep.subr.bf16.mxu0 %v3094
    %4127 = vmatpush1.bf16.msra.mxu0 %v3093
    %4128 = vmatprep.subr.bf16.mxu0 %v3102
    %4129 = vmatpush1.bf16.msra.mxu0 %v3101
    %4130 = vmatprep.subr.bf16.mxu0 %v3110
    %4131 = vmatpush1.bf16.msra.mxu0 %v3109
    %4132 = vmatprep.subr.bf16.mxu0 %v3118
    %4133 = vmatpush1.bf16.msra.mxu0 %v3117
    %4134 = vmatprep.subr.bf16.mxu0 %v3126
    %4135 = vmatpush1.bf16.msra.mxu0 %v3125
    %4136 = vmatprep.mubr.bf16.mxu0 %v780
    %4137 = vmatmul.mubr.bf16.gmra.mrb[0].mxu0 %v779
    %v4138 = vpop.f32.mrb[0].mxu0
    %v4139 = vadd.f32 %v4098, %v4138
    %v4140 = vpop.f32.mrb[0].mxu0
    %v4141 = vadd.f32 %v4100, %v4140
    %v4142 = vpop.f32.mrb[0].mxu0
    %v4143 = vpop.f32.mrb[0].mxu0
    %4144 = vdwg.mxu0
    %4145 = vmatprep.subr.bf16.mxu0 %v3134
    %4146 = vmatpush1.bf16.msra.mxu0 %v3133
    %4147 = vmatprep.subr.bf16.mxu0 %v3142
    %4148 = vmatpush1.bf16.msra.mxu0 %v3141
    %4149 = vmatprep.subr.bf16.mxu0 %v3150
    %4150 = vmatpush1.bf16.msra.mxu0 %v3149
    %4151 = vmatprep.subr.bf16.mxu0 %v3158
    %4152 = vmatpush1.bf16.msra.mxu0 %v3157
    %4153 = vmatprep.subr.bf16.mxu0 %v3166
    %4154 = vmatpush1.bf16.msra.mxu0 %v3165
    %4155 = vmatprep.subr.bf16.mxu0 %v3174
    %4156 = vmatpush1.bf16.msra.mxu0 %v3173
    %4157 = vmatprep.subr.bf16.mxu0 %v3182
    %4158 = vmatpush1.bf16.msra.mxu0 %v3181
    %4159 = vmatprep.subr.bf16.mxu0 %v3190
    %4160 = vmatpush1.bf16.msra.mxu0 %v3189
    %4161 = vmatprep.subr.bf16.mxu0 %v3198
    %4162 = vmatpush1.bf16.msra.mxu0 %v3197
    %4163 = vmatprep.subr.bf16.mxu0 %v3206
    %4164 = vmatpush1.bf16.msra.mxu0 %v3205
    %4165 = vmatprep.subr.bf16.mxu0 %v3214
    %4166 = vmatpush1.bf16.msra.mxu0 %v3213
    %4167 = vmatprep.subr.bf16.mxu0 %v3222
    %4168 = vmatpush1.bf16.msra.mxu0 %v3221
    %4169 = vmatprep.subr.bf16.mxu0 %v3230
    %4170 = vmatpush1.bf16.msra.mxu0 %v3229
    %4171 = vmatprep.subr.bf16.mxu0 %v3238
    %4172 = vmatpush1.bf16.msra.mxu0 %v3237
    %4173 = vmatprep.subr.bf16.mxu0 %v3246
    %4174 = vmatpush1.bf16.msra.mxu0 %v3245
    %4175 = vmatprep.subr.bf16.mxu0 %v3254
    %4176 = vmatpush1.bf16.msra.mxu0 %v3253
    %4177 = vmatprep.mubr.bf16.mxu0 %v782
    %4178 = vmatmul.mubr.bf16.gmra.mrb[0].mxu0 %v781
    %v4179 = vpop.f32.mrb[0].mxu0
    %v4180 = vadd.f32 %v4139, %v4179
    %v4181 = vpop.f32.mrb[0].mxu0
    %v4182 = vadd.f32 %v4141, %v4181
    %v4183 = vpop.f32.mrb[0].mxu0
    %v4184 = vpop.f32.mrb[0].mxu0
    %4185 = vdwg.mxu0
    %4186 = vmatprep.subr.bf16.mxu0 %v3262
    %4187 = vmatpush1.bf16.msra.mxu0 %v3261
    %4188 = vmatprep.subr.bf16.mxu0 %v3270
    %4189 = vmatpush1.bf16.msra.mxu0 %v3269
    %4190 = vmatprep.subr.bf16.mxu0 %v3278
    %4191 = vmatpush1.bf16.msra.mxu0 %v3277
    %4192 = vmatprep.subr.bf16.mxu0 %v3286
    %4193 = vmatpush1.bf16.msra.mxu0 %v3285
    %4194 = vmatprep.subr.bf16.mxu0 %v3294
    %4195 = vmatpush1.bf16.msra.mxu0 %v3293
    %4196 = vmatprep.subr.bf16.mxu0 %v3302
    %4197 = vmatpush1.bf16.msra.mxu0 %v3301
    %4198 = vmatprep.subr.bf16.mxu0 %v3310
    %4199 = vmatpush1.bf16.msra.mxu0 %v3309
    %4200 = vmatprep.subr.bf16.mxu0 %v3318
    %4201 = vmatpush1.bf16.msra.mxu0 %v3317
    %4202 = vmatprep.subr.bf16.mxu0 %v3326
    %4203 = vmatpush1.bf16.msra.mxu0 %v3325
    %4204 = vmatprep.subr.bf16.mxu0 %v3334
    %4205 = vmatpush1.bf16.msra.mxu0 %v3333
    %4206 = vmatprep.subr.bf16.mxu0 %v3342
    %4207 = vmatpush1.bf16.msra.mxu0 %v3341
    %4208 = vmatprep.subr.bf16.mxu0 %v3350
    %4209 = vmatpush1.bf16.msra.mxu0 %v3349
    %4210 = vmatprep.subr.bf16.mxu0 %v3358
    %4211 = vmatpush1.bf16.msra.mxu0 %v3357
    %4212 = vmatprep.subr.bf16.mxu0 %v3366
    %4213 = vmatpush1.bf16.msra.mxu0 %v3365
    %4214 = vmatprep.subr.bf16.mxu0 %v3374
    %4215 = vmatpush1.bf16.msra.mxu0 %v3373
    %4216 = vmatprep.subr.bf16.mxu0 %v3382
    %4217 = vmatpush1.bf16.msra.mxu0 %v3381
    %4218 = vmatprep.mubr.bf16.mxu0 %v784
    %4219 = vmatmul.mubr.bf16.gmra.mrb[0].mxu0 %v783
    %v4220 = vpop.f32.mrb[0].mxu0
    %v4221 = vadd.f32 %v4180, %v4220
    %v4222 = vpop.f32.mrb[0].mxu0
    %v4223 = vadd.f32 %v4182, %v4222
    %v4224 = vpop.f32.mrb[0].mxu0
    %v4225 = vpop.f32.mrb[0].mxu0
    %4226 = vdwg.mxu0
    %4227 = vmatprep.subr.bf16.mxu0 %v2880
    %4228 = vmatpush1.bf16.msra.mxu0 %v2879
    %4229 = vmatprep.subr.bf16.mxu0 %v2888
    %4230 = vmatpush1.bf16.msra.mxu0 %v2887
    %4231 = vmatprep.subr.bf16.mxu0 %v2896
    %4232 = vmatpush1.bf16.msra.mxu0 %v2895
    %4233 = vmatprep.subr.bf16.mxu0 %v2904
    %4234 = vmatpush1.bf16.msra.mxu0 %v2903
    %4235 = vmatprep.subr.bf16.mxu0 %v2912
    %4236 = vmatpush1.bf16.msra.mxu0 %v2911
    %4237 = vmatprep.subr.bf16.mxu0 %v2920
    %4238 = vmatpush1.bf16.msra.mxu0 %v2919
    %4239 = vmatprep.subr.bf16.mxu0 %v2928
    %4240 = vmatpush1.bf16.msra.mxu0 %v2927
    %4241 = vmatprep.subr.bf16.mxu0 %v2936
    %4242 = vmatpush1.bf16.msra.mxu0 %v2935
    %4243 = vmatprep.subr.bf16.mxu0 %v2944
    %4244 = vmatpush1.bf16.msra.mxu0 %v2943
    %4245 = vmatprep.subr.bf16.mxu0 %v2952
    %4246 = vmatpush1.bf16.msra.mxu0 %v2951
    %4247 = vmatprep.subr.bf16.mxu0 %v2960
    %4248 = vmatpush1.bf16.msra.mxu0 %v2959
    %4249 = vmatprep.subr.bf16.mxu0 %v2968
    %4250 = vmatpush1.bf16.msra.mxu0 %v2967
    %4251 = vmatprep.subr.bf16.mxu0 %v2976
    %4252 = vmatpush1.bf16.msra.mxu0 %v2975
    %4253 = vmatprep.subr.bf16.mxu0 %v2984
    %4254 = vmatpush1.bf16.msra.mxu0 %v2983
    %4255 = vmatprep.subr.bf16.mxu0 %v2992
    %4256 = vmatpush1.bf16.msra.mxu0 %v2991
    %4257 = vmatprep.subr.bf16.mxu0 %v3000
    %4258 = vmatpush1.bf16.msra.mxu0 %v2999
    %4259 = vmatprep.mubr.bf16.mxu0 %v778
    %4260 = vmatmul.mubr.bf16.gmra.mrb[0].mxu0 %v777
    %v4261 = vpop.f32.mrb[0].mxu0
    %v4262 = vadd.f32 %v1318, %v4261
    %v4263 = vpop.f32.mrb[0].mxu0
    %v4264 = vadd.f32 %v1322, %v4263
    %v4265 = vpop.f32.mrb[0].mxu0
    %v4266 = vpop.f32.mrb[0].mxu0
    %4267 = vdwg.mxu0
    %4268 = vmatprep.subr.bf16.mxu0 %v3008
    %4269 = vmatpush1.bf16.msra.mxu0 %v3007
    %4270 = vmatprep.subr.bf16.mxu0 %v3016
    %4271 = vmatpush1.bf16.msra.mxu0 %v3015
    %4272 = vmatprep.subr.bf16.mxu0 %v3024
    %4273 = vmatpush1.bf16.msra.mxu0 %v3023
    %4274 = vmatprep.subr.bf16.mxu0 %v3032
    %4275 = vmatpush1.bf16.msra.mxu0 %v3031
    %4276 = vmatprep.subr.bf16.mxu0 %v3040
    %4277 = vmatpush1.bf16.msra.mxu0 %v3039
    %4278 = vmatprep.subr.bf16.mxu0 %v3048
    %4279 = vmatpush1.bf16.msra.mxu0 %v3047
    %4280 = vmatprep.subr.bf16.mxu0 %v3056
    %4281 = vmatpush1.bf16.msra.mxu0 %v3055
    %4282 = vmatprep.subr.bf16.mxu0 %v3064
    %4283 = vmatpush1.bf16.msra.mxu0 %v3063
    %4284 = vmatprep.subr.bf16.mxu0 %v3072
    %4285 = vmatpush1.bf16.msra.mxu0 %v3071
    %4286 = vmatprep.subr.bf16.mxu0 %v3080
    %4287 = vmatpush1.bf16.msra.mxu0 %v3079
    %4288 = vmatprep.subr.bf16.mxu0 %v3088
    %4289 = vmatpush1.bf16.msra.mxu0 %v3087
    %4290 = vmatprep.subr.bf16.mxu0 %v3096
    %4291 = vmatpush1.bf16.msra.mxu0 %v3095
    %4292 = vmatprep.subr.bf16.mxu0 %v3104
    %4293 = vmatpush1.bf16.msra.mxu0 %v3103
    %4294 = vmatprep.subr.bf16.mxu0 %v3112
    %4295 = vmatpush1.bf16.msra.mxu0 %v3111
    %4296 = vmatprep.subr.bf16.mxu0 %v3120
    %4297 = vmatpush1.bf16.msra.mxu0 %v3119
    %4298 = vmatprep.subr.bf16.mxu0 %v3128
    %4299 = vmatpush1.bf16.msra.mxu0 %v3127
    %4300 = vmatprep.mubr.bf16.mxu0 %v780
    %4301 = vmatmul.mubr.bf16.gmra.mrb[0].mxu0 %v779
    %v4302 = vpop.f32.mrb[0].mxu0
    %v4303 = vadd.f32 %v4262, %v4302
    %v4304 = vpop.f32.mrb[0].mxu0
    %v4305 = vadd.f32 %v4264, %v4304
    %v4306 = vpop.f32.mrb[0].mxu0
    %v4307 = vpop.f32.mrb[0].mxu0
    %4308 = vdwg.mxu0
    %4309 = vmatprep.subr.bf16.mxu0 %v3136
    %4310 = vmatpush1.bf16.msra.mxu0 %v3135
    %4311 = vmatprep.subr.bf16.mxu0 %v3144
    %4312 = vmatpush1.bf16.msra.mxu0 %v3143
    %4313 = vmatprep.subr.bf16.mxu0 %v3152
    %4314 = vmatpush1.bf16.msra.mxu0 %v3151
    %4315 = vmatprep.subr.bf16.mxu0 %v3160
    %4316 = vmatpush1.bf16.msra.mxu0 %v3159
    %4317 = vmatprep.subr.bf16.mxu0 %v3168
    %4318 = vmatpush1.bf16.msra.mxu0 %v3167
    %4319 = vmatprep.subr.bf16.mxu0 %v3176
    %4320 = vmatpush1.bf16.msra.mxu0 %v3175
    %4321 = vmatprep.subr.bf16.mxu0 %v3184
    %4322 = vmatpush1.bf16.msra.mxu0 %v3183
    %4323 = vmatprep.subr.bf16.mxu0 %v3192
    %4324 = vmatpush1.bf16.msra.mxu0 %v3191
    %4325 = vmatprep.subr.bf16.mxu0 %v3200
    %4326 = vmatpush1.bf16.msra.mxu0 %v3199
    %4327 = vmatprep.subr.bf16.mxu0 %v3208
    %4328 = vmatpush1.bf16.msra.mxu0 %v3207
    %4329 = vmatprep.subr.bf16.mxu0 %v3216
    %4330 = vmatpush1.bf16.msra.mxu0 %v3215
    %4331 = vmatprep.subr.bf16.mxu0 %v3224
    %4332 = vmatpush1.bf16.msra.mxu0 %v3223
    %4333 = vmatprep.subr.bf16.mxu0 %v3232
    %4334 = vmatpush1.bf16.msra.mxu0 %v3231
    %4335 = vmatprep.subr.bf16.mxu0 %v3240
    %4336 = vmatpush1.bf16.msra.mxu0 %v3239
    %4337 = vmatprep.subr.bf16.mxu0 %v3248
    %4338 = vmatpush1.bf16.msra.mxu0 %v3247
    %4339 = vmatprep.subr.bf16.mxu0 %v3256
    %4340 = vmatpush1.bf16.msra.mxu0 %v3255
    %4341 = vmatprep.mubr.bf16.mxu0 %v782
    %4342 = vmatmul.mubr.bf16.gmra.mrb[0].mxu0 %v781
    %v4343 = vpop.f32.mrb[0].mxu0
    %v4344 = vadd.f32 %v4303, %v4343
    %v4345 = vpop.f32.mrb[0].mxu0
    %v4346 = vadd.f32 %v4305, %v4345
    %v4347 = vpop.f32.mrb[0].mxu0
    %v4348 = vpop.f32.mrb[0].mxu0
    %4349 = vdwg.mxu0
    %4350 = vmatprep.subr.bf16.mxu0 %v3264
    %4351 = vmatpush1.bf16.msra.mxu0 %v3263
    %4352 = vmatprep.subr.bf16.mxu0 %v3272
    %4353 = vmatpush1.bf16.msra.mxu0 %v3271
    %4354 = vmatprep.subr.bf16.mxu0 %v3280
    %4355 = vmatpush1.bf16.msra.mxu0 %v3279
    %4356 = vmatprep.subr.bf16.mxu0 %v3288
    %4357 = vmatpush1.bf16.msra.mxu0 %v3287
    %4358 = vmatprep.subr.bf16.mxu0 %v3296
    %4359 = vmatpush1.bf16.msra.mxu0 %v3295
    %4360 = vmatprep.subr.bf16.mxu0 %v3304
    %4361 = vmatpush1.bf16.msra.mxu0 %v3303
    %4362 = vmatprep.subr.bf16.mxu0 %v3312
    %4363 = vmatpush1.bf16.msra.mxu0 %v3311
    %4364 = vmatprep.subr.bf16.mxu0 %v3320
    %4365 = vmatpush1.bf16.msra.mxu0 %v3319
    %4366 = vmatprep.subr.bf16.mxu0 %v3328
    %4367 = vmatpush1.bf16.msra.mxu0 %v3327
    %4368 = vmatprep.subr.bf16.mxu0 %v3336
    %4369 = vmatpush1.bf16.msra.mxu0 %v3335
    %4370 = vmatprep.subr.bf16.mxu0 %v3344
    %4371 = vmatpush1.bf16.msra.mxu0 %v3343
    %4372 = vmatprep.subr.bf16.mxu0 %v3352
    %4373 = vmatpush1.bf16.msra.mxu0 %v3351
    %4374 = vmatprep.subr.bf16.mxu0 %v3360
    %4375 = vmatpush1.bf16.msra.mxu0 %v3359
    %4376 = vmatprep.subr.bf16.mxu0 %v3368
    %4377 = vmatpush1.bf16.msra.mxu0 %v3367
    %4378 = vmatprep.subr.bf16.mxu0 %v3376
    %4379 = vmatpush1.bf16.msra.mxu0 %v3375
    %4380 = vmatprep.subr.bf16.mxu0 %v3384
    %4381 = vmatpush1.bf16.msra.mxu0 %v3383
    %4382 = vmatprep.mubr.bf16.mxu0 %v784
    %4383 = vmatmul.mubr.bf16.gmra.mrb[0].mxu0 %v783
    %v4384 = vpop.f32.mrb[0].mxu0
    %v4385 = vadd.f32 %v4344, %v4384
    %v4386 = vpop.f32.mrb[0].mxu0
    %v4387 = vadd.f32 %v4346, %v4386
    %v4388 = vpop.f32.mrb[0].mxu0
    %v4389 = vpop.f32.mrb[0].mxu0
    %4390 = vdwg.mxu0
    %4391 = vmatprep.subr.bf16.mxu0 %v2882
    %4392 = vmatpush1.bf16.msra.mxu0 %v2881
    %4393 = vmatprep.subr.bf16.mxu0 %v2890
    %4394 = vmatpush1.bf16.msra.mxu0 %v2889
    %4395 = vmatprep.subr.bf16.mxu0 %v2898
    %4396 = vmatpush1.bf16.msra.mxu0 %v2897
    %4397 = vmatprep.subr.bf16.mxu0 %v2906
    %4398 = vmatpush1.bf16.msra.mxu0 %v2905
    %4399 = vmatprep.subr.bf16.mxu0 %v2914
    %4400 = vmatpush1.bf16.msra.mxu0 %v2913
    %4401 = vmatprep.subr.bf16.mxu0 %v2922
    %4402 = vmatpush1.bf16.msra.mxu0 %v2921
    %4403 = vmatprep.subr.bf16.mxu0 %v2930
    %4404 = vmatpush1.bf16.msra.mxu0 %v2929
    %4405 = vmatprep.subr.bf16.mxu0 %v2938
    %4406 = vmatpush1.bf16.msra.mxu0 %v2937
    %4407 = vmatprep.subr.bf16.mxu0 %v2946
    %4408 = vmatpush1.bf16.msra.mxu0 %v2945
    %4409 = vmatprep.subr.bf16.mxu0 %v2954
    %4410 = vmatpush1.bf16.msra.mxu0 %v2953
    %4411 = vmatprep.subr.bf16.mxu0 %v2962
    %4412 = vmatpush1.bf16.msra.mxu0 %v2961
    %4413 = vmatprep.subr.bf16.mxu0 %v2970
    %4414 = vmatpush1.bf16.msra.mxu0 %v2969
    %4415 = vmatprep.subr.bf16.mxu0 %v2978
    %4416 = vmatpush1.bf16.msra.mxu0 %v2977
    %4417 = vmatprep.subr.bf16.mxu0 %v2986
    %4418 = vmatpush1.bf16.msra.mxu0 %v2985
    %4419 = vmatprep.subr.bf16.mxu0 %v2994
    %4420 = vmatpush1.bf16.msra.mxu0 %v2993
    %4421 = vmatprep.subr.bf16.mxu0 %v3002
    %4422 = vmatpush1.bf16.msra.mxu0 %v3001
    %4423 = vmatprep.mubr.bf16.mxu0 %v778
    %4424 = vmatmul.mubr.bf16.gmra.mrb[0].mxu0 %v777
    %v4425 = vpop.f32.mrb[0].mxu0
    %v4426 = vadd.f32 %v1326, %v4425
    %v4427 = vpop.f32.mrb[0].mxu0
    %v4428 = vadd.f32 %v1330, %v4427
    %v4429 = vpop.f32.mrb[0].mxu0
    %v4430 = vpop.f32.mrb[0].mxu0
    %4431 = vdwg.mxu0
    %4432 = vmatprep.subr.bf16.mxu0 %v3010
    %4433 = vmatpush1.bf16.msra.mxu0 %v3009
    %4434 = vmatprep.subr.bf16.mxu0 %v3018
    %4435 = vmatpush1.bf16.msra.mxu0 %v3017
    %4436 = vmatprep.subr.bf16.mxu0 %v3026
    %4437 = vmatpush1.bf16.msra.mxu0 %v3025
    %4438 = vmatprep.subr.bf16.mxu0 %v3034
    %4439 = vmatpush1.bf16.msra.mxu0 %v3033
    %4440 = vmatprep.subr.bf16.mxu0 %v3042
    %4441 = vmatpush1.bf16.msra.mxu0 %v3041
    %4442 = vmatprep.subr.bf16.mxu0 %v3050
    %4443 = vmatpush1.bf16.msra.mxu0 %v3049
    %4444 = vmatprep.subr.bf16.mxu0 %v3058
    %4445 = vmatpush1.bf16.msra.mxu0 %v3057
    %4446 = vmatprep.subr.bf16.mxu0 %v3066
    %4447 = vmatpush1.bf16.msra.mxu0 %v3065
    %4448 = vmatprep.subr.bf16.mxu0 %v3074
    %4449 = vmatpush1.bf16.msra.mxu0 %v3073
    %4450 = vmatprep.subr.bf16.mxu0 %v3082
    %4451 = vmatpush1.bf16.msra.mxu0 %v3081
    %4452 = vmatprep.subr.bf16.mxu0 %v3090
    %4453 = vmatpush1.bf16.msra.mxu0 %v3089
    %4454 = vmatprep.subr.bf16.mxu0 %v3098
    %4455 = vmatpush1.bf16.msra.mxu0 %v3097
    %4456 = vmatprep.subr.bf16.mxu0 %v3106
    %4457 = vmatpush1.bf16.msra.mxu0 %v3105
    %4458 = vmatprep.subr.bf16.mxu0 %v3114
    %4459 = vmatpush1.bf16.msra.mxu0 %v3113
    %4460 = vmatprep.subr.bf16.mxu0 %v3122
    %4461 = vmatpush1.bf16.msra.mxu0 %v3121
    %4462 = vmatprep.subr.bf16.mxu0 %v3130
    %4463 = vmatpush1.bf16.msra.mxu0 %v3129
    %4464 = vmatprep.mubr.bf16.mxu0 %v780
    %4465 = vmatmul.mubr.bf16.gmra.mrb[0].mxu0 %v779
    %v4466 = vpop.f32.mrb[0].mxu0
    %v4467 = vadd.f32 %v4426, %v4466
    %v4468 = vpop.f32.mrb[0].mxu0
    %v4469 = vadd.f32 %v4428, %v4468
    %v4470 = vpop.f32.mrb[0].mxu0
    %v4471 = vpop.f32.mrb[0].mxu0
    %4472 = vdwg.mxu0
    %4473 = vmatprep.subr.bf16.mxu0 %v3138
    %4474 = vmatpush1.bf16.msra.mxu0 %v3137
    %4475 = vmatprep.subr.bf16.mxu0 %v3146
    %4476 = vmatpush1.bf16.msra.mxu0 %v3145
    %4477 = vmatprep.subr.bf16.mxu0 %v3154
    %4478 = vmatpush1.bf16.msra.mxu0 %v3153
    %4479 = vmatprep.subr.bf16.mxu0 %v3162
    %4480 = vmatpush1.bf16.msra.mxu0 %v3161
    %4481 = vmatprep.subr.bf16.mxu0 %v3170
    %4482 = vmatpush1.bf16.msra.mxu0 %v3169
    %4483 = vmatprep.subr.bf16.mxu0 %v3178
    %4484 = vmatpush1.bf16.msra.mxu0 %v3177
    %4485 = vmatprep.subr.bf16.mxu0 %v3186
    %4486 = vmatpush1.bf16.msra.mxu0 %v3185
    %4487 = vmatprep.subr.bf16.mxu0 %v3194
    %4488 = vmatpush1.bf16.msra.mxu0 %v3193
    %4489 = vmatprep.subr.bf16.mxu0 %v3202
    %4490 = vmatpush1.bf16.msra.mxu0 %v3201
    %4491 = vmatprep.subr.bf16.mxu0 %v3210
    %4492 = vmatpush1.bf16.msra.mxu0 %v3209
    %4493 = vmatprep.subr.bf16.mxu0 %v3218
    %4494 = vmatpush1.bf16.msra.mxu0 %v3217
    %4495 = vmatprep.subr.bf16.mxu0 %v3226
    %4496 = vmatpush1.bf16.msra.mxu0 %v3225
    %4497 = vmatprep.subr.bf16.mxu0 %v3234
    %4498 = vmatpush1.bf16.msra.mxu0 %v3233
    %4499 = vmatprep.subr.bf16.mxu0 %v3242
    %4500 = vmatpush1.bf16.msra.mxu0 %v3241
    %4501 = vmatprep.subr.bf16.mxu0 %v3250
    %4502 = vmatpush1.bf16.msra.mxu0 %v3249
    %4503 = vmatprep.subr.bf16.mxu0 %v3258
    %4504 = vmatpush1.bf16.msra.mxu0 %v3257
    %4505 = vmatprep.mubr.bf16.mxu0 %v782
    %4506 = vmatmul.mubr.bf16.gmra.mrb[0].mxu0 %v781
    %v4507 = vpop.f32.mrb[0].mxu0
    %v4508 = vadd.f32 %v4467, %v4507
    %v4509 = vpop.f32.mrb[0].mxu0
    %v4510 = vadd.f32 %v4469, %v4509
    %v4511 = vpop.f32.mrb[0].mxu0
    %v4512 = vpop.f32.mrb[0].mxu0
    %4513 = vdwg.mxu0
    %4514 = vmatprep.subr.bf16.mxu0 %v3266
    %4515 = vmatpush1.bf16.msra.mxu0 %v3265
    %4516 = vmatprep.subr.bf16.mxu0 %v3274
    %4517 = vmatpush1.bf16.msra.mxu0 %v3273
    %4518 = vmatprep.subr.bf16.mxu0 %v3282
    %4519 = vmatpush1.bf16.msra.mxu0 %v3281
    %4520 = vmatprep.subr.bf16.mxu0 %v3290
    %4521 = vmatpush1.bf16.msra.mxu0 %v3289
    %4522 = vmatprep.subr.bf16.mxu0 %v3298
    %4523 = vmatpush1.bf16.msra.mxu0 %v3297
    %4524 = vmatprep.subr.bf16.mxu0 %v3306
    %4525 = vmatpush1.bf16.msra.mxu0 %v3305
    %4526 = vmatprep.subr.bf16.mxu0 %v3314
    %4527 = vmatpush1.bf16.msra.mxu0 %v3313
    %4528 = vmatprep.subr.bf16.mxu0 %v3322
    %4529 = vmatpush1.bf16.msra.mxu0 %v3321
    %4530 = vmatprep.subr.bf16.mxu0 %v3330
    %4531 = vmatpush1.bf16.msra.mxu0 %v3329
    %4532 = vmatprep.subr.bf16.mxu0 %v3338
    %4533 = vmatpush1.bf16.msra.mxu0 %v3337
    %4534 = vmatprep.subr.bf16.mxu0 %v3346
    %4535 = vmatpush1.bf16.msra.mxu0 %v3345
    %4536 = vmatprep.subr.bf16.mxu0 %v3354
    %4537 = vmatpush1.bf16.msra.mxu0 %v3353
    %4538 = vmatprep.subr.bf16.mxu0 %v3362
    %4539 = vmatpush1.bf16.msra.mxu0 %v3361
    %4540 = vmatprep.subr.bf16.mxu0 %v3370
    %4541 = vmatpush1.bf16.msra.mxu0 %v3369
    %4542 = vmatprep.subr.bf16.mxu0 %v3378
    %4543 = vmatpush1.bf16.msra.mxu0 %v3377
    %4544 = vmatprep.subr.bf16.mxu0 %v3386
    %4545 = vmatpush1.bf16.msra.mxu0 %v3385
    %4546 = vmatprep.mubr.bf16.mxu0 %v784
    %4547 = vmatmul.mubr.bf16.gmra.mrb[0].mxu0 %v783
    %v4548 = vpop.f32.mrb[0].mxu0
    %v4549 = vadd.f32 %v4508, %v4548
    %v4550 = vpop.f32.mrb[0].mxu0
    %v4551 = vadd.f32 %v4510, %v4550
    %v4552 = vpop.f32.mrb[0].mxu0
    %v4553 = vpop.f32.mrb[0].mxu0
    %4554 = vdwg.mxu0
    %v4555 = vmul.f32 %v4057, 0.5
    %v4556 = vmul.f32 %v4059, 0.5
    %v4557 = vmul.f32 %v4221, 0.5
    %v4558 = vmul.f32 %v4223, 0.5
    %v4559 = vmul.f32 %v4385, 0.5
    %v4560 = vmul.f32 %v4387, 0.5
    %v4561 = vmul.f32 %v4549, 0.5
    %v4562 = vmul.f32 %v4551, 0.5
    %v4563 = vmul.f32 %v4057, 0.70710677
    %v4564 = vmul.f32 %v4059, 0.70710677
    %v4565 = vmul.f32 %v4221, 0.70710677
    %v4566 = vmul.f32 %v4223, 0.70710677
    %v4567 = vmul.f32 %v4385, 0.70710677
    %v4568 = vmul.f32 %v4387, 0.70710677
    %v4569 = vmul.f32 %v4549, 0.70710677
    %v4570 = vmul.f32 %v4551, 0.70710677
    %v4571 = verf.f32.pop %v4563
    %v4572 = verf.f32.pop %v4564
    %v4573 = verf.f32.pop %v4565
    %v4574 = verf.f32.pop %v4566
    %v4575 = verf.f32.pop %v4567
    %v4576 = verf.f32.pop %v4568
    %v4577 = verf.f32.pop %v4569
    %v4578 = verf.f32.pop %v4570
    %v4579 = vadd.f32 %v4571, 1.0
    %v4580 = vadd.f32 %v4572, 1.0
    %v4581 = vadd.f32 %v4573, 1.0
    %v4582 = vadd.f32 %v4574, 1.0
    %v4583 = vadd.f32 %v4575, 1.0
    %v4584 = vadd.f32 %v4576, 1.0
    %v4585 = vadd.f32 %v4577, 1.0
    %v4586 = vadd.f32 %v4578, 1.0
    %v4587 = vmul.f32 %v4555, %v4579
    %v4588 = vmul.f32 %v4556, %v4580
    %v4589 = vmul.f32 %v4557, %v4581
    %v4590 = vmul.f32 %v4558, %v4582
    %v4591 = vmul.f32 %v4559, %v4583
    %v4592 = vmul.f32 %v4560, %v4584
    %v4593 = vmul.f32 %v4561, %v4585
    %v4594 = vmul.f32 %v4562, %v4586
    %v4595 = vpack.c.bf16 %v4587, %v4587
    %v4596 = vpack.c.bf16 %v4588, %v4588
    %v4597 = vpack.c.bf16 %v4589, %v4589
    %v4598 = vpack.c.bf16 %v4590, %v4590
    %v4599 = vpack.c.bf16 %v4591, %v4591
    %v4600 = vpack.c.bf16 %v4592, %v4592
    %v4601 = vpack.c.bf16 %v4593, %v4593
    %v4602 = vpack.c.bf16 %v4594, %v4594
    %v4603 = vld [vmem:[#allocation11] sm:$0xff]
    %v4604 = vld [vmem:[#allocation11 + $0x8] sm:$0xff]
    %v4605 = vld [vmem:[#allocation11 + $0x10] sm:$0xff]
    %v4606 = vld [vmem:[#allocation11 + $0x18] sm:$0xff]
    %v4607 = vld [vmem:[#allocation11 + $0x20] sm:$0xff]
    %v4608 = vld [vmem:[#allocation11 + $0x28] sm:$0xff]
    %v4609 = vld [vmem:[#allocation11 + $0x30] sm:$0xff]
    %v4610 = vld [vmem:[#allocation11 + $0x38] sm:$0xff]
    %v4611 = vld [vmem:[#allocation11 + $0x40] sm:$0xff]
    %v4612 = vld [vmem:[#allocation11 + $0x48] sm:$0xff]
    %v4613 = vld [vmem:[#allocation11 + $0x50] sm:$0xff]
    %v4614 = vld [vmem:[#allocation11 + $0x58] sm:$0xff]
    %v4615 = vld [vmem:[#allocation11 + $0x60] sm:$0xff]
    %v4616 = vld [vmem:[#allocation11 + $0x68] sm:$0xff]
    %v4617 = vld [vmem:[#allocation11 + $0x70] sm:$0xff]
    %v4618 = vld [vmem:[#allocation11 + $0x78] sm:$0xff]
    %v4619 = vld [vmem:[#allocation11 + $0x80] sm:$0xff]
    %v4620 = vld [vmem:[#allocation11 + $0x88] sm:$0xff]
    %v4621 = vld [vmem:[#allocation11 + $0x90] sm:$0xff]
    %v4622 = vld [vmem:[#allocation11 + $0x98] sm:$0xff]
    %v4623 = vld [vmem:[#allocation11 + $0xa0] sm:$0xff]
    %v4624 = vld [vmem:[#allocation11 + $0xa8] sm:$0xff]
    %v4625 = vld [vmem:[#allocation11 + $0xb0] sm:$0xff]
    %v4626 = vld [vmem:[#allocation11 + $0xb8] sm:$0xff]
    %v4627 = vld [vmem:[#allocation11 + $0xc0] sm:$0xff]
    %v4628 = vld [vmem:[#allocation11 + $0xc8] sm:$0xff]
    %v4629 = vld [vmem:[#allocation11 + $0xd0] sm:$0xff]
    %v4630 = vld [vmem:[#allocation11 + $0xd8] sm:$0xff]
    %v4631 = vld [vmem:[#allocation11 + $0xe0] sm:$0xff]
    %v4632 = vld [vmem:[#allocation11 + $0xe8] sm:$0xff]
    %v4633 = vld [vmem:[#allocation11 + $0xf0] sm:$0xff]
    %v4634 = vld [vmem:[#allocation11 + $0xf8] sm:$0xff]
    %v4635 = vld [vmem:[#allocation11 + $0x100] sm:$0xff]
    %v4636 = vld [vmem:[#allocation11 + $0x108] sm:$0xff]
    %v4637 = vld [vmem:[#allocation11 + $0x110] sm:$0xff]
    %v4638 = vld [vmem:[#allocation11 + $0x118] sm:$0xff]
    %v4639 = vld [vmem:[#allocation11 + $0x120] sm:$0xff]
    %v4640 = vld [vmem:[#allocation11 + $0x128] sm:$0xff]
    %v4641 = vld [vmem:[#allocation11 + $0x130] sm:$0xff]
    %v4642 = vld [vmem:[#allocation11 + $0x138] sm:$0xff]
    %v4643 = vld [vmem:[#allocation11 + $0x140] sm:$0xff]
    %v4644 = vld [vmem:[#allocation11 + $0x148] sm:$0xff]
    %v4645 = vld [vmem:[#allocation11 + $0x150] sm:$0xff]
    %v4646 = vld [vmem:[#allocation11 + $0x158] sm:$0xff]
    %v4647 = vld [vmem:[#allocation11 + $0x160] sm:$0xff]
    %v4648 = vld [vmem:[#allocation11 + $0x168] sm:$0xff]
    %v4649 = vld [vmem:[#allocation11 + $0x170] sm:$0xff]
    %v4650 = vld [vmem:[#allocation11 + $0x178] sm:$0xff]
    %v4651 = vld [vmem:[#allocation11 + $0x180] sm:$0xff]
    %v4652 = vld [vmem:[#allocation11 + $0x188] sm:$0xff]
    %v4653 = vld [vmem:[#allocation11 + $0x190] sm:$0xff]
    %v4654 = vld [vmem:[#allocation11 + $0x198] sm:$0xff]
    %v4655 = vld [vmem:[#allocation11 + $0x1a0] sm:$0xff]
    %v4656 = vld [vmem:[#allocation11 + $0x1a8] sm:$0xff]
    %v4657 = vld [vmem:[#allocation11 + $0x1b0] sm:$0xff]
    %v4658 = vld [vmem:[#allocation11 + $0x1b8] sm:$0xff]
    %v4659 = vld [vmem:[#allocation11 + $0x1c0] sm:$0xff]
    %v4660 = vld [vmem:[#allocation11 + $0x1c8] sm:$0xff]
    %v4661 = vld [vmem:[#allocation11 + $0x1d0] sm:$0xff]
    %v4662 = vld [vmem:[#allocation11 + $0x1d8] sm:$0xff]
    %v4663 = vld [vmem:[#allocation11 + $0x1e0] sm:$0xff]
    %v4664 = vld [vmem:[#allocation11 + $0x1e8] sm:$0xff]
    %v4665 = vld [vmem:[#allocation11 + $0x1f0] sm:$0xff]
    %v4666 = vld [vmem:[#allocation11 + $0x1f8] sm:$0xff]
    %v4667 = vld [vmem:[#allocation11 + $0x200] sm:$0xff]
    %v4668 = vld [vmem:[#allocation11 + $0x208] sm:$0xff]
    %v4669 = vld [vmem:[#allocation11 + $0x210] sm:$0xff]
    %v4670 = vld [vmem:[#allocation11 + $0x218] sm:$0xff]
    %v4671 = vld [vmem:[#allocation11 + $0x220] sm:$0xff]
    %v4672 = vld [vmem:[#allocation11 + $0x228] sm:$0xff]
    %v4673 = vld [vmem:[#allocation11 + $0x230] sm:$0xff]
    %v4674 = vld [vmem:[#allocation11 + $0x238] sm:$0xff]
    %v4675 = vld [vmem:[#allocation11 + $0x240] sm:$0xff]
    %v4676 = vld [vmem:[#allocation11 + $0x248] sm:$0xff]
    %v4677 = vld [vmem:[#allocation11 + $0x250] sm:$0xff]
    %v4678 = vld [vmem:[#allocation11 + $0x258] sm:$0xff]
    %v4679 = vld [vmem:[#allocation11 + $0x260] sm:$0xff]
    %v4680 = vld [vmem:[#allocation11 + $0x268] sm:$0xff]
    %v4681 = vld [vmem:[#allocation11 + $0x270] sm:$0xff]
    %v4682 = vld [vmem:[#allocation11 + $0x278] sm:$0xff]
    %v4683 = vld [vmem:[#allocation11 + $0x280] sm:$0xff]
    %v4684 = vld [vmem:[#allocation11 + $0x288] sm:$0xff]
    %v4685 = vld [vmem:[#allocation11 + $0x290] sm:$0xff]
    %v4686 = vld [vmem:[#allocation11 + $0x298] sm:$0xff]
    %v4687 = vld [vmem:[#allocation11 + $0x2a0] sm:$0xff]
    %v4688 = vld [vmem:[#allocation11 + $0x2a8] sm:$0xff]
    %v4689 = vld [vmem:[#allocation11 + $0x2b0] sm:$0xff]
    %v4690 = vld [vmem:[#allocation11 + $0x2b8] sm:$0xff]
    %v4691 = vld [vmem:[#allocation11 + $0x2c0] sm:$0xff]
    %v4692 = vld [vmem:[#allocation11 + $0x2c8] sm:$0xff]
    %v4693 = vld [vmem:[#allocation11 + $0x2d0] sm:$0xff]
    %v4694 = vld [vmem:[#allocation11 + $0x2d8] sm:$0xff]
    %v4695 = vld [vmem:[#allocation11 + $0x2e0] sm:$0xff]
    %v4696 = vld [vmem:[#allocation11 + $0x2e8] sm:$0xff]
    %v4697 = vld [vmem:[#allocation11 + $0x2f0] sm:$0xff]
    %v4698 = vld [vmem:[#allocation11 + $0x2f8] sm:$0xff]
    %v4699 = vld [vmem:[#allocation11 + $0x300] sm:$0xff]
    %v4700 = vld [vmem:[#allocation11 + $0x308] sm:$0xff]
    %v4701 = vld [vmem:[#allocation11 + $0x310] sm:$0xff]
    %v4702 = vld [vmem:[#allocation11 + $0x318] sm:$0xff]
    %v4703 = vld [vmem:[#allocation11 + $0x320] sm:$0xff]
    %v4704 = vld [vmem:[#allocation11 + $0x328] sm:$0xff]
    %v4705 = vld [vmem:[#allocation11 + $0x330] sm:$0xff]
    %v4706 = vld [vmem:[#allocation11 + $0x338] sm:$0xff]
    %v4707 = vld [vmem:[#allocation11 + $0x340] sm:$0xff]
    %v4708 = vld [vmem:[#allocation11 + $0x348] sm:$0xff]
    %v4709 = vld [vmem:[#allocation11 + $0x350] sm:$0xff]
    %v4710 = vld [vmem:[#allocation11 + $0x358] sm:$0xff]
    %v4711 = vld [vmem:[#allocation11 + $0x360] sm:$0xff]
    %v4712 = vld [vmem:[#allocation11 + $0x368] sm:$0xff]
    %v4713 = vld [vmem:[#allocation11 + $0x370] sm:$0xff]
    %v4714 = vld [vmem:[#allocation11 + $0x378] sm:$0xff]
    %v4715 = vld [vmem:[#allocation11 + $0x380] sm:$0xff]
    %v4716 = vld [vmem:[#allocation11 + $0x388] sm:$0xff]
    %v4717 = vld [vmem:[#allocation11 + $0x390] sm:$0xff]
    %v4718 = vld [vmem:[#allocation11 + $0x398] sm:$0xff]
    %v4719 = vld [vmem:[#allocation11 + $0x3a0] sm:$0xff]
    %v4720 = vld [vmem:[#allocation11 + $0x3a8] sm:$0xff]
    %v4721 = vld [vmem:[#allocation11 + $0x3b0] sm:$0xff]
    %v4722 = vld [vmem:[#allocation11 + $0x3b8] sm:$0xff]
    %v4723 = vld [vmem:[#allocation11 + $0x3c0] sm:$0xff]
    %v4724 = vld [vmem:[#allocation11 + $0x3c8] sm:$0xff]
    %v4725 = vld [vmem:[#allocation11 + $0x3d0] sm:$0xff]
    %v4726 = vld [vmem:[#allocation11 + $0x3d8] sm:$0xff]
    %v4727 = vld [vmem:[#allocation11 + $0x3e0] sm:$0xff]
    %v4728 = vld [vmem:[#allocation11 + $0x3e8] sm:$0xff]
    %v4729 = vld [vmem:[#allocation11 + $0x3f0] sm:$0xff]
    %v4730 = vld [vmem:[#allocation11 + $0x3f8] sm:$0xff]
    %v4731 = vld [vmem:[#allocation11 + $0x400] sm:$0xff]
    %v4732 = vld [vmem:[#allocation11 + $0x408] sm:$0xff]
    %v4733 = vld [vmem:[#allocation11 + $0x410] sm:$0xff]
    %v4734 = vld [vmem:[#allocation11 + $0x418] sm:$0xff]
    %v4735 = vld [vmem:[#allocation11 + $0x420] sm:$0xff]
    %v4736 = vld [vmem:[#allocation11 + $0x428] sm:$0xff]
    %v4737 = vld [vmem:[#allocation11 + $0x430] sm:$0xff]
    %v4738 = vld [vmem:[#allocation11 + $0x438] sm:$0xff]
    %v4739 = vld [vmem:[#allocation11 + $0x440] sm:$0xff]
    %v4740 = vld [vmem:[#allocation11 + $0x448] sm:$0xff]
    %v4741 = vld [vmem:[#allocation11 + $0x450] sm:$0xff]
    %v4742 = vld [vmem:[#allocation11 + $0x458] sm:$0xff]
    %v4743 = vld [vmem:[#allocation11 + $0x460] sm:$0xff]
    %v4744 = vld [vmem:[#allocation11 + $0x468] sm:$0xff]
    %v4745 = vld [vmem:[#allocation11 + $0x470] sm:$0xff]
    %v4746 = vld [vmem:[#allocation11 + $0x478] sm:$0xff]
    %v4747 = vld [vmem:[#allocation11 + $0x480] sm:$0xff]
    %v4748 = vld [vmem:[#allocation11 + $0x488] sm:$0xff]
    %v4749 = vld [vmem:[#allocation11 + $0x490] sm:$0xff]
    %v4750 = vld [vmem:[#allocation11 + $0x498] sm:$0xff]
    %v4751 = vld [vmem:[#allocation11 + $0x4a0] sm:$0xff]
    %v4752 = vld [vmem:[#allocation11 + $0x4a8] sm:$0xff]
    %v4753 = vld [vmem:[#allocation11 + $0x4b0] sm:$0xff]
    %v4754 = vld [vmem:[#allocation11 + $0x4b8] sm:$0xff]
    %v4755 = vld [vmem:[#allocation11 + $0x4c0] sm:$0xff]
    %v4756 = vld [vmem:[#allocation11 + $0x4c8] sm:$0xff]
    %v4757 = vld [vmem:[#allocation11 + $0x4d0] sm:$0xff]
    %v4758 = vld [vmem:[#allocation11 + $0x4d8] sm:$0xff]
    %v4759 = vld [vmem:[#allocation11 + $0x4e0] sm:$0xff]
    %v4760 = vld [vmem:[#allocation11 + $0x4e8] sm:$0xff]
    %v4761 = vld [vmem:[#allocation11 + $0x4f0] sm:$0xff]
    %v4762 = vld [vmem:[#allocation11 + $0x4f8] sm:$0xff]
    %v4763 = vld [vmem:[#allocation11 + $0x500] sm:$0xff]
    %v4764 = vld [vmem:[#allocation11 + $0x508] sm:$0xff]
    %v4765 = vld [vmem:[#allocation11 + $0x510] sm:$0xff]
    %v4766 = vld [vmem:[#allocation11 + $0x518] sm:$0xff]
    %v4767 = vld [vmem:[#allocation11 + $0x520] sm:$0xff]
    %v4768 = vld [vmem:[#allocation11 + $0x528] sm:$0xff]
    %v4769 = vld [vmem:[#allocation11 + $0x530] sm:$0xff]
    %v4770 = vld [vmem:[#allocation11 + $0x538] sm:$0xff]
    %v4771 = vld [vmem:[#allocation11 + $0x540] sm:$0xff]
    %v4772 = vld [vmem:[#allocation11 + $0x548] sm:$0xff]
    %v4773 = vld [vmem:[#allocation11 + $0x550] sm:$0xff]
    %v4774 = vld [vmem:[#allocation11 + $0x558] sm:$0xff]
    %v4775 = vld [vmem:[#allocation11 + $0x560] sm:$0xff]
    %v4776 = vld [vmem:[#allocation11 + $0x568] sm:$0xff]
    %v4777 = vld [vmem:[#allocation11 + $0x570] sm:$0xff]
    %v4778 = vld [vmem:[#allocation11 + $0x578] sm:$0xff]
    %v4779 = vld [vmem:[#allocation11 + $0x580] sm:$0xff]
    %v4780 = vld [vmem:[#allocation11 + $0x588] sm:$0xff]
    %v4781 = vld [vmem:[#allocation11 + $0x590] sm:$0xff]
    %v4782 = vld [vmem:[#allocation11 + $0x598] sm:$0xff]
    %v4783 = vld [vmem:[#allocation11 + $0x5a0] sm:$0xff]
    %v4784 = vld [vmem:[#allocation11 + $0x5a8] sm:$0xff]
    %v4785 = vld [vmem:[#allocation11 + $0x5b0] sm:$0xff]
    %v4786 = vld [vmem:[#allocation11 + $0x5b8] sm:$0xff]
    %v4787 = vld [vmem:[#allocation11 + $0x5c0] sm:$0xff]
    %v4788 = vld [vmem:[#allocation11 + $0x5c8] sm:$0xff]
    %v4789 = vld [vmem:[#allocation11 + $0x5d0] sm:$0xff]
    %v4790 = vld [vmem:[#allocation11 + $0x5d8] sm:$0xff]
    %v4791 = vld [vmem:[#allocation11 + $0x5e0] sm:$0xff]
    %v4792 = vld [vmem:[#allocation11 + $0x5e8] sm:$0xff]
    %v4793 = vld [vmem:[#allocation11 + $0x5f0] sm:$0xff]
    %v4794 = vld [vmem:[#allocation11 + $0x5f8] sm:$0xff]
    %v4795 = vld [vmem:[#allocation11 + $0x600] sm:$0xff]
    %v4796 = vld [vmem:[#allocation11 + $0x608] sm:$0xff]
    %v4797 = vld [vmem:[#allocation11 + $0x610] sm:$0xff]
    %v4798 = vld [vmem:[#allocation11 + $0x618] sm:$0xff]
    %v4799 = vld [vmem:[#allocation11 + $0x620] sm:$0xff]
    %v4800 = vld [vmem:[#allocation11 + $0x628] sm:$0xff]
    %v4801 = vld [vmem:[#allocation11 + $0x630] sm:$0xff]
    %v4802 = vld [vmem:[#allocation11 + $0x638] sm:$0xff]
    %v4803 = vld [vmem:[#allocation11 + $0x640] sm:$0xff]
    %v4804 = vld [vmem:[#allocation11 + $0x648] sm:$0xff]
    %v4805 = vld [vmem:[#allocation11 + $0x650] sm:$0xff]
    %v4806 = vld [vmem:[#allocation11 + $0x658] sm:$0xff]
    %v4807 = vld [vmem:[#allocation11 + $0x660] sm:$0xff]
    %v4808 = vld [vmem:[#allocation11 + $0x668] sm:$0xff]
    %v4809 = vld [vmem:[#allocation11 + $0x670] sm:$0xff]
    %v4810 = vld [vmem:[#allocation11 + $0x678] sm:$0xff]
    %v4811 = vld [vmem:[#allocation11 + $0x680] sm:$0xff]
    %v4812 = vld [vmem:[#allocation11 + $0x688] sm:$0xff]
    %v4813 = vld [vmem:[#allocation11 + $0x690] sm:$0xff]
    %v4814 = vld [vmem:[#allocation11 + $0x698] sm:$0xff]
    %v4815 = vld [vmem:[#allocation11 + $0x6a0] sm:$0xff]
    %v4816 = vld [vmem:[#allocation11 + $0x6a8] sm:$0xff]
    %v4817 = vld [vmem:[#allocation11 + $0x6b0] sm:$0xff]
    %v4818 = vld [vmem:[#allocation11 + $0x6b8] sm:$0xff]
    %v4819 = vld [vmem:[#allocation11 + $0x6c0] sm:$0xff]
    %v4820 = vld [vmem:[#allocation11 + $0x6c8] sm:$0xff]
    %v4821 = vld [vmem:[#allocation11 + $0x6d0] sm:$0xff]
    %v4822 = vld [vmem:[#allocation11 + $0x6d8] sm:$0xff]
    %v4823 = vld [vmem:[#allocation11 + $0x6e0] sm:$0xff]
    %v4824 = vld [vmem:[#allocation11 + $0x6e8] sm:$0xff]
    %v4825 = vld [vmem:[#allocation11 + $0x6f0] sm:$0xff]
    %v4826 = vld [vmem:[#allocation11 + $0x6f8] sm:$0xff]
    %v4827 = vld [vmem:[#allocation11 + $0x700] sm:$0xff]
    %v4828 = vld [vmem:[#allocation11 + $0x708] sm:$0xff]
    %v4829 = vld [vmem:[#allocation11 + $0x710] sm:$0xff]
    %v4830 = vld [vmem:[#allocation11 + $0x718] sm:$0xff]
    %v4831 = vld [vmem:[#allocation11 + $0x720] sm:$0xff]
    %v4832 = vld [vmem:[#allocation11 + $0x728] sm:$0xff]
    %v4833 = vld [vmem:[#allocation11 + $0x730] sm:$0xff]
    %v4834 = vld [vmem:[#allocation11 + $0x738] sm:$0xff]
    %v4835 = vld [vmem:[#allocation11 + $0x740] sm:$0xff]
    %v4836 = vld [vmem:[#allocation11 + $0x748] sm:$0xff]
    %v4837 = vld [vmem:[#allocation11 + $0x750] sm:$0xff]
    %v4838 = vld [vmem:[#allocation11 + $0x758] sm:$0xff]
    %v4839 = vld [vmem:[#allocation11 + $0x760] sm:$0xff]
    %v4840 = vld [vmem:[#allocation11 + $0x768] sm:$0xff]
    %v4841 = vld [vmem:[#allocation11 + $0x770] sm:$0xff]
    %v4842 = vld [vmem:[#allocation11 + $0x778] sm:$0xff]
    %v4843 = vld [vmem:[#allocation11 + $0x780] sm:$0xff]
    %v4844 = vld [vmem:[#allocation11 + $0x788] sm:$0xff]
    %v4845 = vld [vmem:[#allocation11 + $0x790] sm:$0xff]
    %v4846 = vld [vmem:[#allocation11 + $0x798] sm:$0xff]
    %v4847 = vld [vmem:[#allocation11 + $0x7a0] sm:$0xff]
    %v4848 = vld [vmem:[#allocation11 + $0x7a8] sm:$0xff]
    %v4849 = vld [vmem:[#allocation11 + $0x7b0] sm:$0xff]
    %v4850 = vld [vmem:[#allocation11 + $0x7b8] sm:$0xff]
    %v4851 = vld [vmem:[#allocation11 + $0x7c0] sm:$0xff]
    %v4852 = vld [vmem:[#allocation11 + $0x7c8] sm:$0xff]
    %v4853 = vld [vmem:[#allocation11 + $0x7d0] sm:$0xff]
    %v4854 = vld [vmem:[#allocation11 + $0x7d8] sm:$0xff]
    %v4855 = vld [vmem:[#allocation11 + $0x7e0] sm:$0xff]
    %v4856 = vld [vmem:[#allocation11 + $0x7e8] sm:$0xff]
    %v4857 = vld [vmem:[#allocation11 + $0x7f0] sm:$0xff]
    %v4858 = vld [vmem:[#allocation11 + $0x7f8] sm:$0xff]
    %v4859 = vld [vmem:[#allocation13] sm:$0xf]
    %v4861 = vlaneseq
    %v4862 = vshrl.u32 %v4861, 7
    %v4863 = vsub.s32 0, %v4862
    %v4864 = vrot.slane %v4859, %v4863
    %v4865 = vlaneseq
    %v4866 = vshrl.u32 %v4865, 7
    %v4867 = vsub.s32 1, %v4866
    %v4868 = vrot.slane %v4859, %v4867
    %v4869 = vlaneseq
    %v4870 = vshrl.u32 %v4869, 7
    %v4871 = vsub.s32 2, %v4870
    %v4872 = vrot.slane %v4859, %v4871
    %v4873 = vlaneseq
    %v4874 = vshrl.u32 %v4873, 7
    %v4875 = vsub.s32 3, %v4874
    %v4876 = vrot.slane %v4859, %v4875
    %v5137 = vunpack.c.l.b16 %v4603
    %v5138 = vunpack.c.h.b16 %v4603
    %v5139 = vunpack.c.l.b16 %v4604
    %v5140 = vunpack.c.h.b16 %v4604
    %v5141 = vunpack.c.l.b16 %v4605
    %v5142 = vunpack.c.h.b16 %v4605
    %v5143 = vunpack.c.l.b16 %v4606
    %v5144 = vunpack.c.h.b16 %v4606
    %v5145 = vunpack.c.l.b16 %v4607
    %v5146 = vunpack.c.h.b16 %v4607
    %v5147 = vunpack.c.l.b16 %v4608
    %v5148 = vunpack.c.h.b16 %v4608
    %v5149 = vunpack.c.l.b16 %v4609
    %v5150 = vunpack.c.h.b16 %v4609
    %v5151 = vunpack.c.l.b16 %v4610
    %v5152 = vunpack.c.h.b16 %v4610
    %v5153 = vunpack.c.l.b16 %v4611
    %v5154 = vunpack.c.h.b16 %v4611
    %v5155 = vunpack.c.l.b16 %v4612
    %v5156 = vunpack.c.h.b16 %v4612
    %v5157 = vunpack.c.l.b16 %v4613
    %v5158 = vunpack.c.h.b16 %v4613
    %v5159 = vunpack.c.l.b16 %v4614
    %v5160 = vunpack.c.h.b16 %v4614
    %v5161 = vunpack.c.l.b16 %v4615
    %v5162 = vunpack.c.h.b16 %v4615
    %v5163 = vunpack.c.l.b16 %v4616
    %v5164 = vunpack.c.h.b16 %v4616
    %v5165 = vunpack.c.l.b16 %v4617
    %v5166 = vunpack.c.h.b16 %v4617
    %v5167 = vunpack.c.l.b16 %v4618
    %v5168 = vunpack.c.h.b16 %v4618
    %v5169 = vunpack.c.l.b16 %v4619
    %v5170 = vunpack.c.h.b16 %v4619
    %v5171 = vunpack.c.l.b16 %v4620
    %v5172 = vunpack.c.h.b16 %v4620
    %v5173 = vunpack.c.l.b16 %v4621
    %v5174 = vunpack.c.h.b16 %v4621
    %v5175 = vunpack.c.l.b16 %v4622
    %v5176 = vunpack.c.h.b16 %v4622
    %v5177 = vunpack.c.l.b16 %v4623
    %v5178 = vunpack.c.h.b16 %v4623
    %v5179 = vunpack.c.l.b16 %v4624
    %v5180 = vunpack.c.h.b16 %v4624
    %v5181 = vunpack.c.l.b16 %v4625
    %v5182 = vunpack.c.h.b16 %v4625
    %v5183 = vunpack.c.l.b16 %v4626
    %v5184 = vunpack.c.h.b16 %v4626
    %v5185 = vunpack.c.l.b16 %v4627
    %v5186 = vunpack.c.h.b16 %v4627
    %v5187 = vunpack.c.l.b16 %v4628
    %v5188 = vunpack.c.h.b16 %v4628
    %v5189 = vunpack.c.l.b16 %v4629
    %v5190 = vunpack.c.h.b16 %v4629
    %v5191 = vunpack.c.l.b16 %v4630
    %v5192 = vunpack.c.h.b16 %v4630
    %v5193 = vunpack.c.l.b16 %v4631
    %v5194 = vunpack.c.h.b16 %v4631
    %v5195 = vunpack.c.l.b16 %v4632
    %v5196 = vunpack.c.h.b16 %v4632
    %v5197 = vunpack.c.l.b16 %v4633
    %v5198 = vunpack.c.h.b16 %v4633
    %v5199 = vunpack.c.l.b16 %v4634
    %v5200 = vunpack.c.h.b16 %v4634
    %v5201 = vunpack.c.l.b16 %v4635
    %v5202 = vunpack.c.h.b16 %v4635
    %v5203 = vunpack.c.l.b16 %v4636
    %v5204 = vunpack.c.h.b16 %v4636
    %v5205 = vunpack.c.l.b16 %v4637
    %v5206 = vunpack.c.h.b16 %v4637
    %v5207 = vunpack.c.l.b16 %v4638
    %v5208 = vunpack.c.h.b16 %v4638
    %v5209 = vunpack.c.l.b16 %v4639
    %v5210 = vunpack.c.h.b16 %v4639
    %v5211 = vunpack.c.l.b16 %v4640
    %v5212 = vunpack.c.h.b16 %v4640
    %v5213 = vunpack.c.l.b16 %v4641
    %v5214 = vunpack.c.h.b16 %v4641
    %v5215 = vunpack.c.l.b16 %v4642
    %v5216 = vunpack.c.h.b16 %v4642
    %v5217 = vunpack.c.l.b16 %v4643
    %v5218 = vunpack.c.h.b16 %v4643
    %v5219 = vunpack.c.l.b16 %v4644
    %v5220 = vunpack.c.h.b16 %v4644
    %v5221 = vunpack.c.l.b16 %v4645
    %v5222 = vunpack.c.h.b16 %v4645
    %v5223 = vunpack.c.l.b16 %v4646
    %v5224 = vunpack.c.h.b16 %v4646
    %v5225 = vunpack.c.l.b16 %v4647
    %v5226 = vunpack.c.h.b16 %v4647
    %v5227 = vunpack.c.l.b16 %v4648
    %v5228 = vunpack.c.h.b16 %v4648
    %v5229 = vunpack.c.l.b16 %v4649
    %v5230 = vunpack.c.h.b16 %v4649
    %v5231 = vunpack.c.l.b16 %v4650
    %v5232 = vunpack.c.h.b16 %v4650
    %v5233 = vunpack.c.l.b16 %v4651
    %v5234 = vunpack.c.h.b16 %v4651
    %v5235 = vunpack.c.l.b16 %v4652
    %v5236 = vunpack.c.h.b16 %v4652
    %v5237 = vunpack.c.l.b16 %v4653
    %v5238 = vunpack.c.h.b16 %v4653
    %v5239 = vunpack.c.l.b16 %v4654
    %v5240 = vunpack.c.h.b16 %v4654
    %v5241 = vunpack.c.l.b16 %v4655
    %v5242 = vunpack.c.h.b16 %v4655
    %v5243 = vunpack.c.l.b16 %v4656
    %v5244 = vunpack.c.h.b16 %v4656
    %v5245 = vunpack.c.l.b16 %v4657
    %v5246 = vunpack.c.h.b16 %v4657
    %v5247 = vunpack.c.l.b16 %v4658
    %v5248 = vunpack.c.h.b16 %v4658
    %v5249 = vunpack.c.l.b16 %v4659
    %v5250 = vunpack.c.h.b16 %v4659
    %v5251 = vunpack.c.l.b16 %v4660
    %v5252 = vunpack.c.h.b16 %v4660
    %v5253 = vunpack.c.l.b16 %v4661
    %v5254 = vunpack.c.h.b16 %v4661
    %v5255 = vunpack.c.l.b16 %v4662
    %v5256 = vunpack.c.h.b16 %v4662
    %v5257 = vunpack.c.l.b16 %v4663
    %v5258 = vunpack.c.h.b16 %v4663
    %v5259 = vunpack.c.l.b16 %v4664
    %v5260 = vunpack.c.h.b16 %v4664
    %v5261 = vunpack.c.l.b16 %v4665
    %v5262 = vunpack.c.h.b16 %v4665
    %v5263 = vunpack.c.l.b16 %v4666
    %v5264 = vunpack.c.h.b16 %v4666
    %v5265 = vunpack.c.l.b16 %v4667
    %v5266 = vunpack.c.h.b16 %v4667
    %v5267 = vunpack.c.l.b16 %v4668
    %v5268 = vunpack.c.h.b16 %v4668
    %v5269 = vunpack.c.l.b16 %v4669
    %v5270 = vunpack.c.h.b16 %v4669
    %v5271 = vunpack.c.l.b16 %v4670
    %v5272 = vunpack.c.h.b16 %v4670
    %v5273 = vunpack.c.l.b16 %v4671
    %v5274 = vunpack.c.h.b16 %v4671
    %v5275 = vunpack.c.l.b16 %v4672
    %v5276 = vunpack.c.h.b16 %v4672
    %v5277 = vunpack.c.l.b16 %v4673
    %v5278 = vunpack.c.h.b16 %v4673
    %v5279 = vunpack.c.l.b16 %v4674
    %v5280 = vunpack.c.h.b16 %v4674
    %v5281 = vunpack.c.l.b16 %v4675
    %v5282 = vunpack.c.h.b16 %v4675
    %v5283 = vunpack.c.l.b16 %v4676
    %v5284 = vunpack.c.h.b16 %v4676
    %v5285 = vunpack.c.l.b16 %v4677
    %v5286 = vunpack.c.h.b16 %v4677
    %v5287 = vunpack.c.l.b16 %v4678
    %v5288 = vunpack.c.h.b16 %v4678
    %v5289 = vunpack.c.l.b16 %v4679
    %v5290 = vunpack.c.h.b16 %v4679
    %v5291 = vunpack.c.l.b16 %v4680
    %v5292 = vunpack.c.h.b16 %v4680
    %v5293 = vunpack.c.l.b16 %v4681
    %v5294 = vunpack.c.h.b16 %v4681
    %v5295 = vunpack.c.l.b16 %v4682
    %v5296 = vunpack.c.h.b16 %v4682
    %v5297 = vunpack.c.l.b16 %v4683
    %v5298 = vunpack.c.h.b16 %v4683
    %v5299 = vunpack.c.l.b16 %v4684
    %v5300 = vunpack.c.h.b16 %v4684
    %v5301 = vunpack.c.l.b16 %v4685
    %v5302 = vunpack.c.h.b16 %v4685
    %v5303 = vunpack.c.l.b16 %v4686
    %v5304 = vunpack.c.h.b16 %v4686
    %v5305 = vunpack.c.l.b16 %v4687
    %v5306 = vunpack.c.h.b16 %v4687
    %v5307 = vunpack.c.l.b16 %v4688
    %v5308 = vunpack.c.h.b16 %v4688
    %v5309 = vunpack.c.l.b16 %v4689
    %v5310 = vunpack.c.h.b16 %v4689
    %v5311 = vunpack.c.l.b16 %v4690
    %v5312 = vunpack.c.h.b16 %v4690
    %v5313 = vunpack.c.l.b16 %v4691
    %v5314 = vunpack.c.h.b16 %v4691
    %v5315 = vunpack.c.l.b16 %v4692
    %v5316 = vunpack.c.h.b16 %v4692
    %v5317 = vunpack.c.l.b16 %v4693
    %v5318 = vunpack.c.h.b16 %v4693
    %v5319 = vunpack.c.l.b16 %v4694
    %v5320 = vunpack.c.h.b16 %v4694
    %v5321 = vunpack.c.l.b16 %v4695
    %v5322 = vunpack.c.h.b16 %v4695
    %v5323 = vunpack.c.l.b16 %v4696
    %v5324 = vunpack.c.h.b16 %v4696
    %v5325 = vunpack.c.l.b16 %v4697
    %v5326 = vunpack.c.h.b16 %v4697
    %v5327 = vunpack.c.l.b16 %v4698
    %v5328 = vunpack.c.h.b16 %v4698
    %v5329 = vunpack.c.l.b16 %v4699
    %v5330 = vunpack.c.h.b16 %v4699
    %v5331 = vunpack.c.l.b16 %v4700
    %v5332 = vunpack.c.h.b16 %v4700
    %v5333 = vunpack.c.l.b16 %v4701
    %v5334 = vunpack.c.h.b16 %v4701
    %v5335 = vunpack.c.l.b16 %v4702
    %v5336 = vunpack.c.h.b16 %v4702
    %v5337 = vunpack.c.l.b16 %v4703
    %v5338 = vunpack.c.h.b16 %v4703
    %v5339 = vunpack.c.l.b16 %v4704
    %v5340 = vunpack.c.h.b16 %v4704
    %v5341 = vunpack.c.l.b16 %v4705
    %v5342 = vunpack.c.h.b16 %v4705
    %v5343 = vunpack.c.l.b16 %v4706
    %v5344 = vunpack.c.h.b16 %v4706
    %v5345 = vunpack.c.l.b16 %v4707
    %v5346 = vunpack.c.h.b16 %v4707
    %v5347 = vunpack.c.l.b16 %v4708
    %v5348 = vunpack.c.h.b16 %v4708
    %v5349 = vunpack.c.l.b16 %v4709
    %v5350 = vunpack.c.h.b16 %v4709
    %v5351 = vunpack.c.l.b16 %v4710
    %v5352 = vunpack.c.h.b16 %v4710
    %v5353 = vunpack.c.l.b16 %v4711
    %v5354 = vunpack.c.h.b16 %v4711
    %v5355 = vunpack.c.l.b16 %v4712
    %v5356 = vunpack.c.h.b16 %v4712
    %v5357 = vunpack.c.l.b16 %v4713
    %v5358 = vunpack.c.h.b16 %v4713
    %v5359 = vunpack.c.l.b16 %v4714
    %v5360 = vunpack.c.h.b16 %v4714
    %v5361 = vunpack.c.l.b16 %v4715
    %v5362 = vunpack.c.h.b16 %v4715
    %v5363 = vunpack.c.l.b16 %v4716
    %v5364 = vunpack.c.h.b16 %v4716
    %v5365 = vunpack.c.l.b16 %v4717
    %v5366 = vunpack.c.h.b16 %v4717
    %v5367 = vunpack.c.l.b16 %v4718
    %v5368 = vunpack.c.h.b16 %v4718
    %v5369 = vunpack.c.l.b16 %v4719
    %v5370 = vunpack.c.h.b16 %v4719
    %v5371 = vunpack.c.l.b16 %v4720
    %v5372 = vunpack.c.h.b16 %v4720
    %v5373 = vunpack.c.l.b16 %v4721
    %v5374 = vunpack.c.h.b16 %v4721
    %v5375 = vunpack.c.l.b16 %v4722
    %v5376 = vunpack.c.h.b16 %v4722
    %v5377 = vunpack.c.l.b16 %v4723
    %v5378 = vunpack.c.h.b16 %v4723
    %v5379 = vunpack.c.l.b16 %v4724
    %v5380 = vunpack.c.h.b16 %v4724
    %v5381 = vunpack.c.l.b16 %v4725
    %v5382 = vunpack.c.h.b16 %v4725
    %v5383 = vunpack.c.l.b16 %v4726
    %v5384 = vunpack.c.h.b16 %v4726
    %v5385 = vunpack.c.l.b16 %v4727
    %v5386 = vunpack.c.h.b16 %v4727
    %v5387 = vunpack.c.l.b16 %v4728
    %v5388 = vunpack.c.h.b16 %v4728
    %v5389 = vunpack.c.l.b16 %v4729
    %v5390 = vunpack.c.h.b16 %v4729
    %v5391 = vunpack.c.l.b16 %v4730
    %v5392 = vunpack.c.h.b16 %v4730
    %v5393 = vunpack.c.l.b16 %v4731
    %v5394 = vunpack.c.h.b16 %v4731
    %v5395 = vunpack.c.l.b16 %v4732
    %v5396 = vunpack.c.h.b16 %v4732
    %v5397 = vunpack.c.l.b16 %v4733
    %v5398 = vunpack.c.h.b16 %v4733
    %v5399 = vunpack.c.l.b16 %v4734
    %v5400 = vunpack.c.h.b16 %v4734
    %v5401 = vunpack.c.l.b16 %v4735
    %v5402 = vunpack.c.h.b16 %v4735
    %v5403 = vunpack.c.l.b16 %v4736
    %v5404 = vunpack.c.h.b16 %v4736
    %v5405 = vunpack.c.l.b16 %v4737
    %v5406 = vunpack.c.h.b16 %v4737
    %v5407 = vunpack.c.l.b16 %v4738
    %v5408 = vunpack.c.h.b16 %v4738
    %v5409 = vunpack.c.l.b16 %v4739
    %v5410 = vunpack.c.h.b16 %v4739
    %v5411 = vunpack.c.l.b16 %v4740
    %v5412 = vunpack.c.h.b16 %v4740
    %v5413 = vunpack.c.l.b16 %v4741
    %v5414 = vunpack.c.h.b16 %v4741
    %v5415 = vunpack.c.l.b16 %v4742
    %v5416 = vunpack.c.h.b16 %v4742
    %v5417 = vunpack.c.l.b16 %v4743
    %v5418 = vunpack.c.h.b16 %v4743
    %v5419 = vunpack.c.l.b16 %v4744
    %v5420 = vunpack.c.h.b16 %v4744
    %v5421 = vunpack.c.l.b16 %v4745
    %v5422 = vunpack.c.h.b16 %v4745
    %v5423 = vunpack.c.l.b16 %v4746
    %v5424 = vunpack.c.h.b16 %v4746
    %v5425 = vunpack.c.l.b16 %v4747
    %v5426 = vunpack.c.h.b16 %v4747
    %v5427 = vunpack.c.l.b16 %v4748
    %v5428 = vunpack.c.h.b16 %v4748
    %v5429 = vunpack.c.l.b16 %v4749
    %v5430 = vunpack.c.h.b16 %v4749
    %v5431 = vunpack.c.l.b16 %v4750
    %v5432 = vunpack.c.h.b16 %v4750
    %v5433 = vunpack.c.l.b16 %v4751
    %v5434 = vunpack.c.h.b16 %v4751
    %v5435 = vunpack.c.l.b16 %v4752
    %v5436 = vunpack.c.h.b16 %v4752
    %v5437 = vunpack.c.l.b16 %v4753
    %v5438 = vunpack.c.h.b16 %v4753
    %v5439 = vunpack.c.l.b16 %v4754
    %v5440 = vunpack.c.h.b16 %v4754
    %v5441 = vunpack.c.l.b16 %v4755
    %v5442 = vunpack.c.h.b16 %v4755
    %v5443 = vunpack.c.l.b16 %v4756
    %v5444 = vunpack.c.h.b16 %v4756
    %v5445 = vunpack.c.l.b16 %v4757
    %v5446 = vunpack.c.h.b16 %v4757
    %v5447 = vunpack.c.l.b16 %v4758
    %v5448 = vunpack.c.h.b16 %v4758
    %v5449 = vunpack.c.l.b16 %v4759
    %v5450 = vunpack.c.h.b16 %v4759
    %v5451 = vunpack.c.l.b16 %v4760
    %v5452 = vunpack.c.h.b16 %v4760
    %v5453 = vunpack.c.l.b16 %v4761
    %v5454 = vunpack.c.h.b16 %v4761
    %v5455 = vunpack.c.l.b16 %v4762
    %v5456 = vunpack.c.h.b16 %v4762
    %v5457 = vunpack.c.l.b16 %v4763
    %v5458 = vunpack.c.h.b16 %v4763
    %v5459 = vunpack.c.l.b16 %v4764
    %v5460 = vunpack.c.h.b16 %v4764
    %v5461 = vunpack.c.l.b16 %v4765
    %v5462 = vunpack.c.h.b16 %v4765
    %v5463 = vunpack.c.l.b16 %v4766
    %v5464 = vunpack.c.h.b16 %v4766
    %v5465 = vunpack.c.l.b16 %v4767
    %v5466 = vunpack.c.h.b16 %v4767
    %v5467 = vunpack.c.l.b16 %v4768
    %v5468 = vunpack.c.h.b16 %v4768
    %v5469 = vunpack.c.l.b16 %v4769
    %v5470 = vunpack.c.h.b16 %v4769
    %v5471 = vunpack.c.l.b16 %v4770
    %v5472 = vunpack.c.h.b16 %v4770
    %v5473 = vunpack.c.l.b16 %v4771
    %v5474 = vunpack.c.h.b16 %v4771
    %v5475 = vunpack.c.l.b16 %v4772
    %v5476 = vunpack.c.h.b16 %v4772
    %v5477 = vunpack.c.l.b16 %v4773
    %v5478 = vunpack.c.h.b16 %v4773
    %v5479 = vunpack.c.l.b16 %v4774
    %v5480 = vunpack.c.h.b16 %v4774
    %v5481 = vunpack.c.l.b16 %v4775
    %v5482 = vunpack.c.h.b16 %v4775
    %v5483 = vunpack.c.l.b16 %v4776
    %v5484 = vunpack.c.h.b16 %v4776
    %v5485 = vunpack.c.l.b16 %v4777
    %v5486 = vunpack.c.h.b16 %v4777
    %v5487 = vunpack.c.l.b16 %v4778
    %v5488 = vunpack.c.h.b16 %v4778
    %v5489 = vunpack.c.l.b16 %v4779
    %v5490 = vunpack.c.h.b16 %v4779
    %v5491 = vunpack.c.l.b16 %v4780
    %v5492 = vunpack.c.h.b16 %v4780
    %v5493 = vunpack.c.l.b16 %v4781
    %v5494 = vunpack.c.h.b16 %v4781
    %v5495 = vunpack.c.l.b16 %v4782
    %v5496 = vunpack.c.h.b16 %v4782
    %v5497 = vunpack.c.l.b16 %v4783
    %v5498 = vunpack.c.h.b16 %v4783
    %v5499 = vunpack.c.l.b16 %v4784
    %v5500 = vunpack.c.h.b16 %v4784
    %v5501 = vunpack.c.l.b16 %v4785
    %v5502 = vunpack.c.h.b16 %v4785
    %v5503 = vunpack.c.l.b16 %v4786
    %v5504 = vunpack.c.h.b16 %v4786
    %v5505 = vunpack.c.l.b16 %v4787
    %v5506 = vunpack.c.h.b16 %v4787
    %v5507 = vunpack.c.l.b16 %v4788
    %v5508 = vunpack.c.h.b16 %v4788
    %v5509 = vunpack.c.l.b16 %v4789
    %v5510 = vunpack.c.h.b16 %v4789
    %v5511 = vunpack.c.l.b16 %v4790
    %v5512 = vunpack.c.h.b16 %v4790
    %v5513 = vunpack.c.l.b16 %v4791
    %v5514 = vunpack.c.h.b16 %v4791
    %v5515 = vunpack.c.l.b16 %v4792
    %v5516 = vunpack.c.h.b16 %v4792
    %v5517 = vunpack.c.l.b16 %v4793
    %v5518 = vunpack.c.h.b16 %v4793
    %v5519 = vunpack.c.l.b16 %v4794
    %v5520 = vunpack.c.h.b16 %v4794
    %v5521 = vunpack.c.l.b16 %v4795
    %v5522 = vunpack.c.h.b16 %v4795
    %v5523 = vunpack.c.l.b16 %v4796
    %v5524 = vunpack.c.h.b16 %v4796
    %v5525 = vunpack.c.l.b16 %v4797
    %v5526 = vunpack.c.h.b16 %v4797
    %v5527 = vunpack.c.l.b16 %v4798
    %v5528 = vunpack.c.h.b16 %v4798
    %v5529 = vunpack.c.l.b16 %v4799
    %v5530 = vunpack.c.h.b16 %v4799
    %v5531 = vunpack.c.l.b16 %v4800
    %v5532 = vunpack.c.h.b16 %v4800
    %v5533 = vunpack.c.l.b16 %v4801
    %v5534 = vunpack.c.h.b16 %v4801
    %v5535 = vunpack.c.l.b16 %v4802
    %v5536 = vunpack.c.h.b16 %v4802
    %v5537 = vunpack.c.l.b16 %v4803
    %v5538 = vunpack.c.h.b16 %v4803
    %v5539 = vunpack.c.l.b16 %v4804
    %v5540 = vunpack.c.h.b16 %v4804
    %v5541 = vunpack.c.l.b16 %v4805
    %v5542 = vunpack.c.h.b16 %v4805
    %v5543 = vunpack.c.l.b16 %v4806
    %v5544 = vunpack.c.h.b16 %v4806
    %v5545 = vunpack.c.l.b16 %v4807
    %v5546 = vunpack.c.h.b16 %v4807
    %v5547 = vunpack.c.l.b16 %v4808
    %v5548 = vunpack.c.h.b16 %v4808
    %v5549 = vunpack.c.l.b16 %v4809
    %v5550 = vunpack.c.h.b16 %v4809
    %v5551 = vunpack.c.l.b16 %v4810
    %v5552 = vunpack.c.h.b16 %v4810
    %v5553 = vunpack.c.l.b16 %v4811
    %v5554 = vunpack.c.h.b16 %v4811
    %v5555 = vunpack.c.l.b16 %v4812
    %v5556 = vunpack.c.h.b16 %v4812
    %v5557 = vunpack.c.l.b16 %v4813
    %v5558 = vunpack.c.h.b16 %v4813
    %v5559 = vunpack.c.l.b16 %v4814
    %v5560 = vunpack.c.h.b16 %v4814
    %v5561 = vunpack.c.l.b16 %v4815
    %v5562 = vunpack.c.h.b16 %v4815
    %v5563 = vunpack.c.l.b16 %v4816
    %v5564 = vunpack.c.h.b16 %v4816
    %v5565 = vunpack.c.l.b16 %v4817
    %v5566 = vunpack.c.h.b16 %v4817
    %v5567 = vunpack.c.l.b16 %v4818
    %v5568 = vunpack.c.h.b16 %v4818
    %v5569 = vunpack.c.l.b16 %v4819
    %v5570 = vunpack.c.h.b16 %v4819
    %v5571 = vunpack.c.l.b16 %v4820
    %v5572 = vunpack.c.h.b16 %v4820
    %v5573 = vunpack.c.l.b16 %v4821
    %v5574 = vunpack.c.h.b16 %v4821
    %v5575 = vunpack.c.l.b16 %v4822
    %v5576 = vunpack.c.h.b16 %v4822
    %v5577 = vunpack.c.l.b16 %v4823
    %v5578 = vunpack.c.h.b16 %v4823
    %v5579 = vunpack.c.l.b16 %v4824
    %v5580 = vunpack.c.h.b16 %v4824
    %v5581 = vunpack.c.l.b16 %v4825
    %v5582 = vunpack.c.h.b16 %v4825
    %v5583 = vunpack.c.l.b16 %v4826
    %v5584 = vunpack.c.h.b16 %v4826
    %v5585 = vunpack.c.l.b16 %v4827
    %v5586 = vunpack.c.h.b16 %v4827
    %v5587 = vunpack.c.l.b16 %v4828
    %v5588 = vunpack.c.h.b16 %v4828
    %v5589 = vunpack.c.l.b16 %v4829
    %v5590 = vunpack.c.h.b16 %v4829
    %v5591 = vunpack.c.l.b16 %v4830
    %v5592 = vunpack.c.h.b16 %v4830
    %v5593 = vunpack.c.l.b16 %v4831
    %v5594 = vunpack.c.h.b16 %v4831
    %v5595 = vunpack.c.l.b16 %v4832
    %v5596 = vunpack.c.h.b16 %v4832
    %v5597 = vunpack.c.l.b16 %v4833
    %v5598 = vunpack.c.h.b16 %v4833
    %v5599 = vunpack.c.l.b16 %v4834
    %v5600 = vunpack.c.h.b16 %v4834
    %v5601 = vunpack.c.l.b16 %v4835
    %v5602 = vunpack.c.h.b16 %v4835
    %v5603 = vunpack.c.l.b16 %v4836
    %v5604 = vunpack.c.h.b16 %v4836
    %v5605 = vunpack.c.l.b16 %v4837
    %v5606 = vunpack.c.h.b16 %v4837
    %v5607 = vunpack.c.l.b16 %v4838
    %v5608 = vunpack.c.h.b16 %v4838
    %v5609 = vunpack.c.l.b16 %v4839
    %v5610 = vunpack.c.h.b16 %v4839
    %v5611 = vunpack.c.l.b16 %v4840
    %v5612 = vunpack.c.h.b16 %v4840
    %v5613 = vunpack.c.l.b16 %v4841
    %v5614 = vunpack.c.h.b16 %v4841
    %v5615 = vunpack.c.l.b16 %v4842
    %v5616 = vunpack.c.h.b16 %v4842
    %v5617 = vunpack.c.l.b16 %v4843
    %v5618 = vunpack.c.h.b16 %v4843
    %v5619 = vunpack.c.l.b16 %v4844
    %v5620 = vunpack.c.h.b16 %v4844
    %v5621 = vunpack.c.l.b16 %v4845
    %v5622 = vunpack.c.h.b16 %v4845
    %v5623 = vunpack.c.l.b16 %v4846
    %v5624 = vunpack.c.h.b16 %v4846
    %v5625 = vunpack.c.l.b16 %v4847
    %v5626 = vunpack.c.h.b16 %v4847
    %v5627 = vunpack.c.l.b16 %v4848
    %v5628 = vunpack.c.h.b16 %v4848
    %v5629 = vunpack.c.l.b16 %v4849
    %v5630 = vunpack.c.h.b16 %v4849
    %v5631 = vunpack.c.l.b16 %v4850
    %v5632 = vunpack.c.h.b16 %v4850
    %v5633 = vunpack.c.l.b16 %v4851
    %v5634 = vunpack.c.h.b16 %v4851
    %v5635 = vunpack.c.l.b16 %v4852
    %v5636 = vunpack.c.h.b16 %v4852
    %v5637 = vunpack.c.l.b16 %v4853
    %v5638 = vunpack.c.h.b16 %v4853
    %v5639 = vunpack.c.l.b16 %v4854
    %v5640 = vunpack.c.h.b16 %v4854
    %v5641 = vunpack.c.l.b16 %v4855
    %v5642 = vunpack.c.h.b16 %v4855
    %v5643 = vunpack.c.l.b16 %v4856
    %v5644 = vunpack.c.h.b16 %v4856
    %v5645 = vunpack.c.l.b16 %v4857
    %v5646 = vunpack.c.h.b16 %v4857
    %v5647 = vunpack.c.l.b16 %v4858
    %v5648 = vunpack.c.h.b16 %v4858
    %v5649 = vpack.c.b16 %v5141, %v5137
    %v5650 = vpack.c.b16 %v5142, %v5138
    %v5651 = vpack.c.b16 %v5143, %v5139
    %v5652 = vpack.c.b16 %v5144, %v5140
    %v5653 = vpack.c.b16 %v5149, %v5145
    %v5654 = vpack.c.b16 %v5150, %v5146
    %v5655 = vpack.c.b16 %v5151, %v5147
    %v5656 = vpack.c.b16 %v5152, %v5148
    %v5657 = vpack.c.b16 %v5157, %v5153
    %v5658 = vpack.c.b16 %v5158, %v5154
    %v5659 = vpack.c.b16 %v5159, %v5155
    %v5660 = vpack.c.b16 %v5160, %v5156
    %v5661 = vpack.c.b16 %v5165, %v5161
    %v5662 = vpack.c.b16 %v5166, %v5162
    %v5663 = vpack.c.b16 %v5167, %v5163
    %v5664 = vpack.c.b16 %v5168, %v5164
    %v5665 = vpack.c.b16 %v5173, %v5169
    %v5666 = vpack.c.b16 %v5174, %v5170
    %v5667 = vpack.c.b16 %v5175, %v5171
    %v5668 = vpack.c.b16 %v5176, %v5172
    %v5669 = vpack.c.b16 %v5181, %v5177
    %v5670 = vpack.c.b16 %v5182, %v5178
    %v5671 = vpack.c.b16 %v5183, %v5179
    %v5672 = vpack.c.b16 %v5184, %v5180
    %v5673 = vpack.c.b16 %v5189, %v5185
    %v5674 = vpack.c.b16 %v5190, %v5186
    %v5675 = vpack.c.b16 %v5191, %v5187
    %v5676 = vpack.c.b16 %v5192, %v5188
    %v5677 = vpack.c.b16 %v5197, %v5193
    %v5678 = vpack.c.b16 %v5198, %v5194
    %v5679 = vpack.c.b16 %v5199, %v5195
    %v5680 = vpack.c.b16 %v5200, %v5196
    %v5681 = vpack.c.b16 %v5205, %v5201
    %v5682 = vpack.c.b16 %v5206, %v5202
    %v5683 = vpack.c.b16 %v5207, %v5203
    %v5684 = vpack.c.b16 %v5208, %v5204
    %v5685 = vpack.c.b16 %v5213, %v5209
    %v5686 = vpack.c.b16 %v5214, %v5210
    %v5687 = vpack.c.b16 %v5215, %v5211
    %v5688 = vpack.c.b16 %v5216, %v5212
    %v5689 = vpack.c.b16 %v5221, %v5217
    %v5690 = vpack.c.b16 %v5222, %v5218
    %v5691 = vpack.c.b16 %v5223, %v5219
    %v5692 = vpack.c.b16 %v5224, %v5220
    %v5693 = vpack.c.b16 %v5229, %v5225
    %v5694 = vpack.c.b16 %v5230, %v5226
    %v5695 = vpack.c.b16 %v5231, %v5227
    %v5696 = vpack.c.b16 %v5232, %v5228
    %v5697 = vpack.c.b16 %v5237, %v5233
    %v5698 = vpack.c.b16 %v5238, %v5234
    %v5699 = vpack.c.b16 %v5239, %v5235
    %v5700 = vpack.c.b16 %v5240, %v5236
    %v5701 = vpack.c.b16 %v5245, %v5241
    %v5702 = vpack.c.b16 %v5246, %v5242
    %v5703 = vpack.c.b16 %v5247, %v5243
    %v5704 = vpack.c.b16 %v5248, %v5244
    %v5705 = vpack.c.b16 %v5253, %v5249
    %v5706 = vpack.c.b16 %v5254, %v5250
    %v5707 = vpack.c.b16 %v5255, %v5251
    %v5708 = vpack.c.b16 %v5256, %v5252
    %v5709 = vpack.c.b16 %v5261, %v5257
    %v5710 = vpack.c.b16 %v5262, %v5258
    %v5711 = vpack.c.b16 %v5263, %v5259
    %v5712 = vpack.c.b16 %v5264, %v5260
    %v5713 = vpack.c.b16 %v5269, %v5265
    %v5714 = vpack.c.b16 %v5270, %v5266
    %v5715 = vpack.c.b16 %v5271, %v5267
    %v5716 = vpack.c.b16 %v5272, %v5268
    %v5717 = vpack.c.b16 %v5277, %v5273
    %v5718 = vpack.c.b16 %v5278, %v5274
    %v5719 = vpack.c.b16 %v5279, %v5275
    %v5720 = vpack.c.b16 %v5280, %v5276
    %v5721 = vpack.c.b16 %v5285, %v5281
    %v5722 = vpack.c.b16 %v5286, %v5282
    %v5723 = vpack.c.b16 %v5287, %v5283
    %v5724 = vpack.c.b16 %v5288, %v5284
    %v5725 = vpack.c.b16 %v5293, %v5289
    %v5726 = vpack.c.b16 %v5294, %v5290
    %v5727 = vpack.c.b16 %v5295, %v5291
    %v5728 = vpack.c.b16 %v5296, %v5292
    %v5729 = vpack.c.b16 %v5301, %v5297
    %v5730 = vpack.c.b16 %v5302, %v5298
    %v5731 = vpack.c.b16 %v5303, %v5299
    %v5732 = vpack.c.b16 %v5304, %v5300
    %v5733 = vpack.c.b16 %v5309, %v5305
    %v5734 = vpack.c.b16 %v5310, %v5306
    %v5735 = vpack.c.b16 %v5311, %v5307
    %v5736 = vpack.c.b16 %v5312, %v5308
    %v5737 = vpack.c.b16 %v5317, %v5313
    %v5738 = vpack.c.b16 %v5318, %v5314
    %v5739 = vpack.c.b16 %v5319, %v5315
    %v5740 = vpack.c.b16 %v5320, %v5316
    %v5741 = vpack.c.b16 %v5325, %v5321
    %v5742 = vpack.c.b16 %v5326, %v5322
    %v5743 = vpack.c.b16 %v5327, %v5323
    %v5744 = vpack.c.b16 %v5328, %v5324
    %v5745 = vpack.c.b16 %v5333, %v5329
    %v5746 = vpack.c.b16 %v5334, %v5330
    %v5747 = vpack.c.b16 %v5335, %v5331
    %v5748 = vpack.c.b16 %v5336, %v5332
    %v5749 = vpack.c.b16 %v5341, %v5337
    %v5750 = vpack.c.b16 %v5342, %v5338
    %v5751 = vpack.c.b16 %v5343, %v5339
    %v5752 = vpack.c.b16 %v5344, %v5340
    %v5753 = vpack.c.b16 %v5349, %v5345
    %v5754 = vpack.c.b16 %v5350, %v5346
    %v5755 = vpack.c.b16 %v5351, %v5347
    %v5756 = vpack.c.b16 %v5352, %v5348
    %v5757 = vpack.c.b16 %v5357, %v5353
    %v5758 = vpack.c.b16 %v5358, %v5354
    %v5759 = vpack.c.b16 %v5359, %v5355
    %v5760 = vpack.c.b16 %v5360, %v5356
    %v5761 = vpack.c.b16 %v5365, %v5361
    %v5762 = vpack.c.b16 %v5366, %v5362
    %v5763 = vpack.c.b16 %v5367, %v5363
    %v5764 = vpack.c.b16 %v5368, %v5364
    %v5765 = vpack.c.b16 %v5373, %v5369
    %v5766 = vpack.c.b16 %v5374, %v5370
    %v5767 = vpack.c.b16 %v5375, %v5371
    %v5768 = vpack.c.b16 %v5376, %v5372
    %v5769 = vpack.c.b16 %v5381, %v5377
    %v5770 = vpack.c.b16 %v5382, %v5378
    %v5771 = vpack.c.b16 %v5383, %v5379
    %v5772 = vpack.c.b16 %v5384, %v5380
    %v5773 = vpack.c.b16 %v5389, %v5385
    %v5774 = vpack.c.b16 %v5390, %v5386
    %v5775 = vpack.c.b16 %v5391, %v5387
    %v5776 = vpack.c.b16 %v5392, %v5388
    %v5777 = vpack.c.b16 %v5397, %v5393
    %v5778 = vpack.c.b16 %v5398, %v5394
    %v5779 = vpack.c.b16 %v5399, %v5395
    %v5780 = vpack.c.b16 %v5400, %v5396
    %v5781 = vpack.c.b16 %v5405, %v5401
    %v5782 = vpack.c.b16 %v5406, %v5402
    %v5783 = vpack.c.b16 %v5407, %v5403
    %v5784 = vpack.c.b16 %v5408, %v5404
    %v5785 = vpack.c.b16 %v5413, %v5409
    %v5786 = vpack.c.b16 %v5414, %v5410
    %v5787 = vpack.c.b16 %v5415, %v5411
    %v5788 = vpack.c.b16 %v5416, %v5412
    %v5789 = vpack.c.b16 %v5421, %v5417
    %v5790 = vpack.c.b16 %v5422, %v5418
    %v5791 = vpack.c.b16 %v5423, %v5419
    %v5792 = vpack.c.b16 %v5424, %v5420
    %v5793 = vpack.c.b16 %v5429, %v5425
    %v5794 = vpack.c.b16 %v5430, %v5426
    %v5795 = vpack.c.b16 %v5431, %v5427
    %v5796 = vpack.c.b16 %v5432, %v5428
    %v5797 = vpack.c.b16 %v5437, %v5433
    %v5798 = vpack.c.b16 %v5438, %v5434
    %v5799 = vpack.c.b16 %v5439, %v5435
    %v5800 = vpack.c.b16 %v5440, %v5436
    %v5801 = vpack.c.b16 %v5445, %v5441
    %v5802 = vpack.c.b16 %v5446, %v5442
    %v5803 = vpack.c.b16 %v5447, %v5443
    %v5804 = vpack.c.b16 %v5448, %v5444
    %v5805 = vpack.c.b16 %v5453, %v5449
    %v5806 = vpack.c.b16 %v5454, %v5450
    %v5807 = vpack.c.b16 %v5455, %v5451
    %v5808 = vpack.c.b16 %v5456, %v5452
    %v5809 = vpack.c.b16 %v5461, %v5457
    %v5810 = vpack.c.b16 %v5462, %v5458
    %v5811 = vpack.c.b16 %v5463, %v5459
    %v5812 = vpack.c.b16 %v5464, %v5460
    %v5813 = vpack.c.b16 %v5469, %v5465
    %v5814 = vpack.c.b16 %v5470, %v5466
    %v5815 = vpack.c.b16 %v5471, %v5467
    %v5816 = vpack.c.b16 %v5472, %v5468
    %v5817 = vpack.c.b16 %v5477, %v5473
    %v5818 = vpack.c.b16 %v5478, %v5474
    %v5819 = vpack.c.b16 %v5479, %v5475
    %v5820 = vpack.c.b16 %v5480, %v5476
    %v5821 = vpack.c.b16 %v5485, %v5481
    %v5822 = vpack.c.b16 %v5486, %v5482
    %v5823 = vpack.c.b16 %v5487, %v5483
    %v5824 = vpack.c.b16 %v5488, %v5484
    %v5825 = vpack.c.b16 %v5493, %v5489
    %v5826 = vpack.c.b16 %v5494, %v5490
    %v5827 = vpack.c.b16 %v5495, %v5491
    %v5828 = vpack.c.b16 %v5496, %v5492
    %v5829 = vpack.c.b16 %v5501, %v5497
    %v5830 = vpack.c.b16 %v5502, %v5498
    %v5831 = vpack.c.b16 %v5503, %v5499
    %v5832 = vpack.c.b16 %v5504, %v5500
    %v5833 = vpack.c.b16 %v5509, %v5505
    %v5834 = vpack.c.b16 %v5510, %v5506
    %v5835 = vpack.c.b16 %v5511, %v5507
    %v5836 = vpack.c.b16 %v5512, %v5508
    %v5837 = vpack.c.b16 %v5517, %v5513
    %v5838 = vpack.c.b16 %v5518, %v5514
    %v5839 = vpack.c.b16 %v5519, %v5515
    %v5840 = vpack.c.b16 %v5520, %v5516
    %v5841 = vpack.c.b16 %v5525, %v5521
    %v5842 = vpack.c.b16 %v5526, %v5522
    %v5843 = vpack.c.b16 %v5527, %v5523
    %v5844 = vpack.c.b16 %v5528, %v5524
    %v5845 = vpack.c.b16 %v5533, %v5529
    %v5846 = vpack.c.b16 %v5534, %v5530
    %v5847 = vpack.c.b16 %v5535, %v5531
    %v5848 = vpack.c.b16 %v5536, %v5532
    %v5849 = vpack.c.b16 %v5541, %v5537
    %v5850 = vpack.c.b16 %v5542, %v5538
    %v5851 = vpack.c.b16 %v5543, %v5539
    %v5852 = vpack.c.b16 %v5544, %v5540
    %v5853 = vpack.c.b16 %v5549, %v5545
    %v5854 = vpack.c.b16 %v5550, %v5546
    %v5855 = vpack.c.b16 %v5551, %v5547
    %v5856 = vpack.c.b16 %v5552, %v5548
    %v5857 = vpack.c.b16 %v5557, %v5553
    %v5858 = vpack.c.b16 %v5558, %v5554
    %v5859 = vpack.c.b16 %v5559, %v5555
    %v5860 = vpack.c.b16 %v5560, %v5556
    %v5861 = vpack.c.b16 %v5565, %v5561
    %v5862 = vpack.c.b16 %v5566, %v5562
    %v5863 = vpack.c.b16 %v5567, %v5563
    %v5864 = vpack.c.b16 %v5568, %v5564
    %v5865 = vpack.c.b16 %v5573, %v5569
    %v5866 = vpack.c.b16 %v5574, %v5570
    %v5867 = vpack.c.b16 %v5575, %v5571
    %v5868 = vpack.c.b16 %v5576, %v5572
    %v5869 = vpack.c.b16 %v5581, %v5577
    %v5870 = vpack.c.b16 %v5582, %v5578
    %v5871 = vpack.c.b16 %v5583, %v5579
    %v5872 = vpack.c.b16 %v5584, %v5580
    %v5873 = vpack.c.b16 %v5589, %v5585
    %v5874 = vpack.c.b16 %v5590, %v5586
    %v5875 = vpack.c.b16 %v5591, %v5587
    %v5876 = vpack.c.b16 %v5592, %v5588
    %v5877 = vpack.c.b16 %v5597, %v5593
    %v5878 = vpack.c.b16 %v5598, %v5594
    %v5879 = vpack.c.b16 %v5599, %v5595
    %v5880 = vpack.c.b16 %v5600, %v5596
    %v5881 = vpack.c.b16 %v5605, %v5601
    %v5882 = vpack.c.b16 %v5606, %v5602
    %v5883 = vpack.c.b16 %v5607, %v5603
    %v5884 = vpack.c.b16 %v5608, %v5604
    %v5885 = vpack.c.b16 %v5613, %v5609
    %v5886 = vpack.c.b16 %v5614, %v5610
    %v5887 = vpack.c.b16 %v5615, %v5611
    %v5888 = vpack.c.b16 %v5616, %v5612
    %v5889 = vpack.c.b16 %v5621, %v5617
    %v5890 = vpack.c.b16 %v5622, %v5618
    %v5891 = vpack.c.b16 %v5623, %v5619
    %v5892 = vpack.c.b16 %v5624, %v5620
    %v5893 = vpack.c.b16 %v5629, %v5625
    %v5894 = vpack.c.b16 %v5630, %v5626
    %v5895 = vpack.c.b16 %v5631, %v5627
    %v5896 = vpack.c.b16 %v5632, %v5628
    %v5897 = vpack.c.b16 %v5637, %v5633
    %v5898 = vpack.c.b16 %v5638, %v5634
    %v5899 = vpack.c.b16 %v5639, %v5635
    %v5900 = vpack.c.b16 %v5640, %v5636
    %v5901 = vpack.c.b16 %v5645, %v5641
    %v5902 = vpack.c.b16 %v5646, %v5642
    %v5903 = vpack.c.b16 %v5647, %v5643
    %v5904 = vpack.c.b16 %v5648, %v5644
    %6161 = vmatprep.subr.bf16.mxu0 %v5650
    %6162 = vmatpush1.bf16.msra.mxu0 %v5649
    %6163 = vmatprep.subr.bf16.mxu0 %v5654
    %6164 = vmatpush1.bf16.msra.mxu0 %v5653
    %6165 = vmatprep.subr.bf16.mxu0 %v5658
    %6166 = vmatpush1.bf16.msra.mxu0 %v5657
    %6167 = vmatprep.subr.bf16.mxu0 %v5662
    %6168 = vmatpush1.bf16.msra.mxu0 %v5661
    %6169 = vmatprep.subr.bf16.mxu0 %v5666
    %6170 = vmatpush1.bf16.msra.mxu0 %v5665
    %6171 = vmatprep.subr.bf16.mxu0 %v5670
    %6172 = vmatpush1.bf16.msra.mxu0 %v5669
    %6173 = vmatprep.subr.bf16.mxu0 %v5674
    %6174 = vmatpush1.bf16.msra.mxu0 %v5673
    %6175 = vmatprep.subr.bf16.mxu0 %v5678
    %6176 = vmatpush1.bf16.msra.mxu0 %v5677
    %6177 = vmatprep.subr.bf16.mxu0 %v5682
    %6178 = vmatpush1.bf16.msra.mxu0 %v5681
    %6179 = vmatprep.subr.bf16.mxu0 %v5686
    %6180 = vmatpush1.bf16.msra.mxu0 %v5685
    %6181 = vmatprep.subr.bf16.mxu0 %v5690
    %6182 = vmatpush1.bf16.msra.mxu0 %v5689
    %6183 = vmatprep.subr.bf16.mxu0 %v5694
    %6184 = vmatpush1.bf16.msra.mxu0 %v5693
    %6185 = vmatprep.subr.bf16.mxu0 %v5698
    %6186 = vmatpush1.bf16.msra.mxu0 %v5697
    %6187 = vmatprep.subr.bf16.mxu0 %v5702
    %6188 = vmatpush1.bf16.msra.mxu0 %v5701
    %6189 = vmatprep.subr.bf16.mxu0 %v5706
    %6190 = vmatpush1.bf16.msra.mxu0 %v5705
    %6191 = vmatprep.subr.bf16.mxu0 %v5710
    %6192 = vmatpush1.bf16.msra.mxu0 %v5709
    %6193 = vmatprep.mubr.bf16.mxu0 %v4596
    %6194 = vmatmul.mubr.bf16.gmra.mrb[0].mxu0 %v4595
    %v6195 = vpop.f32.mrb[0].mxu0
    %v6196 = vadd.f32 %v4864, %v6195
    %v6197 = vpop.f32.mrb[0].mxu0
    %v6198 = vadd.f32 %v4868, %v6197
    %v6199 = vpop.f32.mrb[0].mxu0
    %v6200 = vpop.f32.mrb[0].mxu0
    %6201 = vdwg.mxu0
    %6202 = vmatprep.subr.bf16.mxu0 %v5714
    %6203 = vmatpush1.bf16.msra.mxu0 %v5713
    %6204 = vmatprep.subr.bf16.mxu0 %v5718
    %6205 = vmatpush1.bf16.msra.mxu0 %v5717
    %6206 = vmatprep.subr.bf16.mxu0 %v5722
    %6207 = vmatpush1.bf16.msra.mxu0 %v5721
    %6208 = vmatprep.subr.bf16.mxu0 %v5726
    %6209 = vmatpush1.bf16.msra.mxu0 %v5725
    %6210 = vmatprep.subr.bf16.mxu0 %v5730
    %6211 = vmatpush1.bf16.msra.mxu0 %v5729
    %6212 = vmatprep.subr.bf16.mxu0 %v5734
    %6213 = vmatpush1.bf16.msra.mxu0 %v5733
    %6214 = vmatprep.subr.bf16.mxu0 %v5738
    %6215 = vmatpush1.bf16.msra.mxu0 %v5737
    %6216 = vmatprep.subr.bf16.mxu0 %v5742
    %6217 = vmatpush1.bf16.msra.mxu0 %v5741
    %6218 = vmatprep.subr.bf16.mxu0 %v5746
    %6219 = vmatpush1.bf16.msra.mxu0 %v5745
    %6220 = vmatprep.subr.bf16.mxu0 %v5750
    %6221 = vmatpush1.bf16.msra.mxu0 %v5749
    %6222 = vmatprep.subr.bf16.mxu0 %v5754
    %6223 = vmatpush1.bf16.msra.mxu0 %v5753
    %6224 = vmatprep.subr.bf16.mxu0 %v5758
    %6225 = vmatpush1.bf16.msra.mxu0 %v5757
    %6226 = vmatprep.subr.bf16.mxu0 %v5762
    %6227 = vmatpush1.bf16.msra.mxu0 %v5761
    %6228 = vmatprep.subr.bf16.mxu0 %v5766
    %6229 = vmatpush1.bf16.msra.mxu0 %v5765
    %6230 = vmatprep.subr.bf16.mxu0 %v5770
    %6231 = vmatpush1.bf16.msra.mxu0 %v5769
    %6232 = vmatprep.subr.bf16.mxu0 %v5774
    %6233 = vmatpush1.bf16.msra.mxu0 %v5773
    %6234 = vmatprep.mubr.bf16.mxu0 %v4598
    %6235 = vmatmul.mubr.bf16.gmra.mrb[0].mxu0 %v4597
    %v6236 = vpop.f32.mrb[0].mxu0
    %v6237 = vadd.f32 %v6196, %v6236
    %v6238 = vpop.f32.mrb[0].mxu0
    %v6239 = vadd.f32 %v6198, %v6238
    %v6240 = vpop.f32.mrb[0].mxu0
    %v6241 = vpop.f32.mrb[0].mxu0
    %6242 = vdwg.mxu0
    %6243 = vmatprep.subr.bf16.mxu0 %v5778
    %6244 = vmatpush1.bf16.msra.mxu0 %v5777
    %6245 = vmatprep.subr.bf16.mxu0 %v5782
    %6246 = vmatpush1.bf16.msra.mxu0 %v5781
    %6247 = vmatprep.subr.bf16.mxu0 %v5786
    %6248 = vmatpush1.bf16.msra.mxu0 %v5785
    %6249 = vmatprep.subr.bf16.mxu0 %v5790
    %6250 = vmatpush1.bf16.msra.mxu0 %v5789
    %6251 = vmatprep.subr.bf16.mxu0 %v5794
    %6252 = vmatpush1.bf16.msra.mxu0 %v5793
    %6253 = vmatprep.subr.bf16.mxu0 %v5798
    %6254 = vmatpush1.bf16.msra.mxu0 %v5797
    %6255 = vmatprep.subr.bf16.mxu0 %v5802
    %6256 = vmatpush1.bf16.msra.mxu0 %v5801
    %6257 = vmatprep.subr.bf16.mxu0 %v5806
    %6258 = vmatpush1.bf16.msra.mxu0 %v5805
    %6259 = vmatprep.subr.bf16.mxu0 %v5810
    %6260 = vmatpush1.bf16.msra.mxu0 %v5809
    %6261 = vmatprep.subr.bf16.mxu0 %v5814
    %6262 = vmatpush1.bf16.msra.mxu0 %v5813
    %6263 = vmatprep.subr.bf16.mxu0 %v5818
    %6264 = vmatpush1.bf16.msra.mxu0 %v5817
    %6265 = vmatprep.subr.bf16.mxu0 %v5822
    %6266 = vmatpush1.bf16.msra.mxu0 %v5821
    %6267 = vmatprep.subr.bf16.mxu0 %v5826
    %6268 = vmatpush1.bf16.msra.mxu0 %v5825
    %6269 = vmatprep.subr.bf16.mxu0 %v5830
    %6270 = vmatpush1.bf16.msra.mxu0 %v5829
    %6271 = vmatprep.subr.bf16.mxu0 %v5834
    %6272 = vmatpush1.bf16.msra.mxu0 %v5833
    %6273 = vmatprep.subr.bf16.mxu0 %v5838
    %6274 = vmatpush1.bf16.msra.mxu0 %v5837
    %6275 = vmatprep.mubr.bf16.mxu0 %v4600
    %6276 = vmatmul.mubr.bf16.gmra.mrb[0].mxu0 %v4599
    %v6277 = vpop.f32.mrb[0].mxu0
    %v6278 = vadd.f32 %v6237, %v6277
    %v6279 = vpop.f32.mrb[0].mxu0
    %v6280 = vadd.f32 %v6239, %v6279
    %v6281 = vpop.f32.mrb[0].mxu0
    %v6282 = vpop.f32.mrb[0].mxu0
    %6283 = vdwg.mxu0
    %6284 = vmatprep.subr.bf16.mxu0 %v5842
    %6285 = vmatpush1.bf16.msra.mxu0 %v5841
    %6286 = vmatprep.subr.bf16.mxu0 %v5846
    %6287 = vmatpush1.bf16.msra.mxu0 %v5845
    %6288 = vmatprep.subr.bf16.mxu0 %v5850
    %6289 = vmatpush1.bf16.msra.mxu0 %v5849
    %6290 = vmatprep.subr.bf16.mxu0 %v5854
    %6291 = vmatpush1.bf16.msra.mxu0 %v5853
    %6292 = vmatprep.subr.bf16.mxu0 %v5858
    %6293 = vmatpush1.bf16.msra.mxu0 %v5857
    %6294 = vmatprep.subr.bf16.mxu0 %v5862
    %6295 = vmatpush1.bf16.msra.mxu0 %v5861
    %6296 = vmatprep.subr.bf16.mxu0 %v5866
    %6297 = vmatpush1.bf16.msra.mxu0 %v5865
    %6298 = vmatprep.subr.bf16.mxu0 %v5870
    %6299 = vmatpush1.bf16.msra.mxu0 %v5869
    %6300 = vmatprep.subr.bf16.mxu0 %v5874
    %6301 = vmatpush1.bf16.msra.mxu0 %v5873
    %6302 = vmatprep.subr.bf16.mxu0 %v5878
    %6303 = vmatpush1.bf16.msra.mxu0 %v5877
    %6304 = vmatprep.subr.bf16.mxu0 %v5882
    %6305 = vmatpush1.bf16.msra.mxu0 %v5881
    %6306 = vmatprep.subr.bf16.mxu0 %v5886
    %6307 = vmatpush1.bf16.msra.mxu0 %v5885
    %6308 = vmatprep.subr.bf16.mxu0 %v5890
    %6309 = vmatpush1.bf16.msra.mxu0 %v5889
    %6310 = vmatprep.subr.bf16.mxu0 %v5894
    %6311 = vmatpush1.bf16.msra.mxu0 %v5893
    %6312 = vmatprep.subr.bf16.mxu0 %v5898
    %6313 = vmatpush1.bf16.msra.mxu0 %v5897
    %6314 = vmatprep.subr.bf16.mxu0 %v5902
    %6315 = vmatpush1.bf16.msra.mxu0 %v5901
    %6316 = vmatprep.mubr.bf16.mxu0 %v4602
    %6317 = vmatmul.mubr.bf16.gmra.mrb[0].mxu0 %v4601
    %v6318 = vpop.f32.mrb[0].mxu0
    %v6319 = vadd.f32 %v6278, %v6318
    %v6320 = vpop.f32.mrb[0].mxu0
    %v6321 = vadd.f32 %v6280, %v6320
    %v6322 = vpop.f32.mrb[0].mxu0
    %v6323 = vpop.f32.mrb[0].mxu0
    %6324 = vdwg.mxu0
    %6325 = vmatprep.subr.bf16.mxu0 %v5652
    %6326 = vmatpush1.bf16.msra.mxu0 %v5651
    %6327 = vmatprep.subr.bf16.mxu0 %v5656
    %6328 = vmatpush1.bf16.msra.mxu0 %v5655
    %6329 = vmatprep.subr.bf16.mxu0 %v5660
    %6330 = vmatpush1.bf16.msra.mxu0 %v5659
    %6331 = vmatprep.subr.bf16.mxu0 %v5664
    %6332 = vmatpush1.bf16.msra.mxu0 %v5663
    %6333 = vmatprep.subr.bf16.mxu0 %v5668
    %6334 = vmatpush1.bf16.msra.mxu0 %v5667
    %6335 = vmatprep.subr.bf16.mxu0 %v5672
    %6336 = vmatpush1.bf16.msra.mxu0 %v5671
    %6337 = vmatprep.subr.bf16.mxu0 %v5676
    %6338 = vmatpush1.bf16.msra.mxu0 %v5675
    %6339 = vmatprep.subr.bf16.mxu0 %v5680
    %6340 = vmatpush1.bf16.msra.mxu0 %v5679
    %6341 = vmatprep.subr.bf16.mxu0 %v5684
    %6342 = vmatpush1.bf16.msra.mxu0 %v5683
    %6343 = vmatprep.subr.bf16.mxu0 %v5688
    %6344 = vmatpush1.bf16.msra.mxu0 %v5687
    %6345 = vmatprep.subr.bf16.mxu0 %v5692
    %6346 = vmatpush1.bf16.msra.mxu0 %v5691
    %6347 = vmatprep.subr.bf16.mxu0 %v5696
    %6348 = vmatpush1.bf16.msra.mxu0 %v5695
    %6349 = vmatprep.subr.bf16.mxu0 %v5700
    %6350 = vmatpush1.bf16.msra.mxu0 %v5699
    %6351 = vmatprep.subr.bf16.mxu0 %v5704
    %6352 = vmatpush1.bf16.msra.mxu0 %v5703
    %6353 = vmatprep.subr.bf16.mxu0 %v5708
    %6354 = vmatpush1.bf16.msra.mxu0 %v5707
    %6355 = vmatprep.subr.bf16.mxu0 %v5712
    %6356 = vmatpush1.bf16.msra.mxu0 %v5711
    %6357 = vmatprep.mubr.bf16.mxu0 %v4596
    %6358 = vmatmul.mubr.bf16.gmra.mrb[0].mxu0 %v4595
    %v6359 = vpop.f32.mrb[0].mxu0
    %v6360 = vadd.f32 %v4872, %v6359
    %v6361 = vpop.f32.mrb[0].mxu0
    %v6362 = vadd.f32 %v4876, %v6361
    %v6363 = vpop.f32.mrb[0].mxu0
    %v6364 = vpop.f32.mrb[0].mxu0
    %6365 = vdwg.mxu0
    %6366 = vmatprep.subr.bf16.mxu0 %v5716
    %6367 = vmatpush1.bf16.msra.mxu0 %v5715
    %6368 = vmatprep.subr.bf16.mxu0 %v5720
    %6369 = vmatpush1.bf16.msra.mxu0 %v5719
    %6370 = vmatprep.subr.bf16.mxu0 %v5724
    %6371 = vmatpush1.bf16.msra.mxu0 %v5723
    %6372 = vmatprep.subr.bf16.mxu0 %v5728
    %6373 = vmatpush1.bf16.msra.mxu0 %v5727
    %6374 = vmatprep.subr.bf16.mxu0 %v5732
    %6375 = vmatpush1.bf16.msra.mxu0 %v5731
    %6376 = vmatprep.subr.bf16.mxu0 %v5736
    %6377 = vmatpush1.bf16.msra.mxu0 %v5735
    %6378 = vmatprep.subr.bf16.mxu0 %v5740
    %6379 = vmatpush1.bf16.msra.mxu0 %v5739
    %6380 = vmatprep.subr.bf16.mxu0 %v5744
    %6381 = vmatpush1.bf16.msra.mxu0 %v5743
    %6382 = vmatprep.subr.bf16.mxu0 %v5748
    %6383 = vmatpush1.bf16.msra.mxu0 %v5747
    %6384 = vmatprep.subr.bf16.mxu0 %v5752
    %6385 = vmatpush1.bf16.msra.mxu0 %v5751
    %6386 = vmatprep.subr.bf16.mxu0 %v5756
    %6387 = vmatpush1.bf16.msra.mxu0 %v5755
    %6388 = vmatprep.subr.bf16.mxu0 %v5760
    %6389 = vmatpush1.bf16.msra.mxu0 %v5759
    %6390 = vmatprep.subr.bf16.mxu0 %v5764
    %6391 = vmatpush1.bf16.msra.mxu0 %v5763
    %6392 = vmatprep.subr.bf16.mxu0 %v5768
    %6393 = vmatpush1.bf16.msra.mxu0 %v5767
    %6394 = vmatprep.subr.bf16.mxu0 %v5772
    %6395 = vmatpush1.bf16.msra.mxu0 %v5771
    %6396 = vmatprep.subr.bf16.mxu0 %v5776
    %6397 = vmatpush1.bf16.msra.mxu0 %v5775
    %6398 = vmatprep.mubr.bf16.mxu0 %v4598
    %6399 = vmatmul.mubr.bf16.gmra.mrb[0].mxu0 %v4597
    %v6400 = vpop.f32.mrb[0].mxu0
    %v6401 = vadd.f32 %v6360, %v6400
    %v6402 = vpop.f32.mrb[0].mxu0
    %v6403 = vadd.f32 %v6362, %v6402
    %v6404 = vpop.f32.mrb[0].mxu0
    %v6405 = vpop.f32.mrb[0].mxu0
    %6406 = vdwg.mxu0
    %6407 = vmatprep.subr.bf16.mxu0 %v5780
    %6408 = vmatpush1.bf16.msra.mxu0 %v5779
    %6409 = vmatprep.subr.bf16.mxu0 %v5784
    %6410 = vmatpush1.bf16.msra.mxu0 %v5783
    %6411 = vmatprep.subr.bf16.mxu0 %v5788
    %6412 = vmatpush1.bf16.msra.mxu0 %v5787
    %6413 = vmatprep.subr.bf16.mxu0 %v5792
    %6414 = vmatpush1.bf16.msra.mxu0 %v5791
    %6415 = vmatprep.subr.bf16.mxu0 %v5796
    %6416 = vmatpush1.bf16.msra.mxu0 %v5795
    %6417 = vmatprep.subr.bf16.mxu0 %v5800
    %6418 = vmatpush1.bf16.msra.mxu0 %v5799
    %6419 = vmatprep.subr.bf16.mxu0 %v5804
    %6420 = vmatpush1.bf16.msra.mxu0 %v5803
    %6421 = vmatprep.subr.bf16.mxu0 %v5808
    %6422 = vmatpush1.bf16.msra.mxu0 %v5807
    %6423 = vmatprep.subr.bf16.mxu0 %v5812
    %6424 = vmatpush1.bf16.msra.mxu0 %v5811
    %6425 = vmatprep.subr.bf16.mxu0 %v5816
    %6426 = vmatpush1.bf16.msra.mxu0 %v5815
    %6427 = vmatprep.subr.bf16.mxu0 %v5820
    %6428 = vmatpush1.bf16.msra.mxu0 %v5819
    %6429 = vmatprep.subr.bf16.mxu0 %v5824
    %6430 = vmatpush1.bf16.msra.mxu0 %v5823
    %6431 = vmatprep.subr.bf16.mxu0 %v5828
    %6432 = vmatpush1.bf16.msra.mxu0 %v5827
    %6433 = vmatprep.subr.bf16.mxu0 %v5832
    %6434 = vmatpush1.bf16.msra.mxu0 %v5831
    %6435 = vmatprep.subr.bf16.mxu0 %v5836
    %6436 = vmatpush1.bf16.msra.mxu0 %v5835
    %6437 = vmatprep.subr.bf16.mxu0 %v5840
    %6438 = vmatpush1.bf16.msra.mxu0 %v5839
    %6439 = vmatprep.mubr.bf16.mxu0 %v4600
    %6440 = vmatmul.mubr.bf16.gmra.mrb[0].mxu0 %v4599
    %v6441 = vpop.f32.mrb[0].mxu0
    %v6442 = vadd.f32 %v6401, %v6441
    %v6443 = vpop.f32.mrb[0].mxu0
    %v6444 = vadd.f32 %v6403, %v6443
    %v6445 = vpop.f32.mrb[0].mxu0
    %v6446 = vpop.f32.mrb[0].mxu0
    %6447 = vdwg.mxu0
    %6448 = vmatprep.subr.bf16.mxu0 %v5844
    %6449 = vmatpush1.bf16.msra.mxu0 %v5843
    %6450 = vmatprep.subr.bf16.mxu0 %v5848
    %6451 = vmatpush1.bf16.msra.mxu0 %v5847
    %6452 = vmatprep.subr.bf16.mxu0 %v5852
    %6453 = vmatpush1.bf16.msra.mxu0 %v5851
    %6454 = vmatprep.subr.bf16.mxu0 %v5856
    %6455 = vmatpush1.bf16.msra.mxu0 %v5855
    %6456 = vmatprep.subr.bf16.mxu0 %v5860
    %6457 = vmatpush1.bf16.msra.mxu0 %v5859
    %6458 = vmatprep.subr.bf16.mxu0 %v5864
    %6459 = vmatpush1.bf16.msra.mxu0 %v5863
    %6460 = vmatprep.subr.bf16.mxu0 %v5868
    %6461 = vmatpush1.bf16.msra.mxu0 %v5867
    %6462 = vmatprep.subr.bf16.mxu0 %v5872
    %6463 = vmatpush1.bf16.msra.mxu0 %v5871
    %6464 = vmatprep.subr.bf16.mxu0 %v5876
    %6465 = vmatpush1.bf16.msra.mxu0 %v5875
    %6466 = vmatprep.subr.bf16.mxu0 %v5880
    %6467 = vmatpush1.bf16.msra.mxu0 %v5879
    %6468 = vmatprep.subr.bf16.mxu0 %v5884
    %6469 = vmatpush1.bf16.msra.mxu0 %v5883
    %6470 = vmatprep.subr.bf16.mxu0 %v5888
    %6471 = vmatpush1.bf16.msra.mxu0 %v5887
    %6472 = vmatprep.subr.bf16.mxu0 %v5892
    %6473 = vmatpush1.bf16.msra.mxu0 %v5891
    %6474 = vmatprep.subr.bf16.mxu0 %v5896
    %6475 = vmatpush1.bf16.msra.mxu0 %v5895
    %6476 = vmatprep.subr.bf16.mxu0 %v5900
    %6477 = vmatpush1.bf16.msra.mxu0 %v5899
    %6478 = vmatprep.subr.bf16.mxu0 %v5904
    %6479 = vmatpush1.bf16.msra.mxu0 %v5903
    %6480 = vmatprep.mubr.bf16.mxu0 %v4602
    %6481 = vmatmul.mubr.bf16.gmra.mrb[0].mxu0 %v4601
    %v6482 = vpop.f32.mrb[0].mxu0
    %v6483 = vadd.f32 %v6442, %v6482
    %v6484 = vpop.f32.mrb[0].mxu0
    %v6485 = vadd.f32 %v6444, %v6484
    %v6486 = vpop.f32.mrb[0].mxu0
    %v6487 = vpop.f32.mrb[0].mxu0
    %6488 = vdwg.mxu0
    %v6489 = vmul.f32 %v6319, 0.5
    %v6490 = vmul.f32 %v6321, 0.5
    %v6491 = vmul.f32 %v6483, 0.5
    %v6492 = vmul.f32 %v6485, 0.5
    %v6493 = vmul.f32 %v6319, 0.70710677
    %v6494 = vmul.f32 %v6321, 0.70710677
    %v6495 = vmul.f32 %v6483, 0.70710677
    %v6496 = vmul.f32 %v6485, 0.70710677
    %v6497 = verf.f32.pop %v6493
    %v6498 = verf.f32.pop %v6494
    %v6499 = verf.f32.pop %v6495
    %v6500 = verf.f32.pop %v6496
    %v6501 = vadd.f32 %v6497, 1.0
    %v6502 = vadd.f32 %v6498, 1.0
    %v6503 = vadd.f32 %v6499, 1.0
    %v6504 = vadd.f32 %v6500, 1.0
    %v6505 = vmul.f32 %v6489, %v6501
    %v6506 = vmul.f32 %v6490, %v6502
    %v6507 = vmul.f32 %v6491, %v6503
    %v6508 = vmul.f32 %v6492, %v6504
    %v6509 = vpack.c.bf16 %v6505, %v6505
    %v6510 = vpack.c.bf16 %v6506, %v6506
    %v6511 = vpack.c.bf16 %v6507, %v6507
    %v6512 = vpack.c.bf16 %v6508, %v6508
    %v6513 = vld [vmem:[#allocation14] sm:$0xf]
    %v6514 = vld [vmem:[#allocation14 + $0x4] sm:$0xf]
    %v6515 = vld [vmem:[#allocation14 + $0x8] sm:$0xf]
    %v6516 = vld [vmem:[#allocation14 + $0xc] sm:$0xf]
    %v6517 = vld [vmem:[#allocation14 + $0x10] sm:$0xf]
    %v6518 = vld [vmem:[#allocation14 + $0x14] sm:$0xf]
    %v6519 = vld [vmem:[#allocation14 + $0x18] sm:$0xf]
    %v6520 = vld [vmem:[#allocation14 + $0x1c] sm:$0xf]
    %v6521 = vld [vmem:[#allocation14 + $0x20] sm:$0xf]
    %v6522 = vld [vmem:[#allocation14 + $0x24] sm:$0xf]
    %v6523 = vld [vmem:[#allocation14 + $0x28] sm:$0xf]
    %v6524 = vld [vmem:[#allocation14 + $0x2c] sm:$0xf]
    %v6525 = vld [vmem:[#allocation14 + $0x30] sm:$0xf]
    %v6526 = vld [vmem:[#allocation14 + $0x34] sm:$0xf]
    %v6527 = vld [vmem:[#allocation14 + $0x38] sm:$0xf]
    %v6528 = vld [vmem:[#allocation14 + $0x3c] sm:$0xf]
    %v6529 = vld [vmem:[#allocation14 + $0x40] sm:$0xf]
    %v6530 = vld [vmem:[#allocation14 + $0x44] sm:$0xf]
    %v6531 = vld [vmem:[#allocation14 + $0x48] sm:$0xf]
    %v6532 = vld [vmem:[#allocation14 + $0x4c] sm:$0xf]
    %v6533 = vld [vmem:[#allocation14 + $0x50] sm:$0xf]
    %v6534 = vld [vmem:[#allocation14 + $0x54] sm:$0xf]
    %v6535 = vld [vmem:[#allocation14 + $0x58] sm:$0xf]
    %v6536 = vld [vmem:[#allocation14 + $0x5c] sm:$0xf]
    %v6537 = vld [vmem:[#allocation14 + $0x60] sm:$0xf]
    %v6538 = vld [vmem:[#allocation14 + $0x64] sm:$0xf]
    %v6539 = vld [vmem:[#allocation14 + $0x68] sm:$0xf]
    %v6540 = vld [vmem:[#allocation14 + $0x6c] sm:$0xf]
    %v6541 = vld [vmem:[#allocation14 + $0x70] sm:$0xf]
    %v6542 = vld [vmem:[#allocation14 + $0x74] sm:$0xf]
    %v6543 = vld [vmem:[#allocation14 + $0x78] sm:$0xf]
    %v6544 = vld [vmem:[#allocation14 + $0x7c] sm:$0xf]
    %v6545 = vld [vmem:[#allocation14 + $0x80] sm:$0xf]
    %v6546 = vld [vmem:[#allocation14 + $0x84] sm:$0xf]
    %v6547 = vld [vmem:[#allocation14 + $0x88] sm:$0xf]
    %v6548 = vld [vmem:[#allocation14 + $0x8c] sm:$0xf]
    %v6549 = vld [vmem:[#allocation14 + $0x90] sm:$0xf]
    %v6550 = vld [vmem:[#allocation14 + $0x94] sm:$0xf]
    %v6551 = vld [vmem:[#allocation14 + $0x98] sm:$0xf]
    %v6552 = vld [vmem:[#allocation14 + $0x9c] sm:$0xf]
    %v6553 = vld [vmem:[#allocation14 + $0xa0] sm:$0xf]
    %v6554 = vld [vmem:[#allocation14 + $0xa4] sm:$0xf]
    %v6555 = vld [vmem:[#allocation14 + $0xa8] sm:$0xf]
    %v6556 = vld [vmem:[#allocation14 + $0xac] sm:$0xf]
    %v6557 = vld [vmem:[#allocation14 + $0xb0] sm:$0xf]
    %v6558 = vld [vmem:[#allocation14 + $0xb4] sm:$0xf]
    %v6559 = vld [vmem:[#allocation14 + $0xb8] sm:$0xf]
    %v6560 = vld [vmem:[#allocation14 + $0xbc] sm:$0xf]
    %v6561 = vld [vmem:[#allocation14 + $0xc0] sm:$0xf]
    %v6562 = vld [vmem:[#allocation14 + $0xc4] sm:$0xf]
    %v6563 = vld [vmem:[#allocation14 + $0xc8] sm:$0xf]
    %v6564 = vld [vmem:[#allocation14 + $0xcc] sm:$0xf]
    %v6565 = vld [vmem:[#allocation14 + $0xd0] sm:$0xf]
    %v6566 = vld [vmem:[#allocation14 + $0xd4] sm:$0xf]
    %v6567 = vld [vmem:[#allocation14 + $0xd8] sm:$0xf]
    %v6568 = vld [vmem:[#allocation14 + $0xdc] sm:$0xf]
    %v6569 = vld [vmem:[#allocation14 + $0xe0] sm:$0xf]
    %v6570 = vld [vmem:[#allocation14 + $0xe4] sm:$0xf]
    %v6571 = vld [vmem:[#allocation14 + $0xe8] sm:$0xf]
    %v6572 = vld [vmem:[#allocation14 + $0xec] sm:$0xf]
    %v6573 = vld [vmem:[#allocation14 + $0xf0] sm:$0xf]
    %v6574 = vld [vmem:[#allocation14 + $0xf4] sm:$0xf]
    %v6575 = vld [vmem:[#allocation14 + $0xf8] sm:$0xf]
    %v6576 = vld [vmem:[#allocation14 + $0xfc] sm:$0xf]
    %v6577 = vld [vmem:[#allocation16] sm:$0x1]
    %v6579 = vlaneseq
    %v6580 = vshrl.u32 %v6579, 7
    %v6581 = vsub.s32 0, %v6580
    %v6582 = vrot.slane %v6577, %v6581
    %v6648 = vunpack.c.l.b16 %v6513
    %v6649 = vunpack.c.l.b16 %v6514
    %v6650 = vunpack.c.l.b16 %v6515
    %v6651 = vunpack.c.l.b16 %v6516
    %v6652 = vunpack.c.l.b16 %v6517
    %v6653 = vunpack.c.l.b16 %v6518
    %v6654 = vunpack.c.l.b16 %v6519
    %v6655 = vunpack.c.l.b16 %v6520
    %v6656 = vunpack.c.l.b16 %v6521
    %v6657 = vunpack.c.l.b16 %v6522
    %v6658 = vunpack.c.l.b16 %v6523
    %v6659 = vunpack.c.l.b16 %v6524
    %v6660 = vunpack.c.l.b16 %v6525
    %v6661 = vunpack.c.l.b16 %v6526
    %v6662 = vunpack.c.l.b16 %v6527
    %v6663 = vunpack.c.l.b16 %v6528
    %v6664 = vunpack.c.l.b16 %v6529
    %v6665 = vunpack.c.l.b16 %v6530
    %v6666 = vunpack.c.l.b16 %v6531
    %v6667 = vunpack.c.l.b16 %v6532
    %v6668 = vunpack.c.l.b16 %v6533
    %v6669 = vunpack.c.l.b16 %v6534
    %v6670 = vunpack.c.l.b16 %v6535
    %v6671 = vunpack.c.l.b16 %v6536
    %v6672 = vunpack.c.l.b16 %v6537
    %v6673 = vunpack.c.l.b16 %v6538
    %v6674 = vunpack.c.l.b16 %v6539
    %v6675 = vunpack.c.l.b16 %v6540
    %v6676 = vunpack.c.l.b16 %v6541
    %v6677 = vunpack.c.l.b16 %v6542
    %v6678 = vunpack.c.l.b16 %v6543
    %v6679 = vunpack.c.l.b16 %v6544
    %v6680 = vunpack.c.l.b16 %v6545
    %v6681 = vunpack.c.l.b16 %v6546
    %v6682 = vunpack.c.l.b16 %v6547
    %v6683 = vunpack.c.l.b16 %v6548
    %v6684 = vunpack.c.l.b16 %v6549
    %v6685 = vunpack.c.l.b16 %v6550
    %v6686 = vunpack.c.l.b16 %v6551
    %v6687 = vunpack.c.l.b16 %v6552
    %v6688 = vunpack.c.l.b16 %v6553
    %v6689 = vunpack.c.l.b16 %v6554
    %v6690 = vunpack.c.l.b16 %v6555
    %v6691 = vunpack.c.l.b16 %v6556
    %v6692 = vunpack.c.l.b16 %v6557
    %v6693 = vunpack.c.l.b16 %v6558
    %v6694 = vunpack.c.l.b16 %v6559
    %v6695 = vunpack.c.l.b16 %v6560
    %v6696 = vunpack.c.l.b16 %v6561
    %v6697 = vunpack.c.l.b16 %v6562
    %v6698 = vunpack.c.l.b16 %v6563
    %v6699 = vunpack.c.l.b16 %v6564
    %v6700 = vunpack.c.l.b16 %v6565
    %v6701 = vunpack.c.l.b16 %v6566
    %v6702 = vunpack.c.l.b16 %v6567
    %v6703 = vunpack.c.l.b16 %v6568
    %v6704 = vunpack.c.l.b16 %v6569
    %v6705 = vunpack.c.l.b16 %v6570
    %v6706 = vunpack.c.l.b16 %v6571
    %v6707 = vunpack.c.l.b16 %v6572
    %v6708 = vunpack.c.l.b16 %v6573
    %v6709 = vunpack.c.l.b16 %v6574
    %v6710 = vunpack.c.l.b16 %v6575
    %v6711 = vunpack.c.l.b16 %v6576
    %v6712 = vpack.c.b16 %v6649, %v6648
    %v6713 = vpack.c.b16 %v6651, %v6650
    %v6714 = vpack.c.b16 %v6653, %v6652
    %v6715 = vpack.c.b16 %v6655, %v6654
    %v6716 = vpack.c.b16 %v6657, %v6656
    %v6717 = vpack.c.b16 %v6659, %v6658
    %v6718 = vpack.c.b16 %v6661, %v6660
    %v6719 = vpack.c.b16 %v6663, %v6662
    %v6720 = vpack.c.b16 %v6665, %v6664
    %v6721 = vpack.c.b16 %v6667, %v6666
    %v6722 = vpack.c.b16 %v6669, %v6668
    %v6723 = vpack.c.b16 %v6671, %v6670
    %v6724 = vpack.c.b16 %v6673, %v6672
    %v6725 = vpack.c.b16 %v6675, %v6674
    %v6726 = vpack.c.b16 %v6677, %v6676
    %v6727 = vpack.c.b16 %v6679, %v6678
    %v6728 = vpack.c.b16 %v6681, %v6680
    %v6729 = vpack.c.b16 %v6683, %v6682
    %v6730 = vpack.c.b16 %v6685, %v6684
    %v6731 = vpack.c.b16 %v6687, %v6686
    %v6732 = vpack.c.b16 %v6689, %v6688
    %v6733 = vpack.c.b16 %v6691, %v6690
    %v6734 = vpack.c.b16 %v6693, %v6692
    %v6735 = vpack.c.b16 %v6695, %v6694
    %v6736 = vpack.c.b16 %v6697, %v6696
    %v6737 = vpack.c.b16 %v6699, %v6698
    %v6738 = vpack.c.b16 %v6701, %v6700
    %v6739 = vpack.c.b16 %v6703, %v6702
    %v6740 = vpack.c.b16 %v6705, %v6704
    %v6741 = vpack.c.b16 %v6707, %v6706
    %v6742 = vpack.c.b16 %v6709, %v6708
    %v6743 = vpack.c.b16 %v6711, %v6710
    %6776 = vmatprep.subr.bf16.mxu0 0
    %6777 = vmatpush1.bf16.msra.mxu0 %v6712
    %6778 = vmatprep.subr.bf16.mxu0 0
    %6779 = vmatpush1.bf16.msra.mxu0 %v6713
    %6780 = vmatprep.subr.bf16.mxu0 0
    %6781 = vmatpush1.bf16.msra.mxu0 %v6714
    %6782 = vmatprep.subr.bf16.mxu0 0
    %6783 = vmatpush1.bf16.msra.mxu0 %v6715
    %6784 = vmatprep.subr.bf16.mxu0 0
    %6785 = vmatpush1.bf16.msra.mxu0 %v6716
    %6786 = vmatprep.subr.bf16.mxu0 0
    %6787 = vmatpush1.bf16.msra.mxu0 %v6717
    %6788 = vmatprep.subr.bf16.mxu0 0
    %6789 = vmatpush1.bf16.msra.mxu0 %v6718
    %6790 = vmatprep.subr.bf16.mxu0 0
    %6791 = vmatpush1.bf16.msra.mxu0 %v6719
    %6792 = vmatprep.subr.bf16.mxu0 0
    %6793 = vmatpush1.bf16.msra.mxu0 %v6720
    %6794 = vmatprep.subr.bf16.mxu0 0
    %6795 = vmatpush1.bf16.msra.mxu0 %v6721
    %6796 = vmatprep.subr.bf16.mxu0 0
    %6797 = vmatpush1.bf16.msra.mxu0 %v6722
    %6798 = vmatprep.subr.bf16.mxu0 0
    %6799 = vmatpush1.bf16.msra.mxu0 %v6723
    %6800 = vmatprep.subr.bf16.mxu0 0
    %6801 = vmatpush1.bf16.msra.mxu0 %v6724
    %6802 = vmatprep.subr.bf16.mxu0 0
    %6803 = vmatpush1.bf16.msra.mxu0 %v6725
    %6804 = vmatprep.subr.bf16.mxu0 0
    %6805 = vmatpush1.bf16.msra.mxu0 %v6726
    %6806 = vmatprep.subr.bf16.mxu0 0
    %6807 = vmatpush1.bf16.msra.mxu0 %v6727
    %6808 = vmatprep.mubr.bf16.mxu0 %v6510
    %6809 = vmatmul.mubr.bf16.gmra.mrb[0].mxu0 %v6509
    %v6810 = vpop.f32.mrb[0].mxu0
    %v6811 = vadd.f32 %v6582, %v6810
    %v6812 = vpop.f32.mrb[0].mxu0
    %v6813 = vpop.f32.mrb[0].mxu0
    %v6814 = vpop.f32.mrb[0].mxu0
    %6815 = vdwg.mxu0
    %6816 = vmatprep.subr.bf16.mxu0 0
    %6817 = vmatpush1.bf16.msra.mxu0 %v6728
    %6818 = vmatprep.subr.bf16.mxu0 0
    %6819 = vmatpush1.bf16.msra.mxu0 %v6729
    %6820 = vmatprep.subr.bf16.mxu0 0
    %6821 = vmatpush1.bf16.msra.mxu0 %v6730
    %6822 = vmatprep.subr.bf16.mxu0 0
    %6823 = vmatpush1.bf16.msra.mxu0 %v6731
    %6824 = vmatprep.subr.bf16.mxu0 0
    %6825 = vmatpush1.bf16.msra.mxu0 %v6732
    %6826 = vmatprep.subr.bf16.mxu0 0
    %6827 = vmatpush1.bf16.msra.mxu0 %v6733
    %6828 = vmatprep.subr.bf16.mxu0 0
    %6829 = vmatpush1.bf16.msra.mxu0 %v6734
    %6830 = vmatprep.subr.bf16.mxu0 0
    %6831 = vmatpush1.bf16.msra.mxu0 %v6735
    %6832 = vmatprep.subr.bf16.mxu0 0
    %6833 = vmatpush1.bf16.msra.mxu0 %v6736
    %6834 = vmatprep.subr.bf16.mxu0 0
    %6835 = vmatpush1.bf16.msra.mxu0 %v6737
    %6836 = vmatprep.subr.bf16.mxu0 0
    %6837 = vmatpush1.bf16.msra.mxu0 %v6738
    %6838 = vmatprep.subr.bf16.mxu0 0
    %6839 = vmatpush1.bf16.msra.mxu0 %v6739
    %6840 = vmatprep.subr.bf16.mxu0 0
    %6841 = vmatpush1.bf16.msra.mxu0 %v6740
    %6842 = vmatprep.subr.bf16.mxu0 0
    %6843 = vmatpush1.bf16.msra.mxu0 %v6741
    %6844 = vmatprep.subr.bf16.mxu0 0
    %6845 = vmatpush1.bf16.msra.mxu0 %v6742
    %6846 = vmatprep.subr.bf16.mxu0 0
    %6847 = vmatpush1.bf16.msra.mxu0 %v6743
    %6848 = vmatprep.mubr.bf16.mxu0 %v6512
    %6849 = vmatmul.mubr.bf16.gmra.mrb[0].mxu0 %v6511
    %v6850 = vpop.f32.mrb[0].mxu0
    %v6851 = vadd.f32 %v6811, %v6850
    %v6852 = vpop.f32.mrb[0].mxu0
    %v6853 = vpop.f32.mrb[0].mxu0
    %v6854 = vpop.f32.mrb[0].mxu0
    %6855 = vdwg.mxu0
    %v6856 = vlaneseq
    %v6857 = vand.u32 %v6856, 127
    %vm6858 = vcmp.eq.s32.totalorder %v6857, 0
    %v6859 = vmul.f32 %v6851, 0.5
    %v6860 = vtanh.pop %v6859
    %v6861 = vadd.f32 %v6860, 1.0
    %v6862 = vmul.f32 %v6861, 0.5
    %v6863 = vsel %vm6858, %v6862, %v6851
    %6864 = vst [vmem:[#allocation17] sm:$0xff] %v6863
    // Predicated region
    $region74: #{tpu_custom_call.1} parent=1 // pred_check
      _
    $region75: #{tpu_custom_call.1} parent=1 // pred_check_branch
      %6866 = sbr.rel (0) target = $region77
    $region76: #{tpu_custom_call.1} parent=1 // pred_region
      %s6868 = ssub.s32 128, 128
      %6869 = vsyncadd [#allocation4], %s6868
      %s6871 = sshll.u32 [#allocation17], 4
      %s6872 = int_to_ptr.vmem [resolvable:$true] %s6871
      %6874 = dma.vmem_to_hbm [thread:$0]  %s6872, 128, %s9, [#allocation4]
    $region77: #{tpu_custom_call.1} parent=1 // pred_fallthru
      _
    // Predicated region
    $region78: #{tpu_custom_call.1} parent=1 // pred_check
      _
    $region79: #{tpu_custom_call.1} parent=1 // pred_check_branch
      %6876 = sbr.rel (0) target = $region81
    $region80: #{tpu_custom_call.1} parent=1 // pred_region
      %6877 = dma.done [#allocation4], 128
    $region81: #{tpu_custom_call.1} parent=1 // pred_fallthru
      _
    %6878 = vsyncpa [#allocation3], 1
    %6879 = vsyncpa [#allocation6], 1
    %6880 = vsyncpa [#allocation9], 1
    %6881 = vsyncpa [#allocation12], 1
    %6882 = vsyncpa [#allocation15], 1
    %6883 = vsyncpa [#allocation4], 1

</llo_original>
